<compile_context>
chip_gen: v6e
topology: v6e:2x2x1
jax: 0.10.0
libtpu: 0.0.40
codegen_flags: <defaults>
</compile_context>

<pallas_src>
import functools

import jax
import jax.numpy as jnp
from jax import lax
from jax.experimental import pallas as pl
from jax.experimental.pallas import tpu as pltpu


def _basic_conv_kernel(x_ref, w1_ref, b1_ref, w2_ref, b2_ref, o_ref,
                       *, H, W, Cin, Cout):
    """Fused (3x3 conv + BN-affine + ReLU) x 2 for one batch element.

    x_ref  : (1, H, W, Cin)        VMEM  (NHWC input)
    w1_ref : (9*Cin,  Cout)        VMEM  (HWIO weights, BN1 scale folded in)
    b1_ref : (1, Cout)             VMEM  (folded conv1 bias + BN1 shift)
    w2_ref : (9*Cout, Cout)        VMEM  (BN2 scale folded in)
    b2_ref : (1, Cout)             VMEM
    o_ref  : (1, Ho2*Wo2, Cout)    VMEM  (flattened spatial output)
    """
    Ho1, Wo1 = H - 2, W - 2
    Ho2, Wo2 = H - 4, W - 4

    x = x_ref[0]                                              # (H, W, Cin)

    # ---- stage 1: im2col -> single MXU matmul -> bias -> ReLU ------------
    cols1 = jnp.concatenate(
        [x[ky:ky + Ho1, kx:kx + Wo1, :] for ky in range(3) for kx in range(3)],
        axis=-1)                                              # (Ho1, Wo1, 9*Cin)
    y1 = jnp.dot(cols1.reshape(Ho1 * Wo1, 9 * Cin), w1_ref[...],
                 preferred_element_type=jnp.float32)          # (Ho1*Wo1, Cout)
    y1 = jnp.maximum(y1 + b1_ref[...], 0.0)
    y1 = y1.reshape(Ho1, Wo1, Cout)                           # stays on-chip

    # ---- stage 2: im2col -> single MXU matmul -> bias -> ReLU ------------
    cols2 = jnp.concatenate(
        [y1[ky:ky + Ho2, kx:kx + Wo2, :] for ky in range(3) for kx in range(3)],
        axis=-1)                                              # (Ho2, Wo2, 9*Cout)
    y2 = jnp.dot(cols2.reshape(Ho2 * Wo2, 9 * Cout), w2_ref[...],
                 preferred_element_type=jnp.float32)          # (Ho2*Wo2, Cout)
    y2 = jnp.maximum(y2 + b2_ref[...], 0.0)

    o_ref[0] = y2.astype(o_ref.dtype)                         # direct store


def basic_conv_pallas(x_nhwc, w1, b1, w2, b2):
    """x_nhwc: (N,H,W,Cin) f32; w1:(3,3,Cin,Cout); w2:(3,3,Cout,Cout);
    b1,b2:(Cout,) -- BN scale already folded into w1/w2, BN shift into b1/b2."""
    N, H, W, Cin = x_nhwc.shape
    Cout = w1.shape[-1]
    Ho2, Wo2 = H - 4, W - 4

    # HWIO -> (9*C, Cout); row order (ky*3+kx)*C + c matches the kernel concat.
    w1m = w1.reshape(9 * Cin, Cout).astype(jnp.float32)
    w2m = w2.reshape(9 * Cout, Cout).astype(jnp.float32)
    b1r = b1.reshape(1, Cout).astype(jnp.float32)
    b2r = b2.reshape(1, Cout).astype(jnp.float32)

    kernel = functools.partial(_basic_conv_kernel, H=H, W=W, Cin=Cin, Cout=Cout)

    out = pl.pallas_call(
        kernel,
        out_shape=jax.ShapeDtypeStruct((N, Ho2 * Wo2, Cout), x_nhwc.dtype),
        grid=(N,),
        in_specs=[
            pl.BlockSpec((1, H, W, Cin), lambda i: (i, 0, 0, 0)),
            pl.BlockSpec((9 * Cin, Cout), lambda i: (0, 0)),
            pl.BlockSpec((1, Cout), lambda i: (0, 0)),
            pl.BlockSpec((9 * Cout, Cout), lambda i: (0, 0)),
            pl.BlockSpec((1, Cout), lambda i: (0, 0)),
        ],
        out_specs=pl.BlockSpec((1, Ho2 * Wo2, Cout), lambda i: (i, 0, 0)),
        compiler_params=pltpu.CompilerParams(
            dimension_semantics=("parallel",),          # megacore on v7x
            vmem_limit_bytes=32 * 1024 * 1024,          # safe on 64 MiB v7x
        ),
    )(x_nhwc, w1m, b1r, w2m, b2r)

    return out.reshape(N, Ho2, Wo2, Cout)


def fold_bn_into_conv(w_hwio, conv_bias, gamma, beta, running_mean,
                      running_var, eps=1e-5):
    """Fold eval-mode BN into the conv weights and bias.

    conv(x, w) * s + t  ==  conv(x, w * s) + t   (s per output channel)
    """
    inv_std = 1.0 / jnp.sqrt(running_var + eps)
    scale = gamma * inv_std                              # (Cout,)
    w_f = w_hwio * scale[None, None, None, :]
    b_f = (conv_bias - running_mean) * scale + beta
    return w_f, b_f


def basic_conv_forward(x_nchw, params):
    """Full BasicConv forward: one fused Pallas call for both stages."""
    # NCHW -> NHWC at the boundary (keep the rest of a real model NHWC).
    x = jnp.transpose(x_nchw, (0, 2, 3, 1))
    w1f, b1f = fold_bn_into_conv(params["w1"], params["b1"], params["g1"],
                                 params["beta1"], params["m1"], params["v1"])
    w2f, b2f = fold_bn_into_conv(params["w2"], params["b2"], params["g2"],
                                 params["beta2"], params["m2"], params["v2"])
    y = basic_conv_pallas(x, w1f, b1f, w2f, b2f)
    return jnp.transpose(y, (0, 3, 1, 2))                # NHWC -> NCHW


def basic_conv_reference(x_nchw, params):
    """Plain-JAX reference (eval-mode BN semantics) for verification."""
    def stage(x, w_hwio, conv_b, g, beta, m, v):
        y = lax.conv_general_dilated(
            x, w_hwio, window_strides=(1, 1), padding="VALID",
            dimension_numbers=("NCHW", "HWIO", "NCHW"),
        )
        y = y + conv_b[None, :, None, None]
        inv_std = 1.0 / jnp.sqrt(v + 1e-5)
        y = (y - m[None, :, None, None]) * (g * inv_std)[None, :, None, None] \
            + beta[None, :, None, None]
        return jnp.maximum(y, 0.0)

    y = stage(x_nchw, params["w1"], params["b1"], params["g1"],
              params["beta1"], params["m1"], params["v1"])
    y = stage(y, params["w2"], params["b2"], params["g2"],
              params["beta2"], params["m2"], params["v2"])
    return y


def make_params(key, in_channels, out_channels):
    ks = jax.random.split(key, 12)
    return {
        # conv1: (3,3,Cin,Cout) HWIO
        "w1": 0.1 * jax.random.normal(ks[0], (3, 3, in_channels, out_channels), jnp.float32),
        "b1": 0.05 * jax.random.normal(ks[1], (out_channels,), jnp.float32),
        "g1": 1.0 + 0.1 * jax.random.normal(ks[2], (out_channels,), jnp.float32),
        "beta1": 0.05 * jax.random.normal(ks[3], (out_channels,), jnp.float32),
        "m1": 0.1 * jax.random.normal(ks[4], (out_channels,), jnp.float32),
        "v1": jax.random.uniform(ks[5], (out_channels,), jnp.float32, 0.5, 1.5),
        # conv2: (3,3,Cout,Cout)
        "w2": 0.1 * jax.random.normal(ks[6], (3, 3, out_channels, out_channels), jnp.float32),
        "b2": 0.05 * jax.random.normal(ks[7], (out_channels,), jnp.float32),
        "g2": 1.0 + 0.1 * jax.random.normal(ks[8], (out_channels,), jnp.float32),
        "beta2": 0.05 * jax.random.normal(ks[9], (out_channels,), jnp.float32),
        "m2": 0.1 * jax.random.normal(ks[10], (out_channels,), jnp.float32),
        "v2": jax.random.uniform(ks[11], (out_channels,), jnp.float32, 0.5, 1.5),
    }


if __name__ == "__main__":
    key = jax.random.PRNGKey(0)
    k_x, k_p = jax.random.split(key)

    N, Cin, Cout, H, W = 2, 4, 8, 16, 16
    x = jax.random.normal(k_x, (N, Cin, H, W), jnp.float32)   # NCHW like PyTorch
    params = make_params(k_p, Cin, Cout)

    out = jax.block_until_ready(basic_conv_forward(x, params))
    ref = jax.block_until_ready(basic_conv_reference(x, params))

    assert out.shape == (N, Cout, H - 4, W - 4), out.shape
    assert jnp.allclose(out, ref, atol=1e-4, rtol=1e-4), \
        float(jnp.max(jnp.abs(out - ref)))

    print("KERNEL_OK")
</pallas_src>

<mosaic_0001>
module attributes {stable_mosaic.version = 11 : i64} {
  func.func @_basic_conv_kernel(%arg0: i32, %arg1: memref<1x16x16x4xf32, #tpu.memory_space<vmem>>, %arg2: memref<36x8xf32, #tpu.memory_space<vmem>>, %arg3: memref<1x8xf32, #tpu.memory_space<vmem>>, %arg4: memref<72x8xf32, #tpu.memory_space<vmem>>, %arg5: memref<1x8xf32, #tpu.memory_space<vmem>>, %arg6: memref<1x144x8xf32, #tpu.memory_space<vmem>>) attributes {dimension_semantics = [#tpu.dimension_semantics<parallel>], iteration_bounds = array<i64: 2>, scalar_prefetch = 0 : i64, scratch_operands = 0 : i64, tpu.core_type = #tpu.core_type<tc>, window_params = [{transform_indices = @transform_0, window_bounds = array<i64: 1, 16, 16, 4>}, {pipeline_mode = #tpu.pipeline_mode<synchronous>, transform_indices = @transform_1, window_bounds = array<i64: 36, 8>}, {pipeline_mode = #tpu.pipeline_mode<synchronous>, transform_indices = @transform_2, window_bounds = array<i64: 1, 8>}, {pipeline_mode = #tpu.pipeline_mode<synchronous>, transform_indices = @transform_3, window_bounds = array<i64: 72, 8>}, {pipeline_mode = #tpu.pipeline_mode<synchronous>, transform_indices = @transform_4, window_bounds = array<i64: 1, 8>}, {transform_indices = @transform_5, window_bounds = array<i64: 1, 144, 8>}]} {
    %c0 = arith.constant 0 : index
    %c0_0 = arith.constant 0 : index
    %c0_1 = arith.constant 0 : index
    %c0_2 = arith.constant 0 : index
    %0 = vector.load %arg1[%c0, %c0_0, %c0_1, %c0_2] : memref<1x16x16x4xf32, #tpu.memory_space<vmem>>, vector<1x16x16x4xf32>
    %1 = vector.shape_cast %0 : vector<1x16x16x4xf32> to vector<16x16x4xf32>
    %2 = vector.extract_strided_slice %1 {offsets = [0, 0, 0], sizes = [14, 14, 4], strides = [1, 1, 1]} : vector<16x16x4xf32> to vector<14x14x4xf32>
    %3 = vector.extract_strided_slice %1 {offsets = [0, 1, 0], sizes = [14, 14, 4], strides = [1, 1, 1]} : vector<16x16x4xf32> to vector<14x14x4xf32>
    %4 = vector.extract_strided_slice %1 {offsets = [0, 2, 0], sizes = [14, 14, 4], strides = [1, 1, 1]} : vector<16x16x4xf32> to vector<14x14x4xf32>
    %5 = vector.extract_strided_slice %1 {offsets = [1, 0, 0], sizes = [14, 14, 4], strides = [1, 1, 1]} : vector<16x16x4xf32> to vector<14x14x4xf32>
    %6 = vector.extract_strided_slice %1 {offsets = [1, 1, 0], sizes = [14, 14, 4], strides = [1, 1, 1]} : vector<16x16x4xf32> to vector<14x14x4xf32>
    %7 = vector.extract_strided_slice %1 {offsets = [1, 2, 0], sizes = [14, 14, 4], strides = [1, 1, 1]} : vector<16x16x4xf32> to vector<14x14x4xf32>
    %8 = vector.extract_strided_slice %1 {offsets = [2, 0, 0], sizes = [14, 14, 4], strides = [1, 1, 1]} : vector<16x16x4xf32> to vector<14x14x4xf32>
    %9 = vector.extract_strided_slice %1 {offsets = [2, 1, 0], sizes = [14, 14, 4], strides = [1, 1, 1]} : vector<16x16x4xf32> to vector<14x14x4xf32>
    %10 = vector.extract_strided_slice %1 {offsets = [2, 2, 0], sizes = [14, 14, 4], strides = [1, 1, 1]} : vector<16x16x4xf32> to vector<14x14x4xf32>
    %11 = tpu.concatenate %2, %3, %4, %5, %6, %7, %8, %9, %10 in 2 : vector<14x14x4xf32>, vector<14x14x4xf32>, vector<14x14x4xf32>, vector<14x14x4xf32>, vector<14x14x4xf32>, vector<14x14x4xf32>, vector<14x14x4xf32>, vector<14x14x4xf32>, vector<14x14x4xf32> -> vector<14x14x36xf32>
    %12 = vector.shape_cast %11 : vector<14x14x36xf32> to vector<196x36xf32>
    %c0_3 = arith.constant 0 : index
    %c0_4 = arith.constant 0 : index
    %13 = vector.load %arg2[%c0_3, %c0_4] : memref<36x8xf32, #tpu.memory_space<vmem>>, vector<36x8xf32>
    %cst = arith.constant dense<0.000000e+00> : vector<196x8xf32>
    %14 = tpu.matmul %12, %13, %cst {dimension_numbers = #tpu.dot_dimension_numbers<[1], [0], [0], [1], [0, 0, 1, 1], [], []>} : vector<196x36xf32>, vector<36x8xf32>, vector<196x8xf32> -> vector<196x8xf32>
    %c0_5 = arith.constant 0 : index
    %c0_6 = arith.constant 0 : index
    %15 = vector.load %arg3[%c0_5, %c0_6] : memref<1x8xf32, #tpu.memory_space<vmem>>, vector<1x8xf32>
    %16 = vector.broadcast %15 : vector<1x8xf32> to vector<196x8xf32>
    %17 = arith.addf %14, %16 : vector<196x8xf32>
    %cst_7 = arith.constant 0.000000e+00 : f32
    %18 = vector.broadcast %cst_7 : f32 to vector<196x8xf32>
    %19 = arith.maximumf %17, %18 : vector<196x8xf32>
    %20 = vector.shape_cast %19 : vector<196x8xf32> to vector<14x14x8xf32>
    %21 = vector.extract_strided_slice %20 {offsets = [0, 0, 0], sizes = [12, 12, 8], strides = [1, 1, 1]} : vector<14x14x8xf32> to vector<12x12x8xf32>
    %22 = vector.extract_strided_slice %20 {offsets = [0, 1, 0], sizes = [12, 12, 8], strides = [1, 1, 1]} : vector<14x14x8xf32> to vector<12x12x8xf32>
    %23 = vector.extract_strided_slice %20 {offsets = [0, 2, 0], sizes = [12, 12, 8], strides = [1, 1, 1]} : vector<14x14x8xf32> to vector<12x12x8xf32>
    %24 = vector.extract_strided_slice %20 {offsets = [1, 0, 0], sizes = [12, 12, 8], strides = [1, 1, 1]} : vector<14x14x8xf32> to vector<12x12x8xf32>
    %25 = vector.extract_strided_slice %20 {offsets = [1, 1, 0], sizes = [12, 12, 8], strides = [1, 1, 1]} : vector<14x14x8xf32> to vector<12x12x8xf32>
    %26 = vector.extract_strided_slice %20 {offsets = [1, 2, 0], sizes = [12, 12, 8], strides = [1, 1, 1]} : vector<14x14x8xf32> to vector<12x12x8xf32>
    %27 = vector.extract_strided_slice %20 {offsets = [2, 0, 0], sizes = [12, 12, 8], strides = [1, 1, 1]} : vector<14x14x8xf32> to vector<12x12x8xf32>
    %28 = vector.extract_strided_slice %20 {offsets = [2, 1, 0], sizes = [12, 12, 8], strides = [1, 1, 1]} : vector<14x14x8xf32> to vector<12x12x8xf32>
    %29 = vector.extract_strided_slice %20 {offsets = [2, 2, 0], sizes = [12, 12, 8], strides = [1, 1, 1]} : vector<14x14x8xf32> to vector<12x12x8xf32>
    %30 = tpu.concatenate %21, %22, %23, %24, %25, %26, %27, %28, %29 in 2 : vector<12x12x8xf32>, vector<12x12x8xf32>, vector<12x12x8xf32>, vector<12x12x8xf32>, vector<12x12x8xf32>, vector<12x12x8xf32>, vector<12x12x8xf32>, vector<12x12x8xf32>, vector<12x12x8xf32> -> vector<12x12x72xf32>
    %31 = vector.shape_cast %30 : vector<12x12x72xf32> to vector<144x72xf32>
    %c0_8 = arith.constant 0 : index
    %c0_9 = arith.constant 0 : index
    %32 = vector.load %arg4[%c0_8, %c0_9] : memref<72x8xf32, #tpu.memory_space<vmem>>, vector<72x8xf32>
    %cst_10 = arith.constant dense<0.000000e+00> : vector<144x8xf32>
    %33 = tpu.matmul %31, %32, %cst_10 {dimension_numbers = #tpu.dot_dimension_numbers<[1], [0], [0], [1], [0, 0, 1, 1], [], []>} : vector<144x72xf32>, vector<72x8xf32>, vector<144x8xf32> -> vector<144x8xf32>
    %c0_11 = arith.constant 0 : index
    %c0_12 = arith.constant 0 : index
    %34 = vector.load %arg5[%c0_11, %c0_12] : memref<1x8xf32, #tpu.memory_space<vmem>>, vector<1x8xf32>
    %35 = vector.broadcast %34 : vector<1x8xf32> to vector<144x8xf32>
    %36 = arith.addf %33, %35 : vector<144x8xf32>
    %cst_13 = arith.constant 0.000000e+00 : f32
    %37 = vector.broadcast %cst_13 : f32 to vector<144x8xf32>
    %38 = arith.maximumf %36, %37 : vector<144x8xf32>
    %c0_14 = arith.constant 0 : index
    %c0_15 = arith.constant 0 : index
    %c0_16 = arith.constant 0 : index
    %39 = vector.load %arg6[%c0_14, %c0_15, %c0_16] : memref<1x144x8xf32, #tpu.memory_space<vmem>>, vector<1x144x8xf32>
    %40 = vector.shape_cast %39 : vector<1x144x8xf32> to vector<144x8xf32>
    %41 = vector.shape_cast %38 : vector<144x8xf32> to vector<1x144x8xf32>
    tpu.vector_store %arg6[%c0_14, %c0_15, %c0_16], %41 {strides = array<i32>} : memref<1x144x8xf32, #tpu.memory_space<vmem>>, vector<1x144x8xf32>,
    return
  }
  func.func @transform_0(%arg0: i32) -> (i32, i32, i32, i32) {
    %c0_i32 = arith.constant 0 : i32
    %c0_i32_0 = arith.constant 0 : i32
    %c0_i32_1 = arith.constant 0 : i32
    %c0_i32_2 = arith.constant 0 : i32
    return %arg0, %c0_i32, %c0_i32_0, %c0_i32_1 : i32, i32, i32, i32
  }
  func.func @transform_1(%arg0: i32) -> (i32, i32) {
    %c0_i32 = arith.constant 0 : i32
    %c0_i32_0 = arith.constant 0 : i32
    %c0_i32_1 = arith.constant 0 : i32
    return %c0_i32, %c0_i32_0 : i32, i32
  }
  func.func @transform_2(%arg0: i32) -> (i32, i32) {
    %c0_i32 = arith.constant 0 : i32
    %c0_i32_0 = arith.constant 0 : i32
    %c0_i32_1 = arith.constant 0 : i32
    return %c0_i32, %c0_i32_0 : i32, i32
  }
  func.func @transform_3(%arg0: i32) -> (i32, i32) {
    %c0_i32 = arith.constant 0 : i32
    %c0_i32_0 = arith.constant 0 : i32
    %c0_i32_1 = arith.constant 0 : i32
    return %c0_i32, %c0_i32_0 : i32, i32
  }
  func.func @transform_4(%arg0: i32) -> (i32, i32) {
    %c0_i32 = arith.constant 0 : i32
    %c0_i32_0 = arith.constant 0 : i32
    %c0_i32_1 = arith.constant 0 : i32
    return %c0_i32, %c0_i32_0 : i32, i32
  }
  func.func @transform_5(%arg0: i32) -> (i32, i32, i32) {
    %c0_i32 = arith.constant 0 : i32
    %c0_i32_0 = arith.constant 0 : i32
    %c0_i32_1 = arith.constant 0 : i32
    return %arg0, %c0_i32, %c0_i32_0 : i32, i32, i32
  }
}

</mosaic_0001>

<llo_original>
// kernel: tpu_custom_call.1
$region0: #{tpu_custom_call.1}
  #allocation0 [shape = 'u32[]', space=smem, size = 0x4, offset = 0x4, fixed_abs, tag = 'smem constant byte address 0x4 - core index']
  #allocation1 [shape = 'u32[144,128]{1,0:T(1,128)}', space=vmem, size = 0x12000, scoped, tag = 'internal scratch']
  %s0 = inlined_call_operand.vmem [shape: f32[2,16,16,4], index: 0, kind: input, shape index: {}]
  %s1 = inlined_call_operand.vmem [shape: f32[36,8], index: 1, kind: input, shape index: {}]
  %s2 = inlined_call_operand.vmem [shape: f32[1,8], index: 2, kind: input, shape index: {}]
  %s3 = inlined_call_operand.vmem [shape: f32[72,8], index: 3, kind: input, shape index: {}]
  %s4 = inlined_call_operand.vmem [shape: f32[1,8], index: 4, kind: input, shape index: {}]
  %s5 = inlined_call_operand.vmem [shape: f32[2,144,8], index: 5, kind: output, shape index: {}]
  %s6 = sld [smem:[#allocation0]]
  $region53: #{tpu_custom_call.1} parent=0
    _
  %s8 = ssub.s32 1, %s6
  %s9 = scalar_select 0, %s8, %s6
  loop: start=0, step=1, limit=4
  $region2: #{tpu_custom_call.1} parent=0 // loop_pre_header
    _
  $region3: #{tpu_custom_call.1} parent=0 // loop_header
    %s11 = sphi 0, %s15
    %p12 = scmp.ge.s32.totalorder %s11, 4
    %s21 = sphi 0, %s23
    %s24 = sphi 0, %s21
    %s25 = sphi 0, %s24
    %s41 = sphi 0, %s25
    %s45 = sphi 0, %s45
    %s47 = sphi 0, %s45
    %s48 = sphi 0, %s47
    %s62 = sphi 0, %s48
    %s66 = sphi 0, %s66
    %s68 = sphi 0, %s66
    %s69 = sphi 0, %s68
    %s83 = sphi 0, %s69
    %s87 = sphi 0, %s87
    %s89 = sphi 0, %s87
    %s90 = sphi 0, %s89
    %s104 = sphi 0, %s90
    %s108 = sphi 0, %s108
    %s110 = sphi 0, %s108
    %s111 = sphi 0, %s110
    %s125 = sphi 0, %s111
    %s131 = sphi 0, %s133
    %s134 = sphi 0, %s131
    %s135 = sphi 0, %s134
    %s151 = sphi 0, %s135
  $region4: #{tpu_custom_call.1} parent=0 // loop_header_branch
    %14 = sbr.rel (%p12) target = $region8
  $region5: #{tpu_custom_call.1} parent=0 // loop_body
    %s16 = ssub.s32 %s11, 1
    %s17 = ssub.s32 %s11, 2
    %s18 = sadd.s32 %s11, 1
    %s19 = ssub.s32 %s11, %s18
    %p20 = scmp.eq.s32.totalorder %s19, 0
    %s22 = sadd.s32 %s21, 1
    %s23 = scalar_select %p20, %s21, %s22
    %p26 = pneg %p20
    %p27 = scmp.eq.s32.totalorder %s11, 1
    %p28 = por %p26, %p27
    %p29 = scmp.ne.s32.totalorder %s21, %s24
    %p30 = scmp.eq.s32.totalorder %s11, 0
    %p31 = por %p29, %p30
    %p32 = scmp.ne.s32.totalorder %s21, %s24
    %p33 = scmp.eq.s32.totalorder %s16, 1
    %p34 = por %p32, %p33
    %p35 = scmp.ne.s32.totalorder %s24, %s25
    %p36 = scmp.eq.s32.totalorder %s16, 0
    %p37 = por %p35, %p36
    %p38 = scmp.ne.s32.totalorder %s24, %s25
    %p39 = scmp.eq.s32.totalorder %s17, 1
    %p40 = por %p38, %p39
    %p42 = scmp.ne.s32.totalorder %s25, %s41
    %p43 = scmp.eq.s32.totalorder %s17, 0
    %p44 = por %p42, %p43
    %s46 = sadd.s32 %s45, 1
    %p49 = scmp.eq.s32.totalorder %s11, 1
    %p50 = scmp.ne.s32.totalorder %s45, %s47
    %p51 = scmp.eq.s32.totalorder %s11, 0
    %p52 = por %p50, %p51
    %p53 = scmp.ne.s32.totalorder %s45, %s47
    %p54 = scmp.eq.s32.totalorder %s16, 1
    %p55 = por %p53, %p54
    %p56 = scmp.ne.s32.totalorder %s47, %s48
    %p57 = scmp.eq.s32.totalorder %s16, 0
    %p58 = por %p56, %p57
    %p59 = scmp.ne.s32.totalorder %s47, %s48
    %p60 = scmp.eq.s32.totalorder %s17, 1
    %p61 = por %p59, %p60
    %p63 = scmp.ne.s32.totalorder %s48, %s62
    %p64 = scmp.eq.s32.totalorder %s17, 0
    %p65 = por %p63, %p64
    %s67 = sadd.s32 %s66, 1
    %p70 = scmp.eq.s32.totalorder %s11, 1
    %p71 = scmp.ne.s32.totalorder %s66, %s68
    %p72 = scmp.eq.s32.totalorder %s11, 0
    %p73 = por %p71, %p72
    %p74 = scmp.ne.s32.totalorder %s66, %s68
    %p75 = scmp.eq.s32.totalorder %s16, 1
    %p76 = por %p74, %p75
    %p77 = scmp.ne.s32.totalorder %s68, %s69
    %p78 = scmp.eq.s32.totalorder %s16, 0
    %p79 = por %p77, %p78
    %p80 = scmp.ne.s32.totalorder %s68, %s69
    %p81 = scmp.eq.s32.totalorder %s17, 1
    %p82 = por %p80, %p81
    %p84 = scmp.ne.s32.totalorder %s69, %s83
    %p85 = scmp.eq.s32.totalorder %s17, 0
    %p86 = por %p84, %p85
    %s88 = sadd.s32 %s87, 1
    %p91 = scmp.eq.s32.totalorder %s11, 1
    %p92 = scmp.ne.s32.totalorder %s87, %s89
    %p93 = scmp.eq.s32.totalorder %s11, 0
    %p94 = por %p92, %p93
    %p95 = scmp.ne.s32.totalorder %s87, %s89
    %p96 = scmp.eq.s32.totalorder %s16, 1
    %p97 = por %p95, %p96
    %p98 = scmp.ne.s32.totalorder %s89, %s90
    %p99 = scmp.eq.s32.totalorder %s16, 0
    %p100 = por %p98, %p99
    %p101 = scmp.ne.s32.totalorder %s89, %s90
    %p102 = scmp.eq.s32.totalorder %s17, 1
    %p103 = por %p101, %p102
    %p105 = scmp.ne.s32.totalorder %s90, %s104
    %p106 = scmp.eq.s32.totalorder %s17, 0
    %p107 = por %p105, %p106
    %s109 = sadd.s32 %s108, 1
    %p112 = scmp.eq.s32.totalorder %s11, 1
    %p113 = scmp.ne.s32.totalorder %s108, %s110
    %p114 = scmp.eq.s32.totalorder %s11, 0
    %p115 = por %p113, %p114
    %p116 = scmp.ne.s32.totalorder %s108, %s110
    %p117 = scmp.eq.s32.totalorder %s16, 1
    %p118 = por %p116, %p117
    %p119 = scmp.ne.s32.totalorder %s110, %s111
    %p120 = scmp.eq.s32.totalorder %s16, 0
    %p121 = por %p119, %p120
    %p122 = scmp.ne.s32.totalorder %s110, %s111
    %p123 = scmp.eq.s32.totalorder %s17, 1
    %p124 = por %p122, %p123
    %p126 = scmp.ne.s32.totalorder %s111, %s125
    %p127 = scmp.eq.s32.totalorder %s17, 0
    %p128 = por %p126, %p127
    %s129 = ssub.s32 %s11, %s18
    %p130 = scmp.eq.s32.totalorder %s129, 0
    %s132 = sadd.s32 %s131, 1
    %s133 = scalar_select %p130, %s131, %s132
    %p136 = pneg %p130
    %p137 = scmp.eq.s32.totalorder %s11, 1
    %p138 = por %p136, %p137
    %p139 = scmp.ne.s32.totalorder %s131, %s134
    %p140 = scmp.eq.s32.totalorder %s11, 0
    %p141 = por %p139, %p140
    %p142 = scmp.ne.s32.totalorder %s131, %s134
    %p143 = scmp.eq.s32.totalorder %s16, 1
    %p144 = por %p142, %p143
    %p145 = scmp.ne.s32.totalorder %s134, %s135
    %p146 = scmp.eq.s32.totalorder %s16, 0
    %p147 = por %p145, %p146
    %p148 = scmp.ne.s32.totalorder %s134, %s135
    %p149 = scmp.eq.s32.totalorder %s17, 1
    %p150 = por %p148, %p149
    %p152 = scmp.ne.s32.totalorder %s135, %s151
    %p153 = scmp.eq.s32.totalorder %s17, 0
    %p154 = por %p152, %p153
    %p155 = scmp.le.s32.totalorder 1, %s11
    %p156 = scmp.lt.s32.totalorder %s11, 3
    %p157 = pnand %p155, %p156
    %p158 = pneg %p157
    // Predicated region
    $region9: #{tpu_custom_call.1} parent=5 // pred_check
      _
    $region10: #{tpu_custom_call.1} parent=5 // pred_check_branch
      %160 = sbr.rel (%p157) target = $region12
    $region11: #{tpu_custom_call.1} parent=5 // pred_region
      %s161 = ssub.s32 %s11, 1
      // Predicated region
      $region13: #{tpu_custom_call.1} parent=11 // pred_check
        %p162 = pneg %p58
      $region14: #{tpu_custom_call.1} parent=11 // pred_check_branch
        %164 = sbr.rel (%p162) target = $region16
      $region15: #{tpu_custom_call.1} parent=11 // pred_region
        _
      $region16: #{tpu_custom_call.1} parent=11 // pred_fallthru
        _
      // Predicated region
      $region17: #{tpu_custom_call.1} parent=11 // pred_check
        %p165 = pneg %p79
      $region18: #{tpu_custom_call.1} parent=11 // pred_check_branch
        %167 = sbr.rel (%p165) target = $region20
      $region19: #{tpu_custom_call.1} parent=11 // pred_region
        _
      $region20: #{tpu_custom_call.1} parent=11 // pred_fallthru
        _
      // Predicated region
      $region21: #{tpu_custom_call.1} parent=11 // pred_check
        %p168 = pneg %p100
      $region22: #{tpu_custom_call.1} parent=11 // pred_check_branch
        %170 = sbr.rel (%p168) target = $region24
      $region23: #{tpu_custom_call.1} parent=11 // pred_region
        _
      $region24: #{tpu_custom_call.1} parent=11 // pred_fallthru
        _
      // Predicated region
      $region25: #{tpu_custom_call.1} parent=11 // pred_check
        %p171 = pneg %p121
      $region26: #{tpu_custom_call.1} parent=11 // pred_check_branch
        %173 = sbr.rel (%p171) target = $region28
      $region27: #{tpu_custom_call.1} parent=11 // pred_region
        _
      $region28: #{tpu_custom_call.1} parent=11 // pred_fallthru
        _
    $region12: #{tpu_custom_call.1} parent=5 // pred_fallthru
      _
    %p174 = scmp.lt.s32.totalorder %s11, 2
    // Predicated region
    $region29: #{tpu_custom_call.1} parent=5 // pred_check
      %p175 = pneg %p174
    $region30: #{tpu_custom_call.1} parent=5 // pred_check_branch
      %177 = sbr.rel (%p175) target = $region32
    $region31: #{tpu_custom_call.1} parent=5 // pred_region
      // Predicated region
      $region33: #{tpu_custom_call.1} parent=31 // pred_check
        %p178 = pneg %p31
      $region34: #{tpu_custom_call.1} parent=31 // pred_check_branch
        %180 = sbr.rel (%p178) target = $region36
      $region35: #{tpu_custom_call.1} parent=31 // pred_region
        %p181 = scmp.lt.s32.totalorder %s11, 1
        %s182 = scalar_select %p181, %s11, 1
        %s183 = smul.addr %s182, 32
        %s184 = smul.addr %s183, 8
        %s185 = scalar_lea.vmem %s0, %s184
      $region36: #{tpu_custom_call.1} parent=31 // pred_fallthru
        _
    $region32: #{tpu_custom_call.1} parent=5 // pred_fallthru
      _
    %p186 = scmp.le.s32.totalorder 1, %s11
    %p187 = scmp.lt.s32.totalorder %s11, 3
    %p188 = pnand %p186, %p187
    %p189 = pneg %p188
    // Predicated region
    $region37: #{tpu_custom_call.1} parent=5 // pred_check
      _
    $region38: #{tpu_custom_call.1} parent=5 // pred_check_branch
      %191 = sbr.rel (%p188) target = $region40
    $region39: #{tpu_custom_call.1} parent=5 // pred_region
      %s192 = ssub.s32 %s11, 1
      %p193 = scmp.lt.s32.totalorder %s16, 1
      %s194 = scalar_select %p193, %s16, 1
      %s195 = smul.addr %s194, 32
      %s196 = smul.addr %s195, 8
      %s197 = scalar_lea.vmem %s0, %s196
      %p198 = pneg %p37
      %p199 = pneg %p34
      %p200 = pneg %p58
      %p201 = pneg %p55
      %p202 = pneg %p79
      %p203 = pneg %p76
      %p204 = pneg %p100
      %p205 = pneg %p97
      %p206 = pneg %p121
      %p207 = pneg %p118
      %p208 = pneg %p147
      %p209 = pneg %p144
      %p210 = scmp.lt.s32.totalorder %s16, 1
      %s211 = scalar_select %p210, %s16, 1
      %s212 = smul.addr %s211, 18
      %s213 = smul.addr %s212, 8
      %s214 = scalar_lea.vmem %s5, %s213
      %p215 = scmp.lt.s32.totalorder %s16, 1
      %s216 = scalar_select %p215, %s16, 1
      %s217 = smul.addr %s216, 32
      %s218 = smul.addr %s217, 8
      %s219 = scalar_lea.vmem %s0, %s218
      %p220 = scmp.lt.s32.totalorder %s16, 1
      %s221 = scalar_select %p220, %s16, 1
      %s222 = smul.addr %s221, 18
      %s223 = smul.addr %s222, 8
      %s224 = scalar_lea.vmem %s5, %s223
      %v225 = vld [vmem:[%s219] sm:$0xff]
      %v226 = vld [vmem:[%s219 + $0x8] sm:$0xff]
      %v227 = vld [vmem:[%s219 + $0x10] sm:$0xff]
      %v228 = vld [vmem:[%s219 + $0x18] sm:$0xff]
      %v229 = vld [vmem:[%s219 + $0x20] sm:$0xff]
      %v230 = vld [vmem:[%s219 + $0x28] sm:$0xff]
      %v231 = vld [vmem:[%s219 + $0x30] sm:$0xff]
      %v232 = vld [vmem:[%s219 + $0x38] sm:$0xff]
      %v233 = vld [vmem:[%s219 + $0x40] sm:$0xff]
      %v234 = vld [vmem:[%s219 + $0x48] sm:$0xff]
      %v235 = vld [vmem:[%s219 + $0x50] sm:$0xff]
      %v236 = vld [vmem:[%s219 + $0x58] sm:$0xff]
      %v237 = vld [vmem:[%s219 + $0x60] sm:$0xff]
      %v238 = vld [vmem:[%s219 + $0x68] sm:$0xff]
      %v239 = vld [vmem:[%s219 + $0x70] sm:$0xff]
      %v240 = vld [vmem:[%s219 + $0x78] sm:$0xff]
      %v241 = vld [vmem:[%s219 + $0x80] sm:$0xff]
      %v242 = vld [vmem:[%s219 + $0x88] sm:$0xff]
      %v243 = vld [vmem:[%s219 + $0x90] sm:$0xff]
      %v244 = vld [vmem:[%s219 + $0x98] sm:$0xff]
      %v245 = vld [vmem:[%s219 + $0xa0] sm:$0xff]
      %v246 = vld [vmem:[%s219 + $0xa8] sm:$0xff]
      %v247 = vld [vmem:[%s219 + $0xb0] sm:$0xff]
      %v248 = vld [vmem:[%s219 + $0xb8] sm:$0xff]
      %v249 = vld [vmem:[%s219 + $0xc0] sm:$0xff]
      %v250 = vld [vmem:[%s219 + $0xc8] sm:$0xff]
      %v251 = vld [vmem:[%s219 + $0xd0] sm:$0xff]
      %v252 = vld [vmem:[%s219 + $0xd8] sm:$0xff]
      %v253 = vld [vmem:[%s219 + $0xe0] sm:$0xff]
      %v254 = vld [vmem:[%s219 + $0xe8] sm:$0xff]
      %v255 = vld [vmem:[%s219 + $0xf0] sm:$0xff]
      %v256 = vld [vmem:[%s219 + $0xf8] sm:$0xff]
      %vm285 = vcmask 1046528
      %v286 = vrot.slane %v225, 1
      %v287 = vrot.slane %v226, 1
      %v288 = vsel %vm285, %v286, %v287
      %v289 = vrot.slane %v227, 1
      %v290 = vrot.slane %v228, 1
      %v291 = vsel %vm285, %v289, %v290
      %v292 = vrot.slane %v229, 1
      %v293 = vrot.slane %v230, 1
      %v294 = vsel %vm285, %v292, %v293
      %v295 = vrot.slane %v231, 1
      %v296 = vrot.slane %v232, 1
      %v297 = vsel %vm285, %v295, %v296
      %v298 = vrot.slane %v233, 1
      %v299 = vrot.slane %v234, 1
      %v300 = vsel %vm285, %v298, %v299
      %v301 = vrot.slane %v235, 1
      %v302 = vrot.slane %v236, 1
      %v303 = vsel %vm285, %v301, %v302
      %v304 = vrot.slane %v237, 1
      %v305 = vrot.slane %v238, 1
      %v306 = vsel %vm285, %v304, %v305
      %v307 = vrot.slane %v239, 1
      %v308 = vrot.slane %v240, 1
      %v309 = vsel %vm285, %v307, %v308
      %v310 = vrot.slane %v241, 1
      %v311 = vrot.slane %v242, 1
      %v312 = vsel %vm285, %v310, %v311
      %v313 = vrot.slane %v243, 1
      %v314 = vrot.slane %v244, 1
      %v315 = vsel %vm285, %v313, %v314
      %v316 = vrot.slane %v245, 1
      %v317 = vrot.slane %v246, 1
      %v318 = vsel %vm285, %v316, %v317
      %v319 = vrot.slane %v247, 1
      %v320 = vrot.slane %v248, 1
      %v321 = vsel %vm285, %v319, %v320
      %v322 = vrot.slane %v249, 1
      %v323 = vrot.slane %v250, 1
      %v324 = vsel %vm285, %v322, %v323
      %v325 = vrot.slane %v251, 1
      %v326 = vrot.slane %v252, 1
      %v327 = vsel %vm285, %v325, %v326
      %328 = vrot.lane.b32.xlu0 %v288, 4
      %v329 = vpop.permute.xlu0 %328
      %330 = vrot.lane.b32.xlu0 %v287, 4
      %v331 = vpop.permute.xlu0 %330
      %332 = vrot.lane.b32.xlu0 %v291, 4
      %v333 = vpop.permute.xlu0 %332
      %334 = vrot.lane.b32.xlu0 %v290, 4
      %v335 = vpop.permute.xlu0 %334
      %336 = vrot.lane.b32.xlu0 %v294, 4
      %v337 = vpop.permute.xlu0 %336
      %338 = vrot.lane.b32.xlu0 %v293, 4
      %v339 = vpop.permute.xlu0 %338
      %340 = vrot.lane.b32.xlu0 %v297, 4
      %v341 = vpop.permute.xlu0 %340
      %342 = vrot.lane.b32.xlu0 %v296, 4
      %v343 = vpop.permute.xlu0 %342
      %344 = vrot.lane.b32.xlu0 %v300, 4
      %v345 = vpop.permute.xlu0 %344
      %346 = vrot.lane.b32.xlu0 %v299, 4
      %v347 = vpop.permute.xlu0 %346
      %348 = vrot.lane.b32.xlu0 %v303, 4
      %v349 = vpop.permute.xlu0 %348
      %350 = vrot.lane.b32.xlu0 %v302, 4
      %v351 = vpop.permute.xlu0 %350
      %352 = vrot.lane.b32.xlu0 %v306, 4
      %v353 = vpop.permute.xlu0 %352
      %354 = vrot.lane.b32.xlu0 %v305, 4
      %v355 = vpop.permute.xlu0 %354
      %356 = vrot.lane.b32.xlu0 %v309, 4
      %v357 = vpop.permute.xlu0 %356
      %358 = vrot.lane.b32.xlu0 %v308, 4
      %v359 = vpop.permute.xlu0 %358
      %360 = vrot.lane.b32.xlu0 %v312, 4
      %v361 = vpop.permute.xlu0 %360
      %362 = vrot.lane.b32.xlu0 %v311, 4
      %v363 = vpop.permute.xlu0 %362
      %364 = vrot.lane.b32.xlu0 %v315, 4
      %v365 = vpop.permute.xlu0 %364
      %366 = vrot.lane.b32.xlu0 %v314, 4
      %v367 = vpop.permute.xlu0 %366
      %368 = vrot.lane.b32.xlu0 %v318, 4
      %v369 = vpop.permute.xlu0 %368
      %370 = vrot.lane.b32.xlu0 %v317, 4
      %v371 = vpop.permute.xlu0 %370
      %372 = vrot.lane.b32.xlu0 %v321, 4
      %v373 = vpop.permute.xlu0 %372
      %374 = vrot.lane.b32.xlu0 %v320, 4
      %v375 = vpop.permute.xlu0 %374
      %376 = vrot.lane.b32.xlu0 %v324, 4
      %v377 = vpop.permute.xlu0 %376
      %378 = vrot.lane.b32.xlu0 %v323, 4
      %v379 = vpop.permute.xlu0 %378
      %380 = vrot.lane.b32.xlu0 %v327, 4
      %v381 = vpop.permute.xlu0 %380
      %382 = vrot.lane.b32.xlu0 %v326, 4
      %v383 = vpop.permute.xlu0 %382
      %vm412 = vcmask 1045504
      %v413 = vrot.slane %v225, 2
      %v414 = vrot.slane %v226, 2
      %v415 = vsel %vm412, %v413, %v414
      %v416 = vrot.slane %v227, 2
      %v417 = vrot.slane %v228, 2
      %v418 = vsel %vm412, %v416, %v417
      %v419 = vrot.slane %v229, 2
      %v420 = vrot.slane %v230, 2
      %v421 = vsel %vm412, %v419, %v420
      %v422 = vrot.slane %v231, 2
      %v423 = vrot.slane %v232, 2
      %v424 = vsel %vm412, %v422, %v423
      %v425 = vrot.slane %v233, 2
      %v426 = vrot.slane %v234, 2
      %v427 = vsel %vm412, %v425, %v426
      %v428 = vrot.slane %v235, 2
      %v429 = vrot.slane %v236, 2
      %v430 = vsel %vm412, %v428, %v429
      %v431 = vrot.slane %v237, 2
      %v432 = vrot.slane %v238, 2
      %v433 = vsel %vm412, %v431, %v432
      %v434 = vrot.slane %v239, 2
      %v435 = vrot.slane %v240, 2
      %v436 = vsel %vm412, %v434, %v435
      %v437 = vrot.slane %v241, 2
      %v438 = vrot.slane %v242, 2
      %v439 = vsel %vm412, %v437, %v438
      %v440 = vrot.slane %v243, 2
      %v441 = vrot.slane %v244, 2
      %v442 = vsel %vm412, %v440, %v441
      %v443 = vrot.slane %v245, 2
      %v444 = vrot.slane %v246, 2
      %v445 = vsel %vm412, %v443, %v444
      %v446 = vrot.slane %v247, 2
      %v447 = vrot.slane %v248, 2
      %v448 = vsel %vm412, %v446, %v447
      %v449 = vrot.slane %v249, 2
      %v450 = vrot.slane %v250, 2
      %v451 = vsel %vm412, %v449, %v450
      %v452 = vrot.slane %v251, 2
      %v453 = vrot.slane %v252, 2
      %v454 = vsel %vm412, %v452, %v453
      %455 = vrot.lane.b32.xlu0 %v415, 8
      %v456 = vpop.permute.xlu0 %455
      %457 = vrot.lane.b32.xlu0 %v414, 8
      %v458 = vpop.permute.xlu0 %457
      %459 = vrot.lane.b32.xlu0 %v418, 8
      %v460 = vpop.permute.xlu0 %459
      %461 = vrot.lane.b32.xlu0 %v417, 8
      %v462 = vpop.permute.xlu0 %461
      %463 = vrot.lane.b32.xlu0 %v421, 8
      %v464 = vpop.permute.xlu0 %463
      %465 = vrot.lane.b32.xlu0 %v420, 8
      %v466 = vpop.permute.xlu0 %465
      %467 = vrot.lane.b32.xlu0 %v424, 8
      %v468 = vpop.permute.xlu0 %467
      %469 = vrot.lane.b32.xlu0 %v423, 8
      %v470 = vpop.permute.xlu0 %469
      %471 = vrot.lane.b32.xlu0 %v427, 8
      %v472 = vpop.permute.xlu0 %471
      %473 = vrot.lane.b32.xlu0 %v426, 8
      %v474 = vpop.permute.xlu0 %473
      %475 = vrot.lane.b32.xlu0 %v430, 8
      %v476 = vpop.permute.xlu0 %475
      %477 = vrot.lane.b32.xlu0 %v429, 8
      %v478 = vpop.permute.xlu0 %477
      %479 = vrot.lane.b32.xlu0 %v433, 8
      %v480 = vpop.permute.xlu0 %479
      %481 = vrot.lane.b32.xlu0 %v432, 8
      %v482 = vpop.permute.xlu0 %481
      %483 = vrot.lane.b32.xlu0 %v436, 8
      %v484 = vpop.permute.xlu0 %483
      %485 = vrot.lane.b32.xlu0 %v435, 8
      %v486 = vpop.permute.xlu0 %485
      %487 = vrot.lane.b32.xlu0 %v439, 8
      %v488 = vpop.permute.xlu0 %487
      %489 = vrot.lane.b32.xlu0 %v438, 8
      %v490 = vpop.permute.xlu0 %489
      %491 = vrot.lane.b32.xlu0 %v442, 8
      %v492 = vpop.permute.xlu0 %491
      %493 = vrot.lane.b32.xlu0 %v441, 8
      %v494 = vpop.permute.xlu0 %493
      %495 = vrot.lane.b32.xlu0 %v445, 8
      %v496 = vpop.permute.xlu0 %495
      %497 = vrot.lane.b32.xlu0 %v444, 8
      %v498 = vpop.permute.xlu0 %497
      %499 = vrot.lane.b32.xlu0 %v448, 8
      %v500 = vpop.permute.xlu0 %499
      %501 = vrot.lane.b32.xlu0 %v447, 8
      %v502 = vpop.permute.xlu0 %501
      %503 = vrot.lane.b32.xlu0 %v451, 8
      %v504 = vpop.permute.xlu0 %503
      %505 = vrot.lane.b32.xlu0 %v450, 8
      %v506 = vpop.permute.xlu0 %505
      %507 = vrot.lane.b32.xlu0 %v454, 8
      %v508 = vpop.permute.xlu0 %507
      %509 = vrot.lane.b32.xlu0 %v453, 8
      %v510 = vpop.permute.xlu0 %509
      %541 = vrot.lane.b32.xlu0 %v227, 12
      %v542 = vpop.permute.xlu0 %541
      %543 = vrot.lane.b32.xlu0 %v228, 12
      %v544 = vpop.permute.xlu0 %543
      %545 = vrot.lane.b32.xlu0 %v229, 12
      %v546 = vpop.permute.xlu0 %545
      %547 = vrot.lane.b32.xlu0 %v230, 12
      %v548 = vpop.permute.xlu0 %547
      %549 = vrot.lane.b32.xlu0 %v231, 12
      %v550 = vpop.permute.xlu0 %549
      %551 = vrot.lane.b32.xlu0 %v232, 12
      %v552 = vpop.permute.xlu0 %551
      %553 = vrot.lane.b32.xlu0 %v233, 12
      %v554 = vpop.permute.xlu0 %553
      %555 = vrot.lane.b32.xlu0 %v234, 12
      %v556 = vpop.permute.xlu0 %555
      %557 = vrot.lane.b32.xlu0 %v235, 12
      %v558 = vpop.permute.xlu0 %557
      %559 = vrot.lane.b32.xlu0 %v236, 12
      %v560 = vpop.permute.xlu0 %559
      %561 = vrot.lane.b32.xlu0 %v237, 12
      %v562 = vpop.permute.xlu0 %561
      %563 = vrot.lane.b32.xlu0 %v238, 12
      %v564 = vpop.permute.xlu0 %563
      %565 = vrot.lane.b32.xlu0 %v239, 12
      %v566 = vpop.permute.xlu0 %565
      %567 = vrot.lane.b32.xlu0 %v240, 12
      %v568 = vpop.permute.xlu0 %567
      %569 = vrot.lane.b32.xlu0 %v241, 12
      %v570 = vpop.permute.xlu0 %569
      %571 = vrot.lane.b32.xlu0 %v242, 12
      %v572 = vpop.permute.xlu0 %571
      %573 = vrot.lane.b32.xlu0 %v243, 12
      %v574 = vpop.permute.xlu0 %573
      %575 = vrot.lane.b32.xlu0 %v244, 12
      %v576 = vpop.permute.xlu0 %575
      %577 = vrot.lane.b32.xlu0 %v245, 12
      %v578 = vpop.permute.xlu0 %577
      %579 = vrot.lane.b32.xlu0 %v246, 12
      %v580 = vpop.permute.xlu0 %579
      %581 = vrot.lane.b32.xlu0 %v247, 12
      %v582 = vpop.permute.xlu0 %581
      %583 = vrot.lane.b32.xlu0 %v248, 12
      %v584 = vpop.permute.xlu0 %583
      %585 = vrot.lane.b32.xlu0 %v249, 12
      %v586 = vpop.permute.xlu0 %585
      %587 = vrot.lane.b32.xlu0 %v250, 12
      %v588 = vpop.permute.xlu0 %587
      %589 = vrot.lane.b32.xlu0 %v251, 12
      %v590 = vpop.permute.xlu0 %589
      %591 = vrot.lane.b32.xlu0 %v252, 12
      %v592 = vpop.permute.xlu0 %591
      %593 = vrot.lane.b32.xlu0 %v253, 12
      %v594 = vpop.permute.xlu0 %593
      %595 = vrot.lane.b32.xlu0 %v254, 12
      %v596 = vpop.permute.xlu0 %595
      %v625 = vrot.slane %v253, 1
      %v626 = vrot.slane %v254, 1
      %v627 = vsel %vm285, %v625, %v626
      %628 = vrot.lane.b32.xlu0 %v291, 16
      %v629 = vpop.permute.xlu0 %628
      %630 = vrot.lane.b32.xlu0 %v290, 16
      %v631 = vpop.permute.xlu0 %630
      %632 = vrot.lane.b32.xlu0 %v294, 16
      %v633 = vpop.permute.xlu0 %632
      %634 = vrot.lane.b32.xlu0 %v293, 16
      %v635 = vpop.permute.xlu0 %634
      %636 = vrot.lane.b32.xlu0 %v297, 16
      %v637 = vpop.permute.xlu0 %636
      %638 = vrot.lane.b32.xlu0 %v296, 16
      %v639 = vpop.permute.xlu0 %638
      %640 = vrot.lane.b32.xlu0 %v300, 16
      %v641 = vpop.permute.xlu0 %640
      %642 = vrot.lane.b32.xlu0 %v299, 16
      %v643 = vpop.permute.xlu0 %642
      %644 = vrot.lane.b32.xlu0 %v303, 16
      %v645 = vpop.permute.xlu0 %644
      %646 = vrot.lane.b32.xlu0 %v302, 16
      %v647 = vpop.permute.xlu0 %646
      %648 = vrot.lane.b32.xlu0 %v306, 16
      %v649 = vpop.permute.xlu0 %648
      %650 = vrot.lane.b32.xlu0 %v305, 16
      %v651 = vpop.permute.xlu0 %650
      %652 = vrot.lane.b32.xlu0 %v309, 16
      %v653 = vpop.permute.xlu0 %652
      %654 = vrot.lane.b32.xlu0 %v308, 16
      %v655 = vpop.permute.xlu0 %654
      %656 = vrot.lane.b32.xlu0 %v312, 16
      %v657 = vpop.permute.xlu0 %656
      %658 = vrot.lane.b32.xlu0 %v311, 16
      %v659 = vpop.permute.xlu0 %658
      %660 = vrot.lane.b32.xlu0 %v315, 16
      %v661 = vpop.permute.xlu0 %660
      %662 = vrot.lane.b32.xlu0 %v314, 16
      %v663 = vpop.permute.xlu0 %662
      %664 = vrot.lane.b32.xlu0 %v318, 16
      %v665 = vpop.permute.xlu0 %664
      %666 = vrot.lane.b32.xlu0 %v317, 16
      %v667 = vpop.permute.xlu0 %666
      %668 = vrot.lane.b32.xlu0 %v321, 16
      %v669 = vpop.permute.xlu0 %668
      %670 = vrot.lane.b32.xlu0 %v320, 16
      %v671 = vpop.permute.xlu0 %670
      %672 = vrot.lane.b32.xlu0 %v324, 16
      %v673 = vpop.permute.xlu0 %672
      %674 = vrot.lane.b32.xlu0 %v323, 16
      %v675 = vpop.permute.xlu0 %674
      %676 = vrot.lane.b32.xlu0 %v327, 16
      %v677 = vpop.permute.xlu0 %676
      %678 = vrot.lane.b32.xlu0 %v326, 16
      %v679 = vpop.permute.xlu0 %678
      %680 = vrot.lane.b32.xlu0 %v627, 16
      %v681 = vpop.permute.xlu0 %680
      %682 = vrot.lane.b32.xlu0 %v626, 16
      %v683 = vpop.permute.xlu0 %682
      %v712 = vrot.slane %v253, 2
      %v713 = vrot.slane %v254, 2
      %v714 = vsel %vm412, %v712, %v713
      %715 = vrot.lane.b32.xlu0 %v418, 20
      %v716 = vpop.permute.xlu0 %715
      %717 = vrot.lane.b32.xlu0 %v417, 20
      %v718 = vpop.permute.xlu0 %717
      %719 = vrot.lane.b32.xlu0 %v421, 20
      %v720 = vpop.permute.xlu0 %719
      %721 = vrot.lane.b32.xlu0 %v420, 20
      %v722 = vpop.permute.xlu0 %721
      %723 = vrot.lane.b32.xlu0 %v424, 20
      %v724 = vpop.permute.xlu0 %723
      %725 = vrot.lane.b32.xlu0 %v423, 20
      %v726 = vpop.permute.xlu0 %725
      %727 = vrot.lane.b32.xlu0 %v427, 20
      %v728 = vpop.permute.xlu0 %727
      %729 = vrot.lane.b32.xlu0 %v426, 20
      %v730 = vpop.permute.xlu0 %729
      %731 = vrot.lane.b32.xlu0 %v430, 20
      %v732 = vpop.permute.xlu0 %731
      %733 = vrot.lane.b32.xlu0 %v429, 20
      %v734 = vpop.permute.xlu0 %733
      %735 = vrot.lane.b32.xlu0 %v433, 20
      %v736 = vpop.permute.xlu0 %735
      %737 = vrot.lane.b32.xlu0 %v432, 20
      %v738 = vpop.permute.xlu0 %737
      %739 = vrot.lane.b32.xlu0 %v436, 20
      %v740 = vpop.permute.xlu0 %739
      %741 = vrot.lane.b32.xlu0 %v435, 20
      %v742 = vpop.permute.xlu0 %741
      %743 = vrot.lane.b32.xlu0 %v439, 20
      %v744 = vpop.permute.xlu0 %743
      %745 = vrot.lane.b32.xlu0 %v438, 20
      %v746 = vpop.permute.xlu0 %745
      %747 = vrot.lane.b32.xlu0 %v442, 20
      %v748 = vpop.permute.xlu0 %747
      %749 = vrot.lane.b32.xlu0 %v441, 20
      %v750 = vpop.permute.xlu0 %749
      %751 = vrot.lane.b32.xlu0 %v445, 20
      %v752 = vpop.permute.xlu0 %751
      %753 = vrot.lane.b32.xlu0 %v444, 20
      %v754 = vpop.permute.xlu0 %753
      %755 = vrot.lane.b32.xlu0 %v448, 20
      %v756 = vpop.permute.xlu0 %755
      %757 = vrot.lane.b32.xlu0 %v447, 20
      %v758 = vpop.permute.xlu0 %757
      %759 = vrot.lane.b32.xlu0 %v451, 20
      %v760 = vpop.permute.xlu0 %759
      %761 = vrot.lane.b32.xlu0 %v450, 20
      %v762 = vpop.permute.xlu0 %761
      %763 = vrot.lane.b32.xlu0 %v454, 20
      %v764 = vpop.permute.xlu0 %763
      %765 = vrot.lane.b32.xlu0 %v453, 20
      %v766 = vpop.permute.xlu0 %765
      %767 = vrot.lane.b32.xlu0 %v714, 20
      %v768 = vpop.permute.xlu0 %767
      %769 = vrot.lane.b32.xlu0 %v713, 20
      %v770 = vpop.permute.xlu0 %769
      %801 = vrot.lane.b32.xlu0 %v229, 24
      %v802 = vpop.permute.xlu0 %801
      %803 = vrot.lane.b32.xlu0 %v230, 24
      %v804 = vpop.permute.xlu0 %803
      %805 = vrot.lane.b32.xlu0 %v231, 24
      %v806 = vpop.permute.xlu0 %805
      %807 = vrot.lane.b32.xlu0 %v232, 24
      %v808 = vpop.permute.xlu0 %807
      %809 = vrot.lane.b32.xlu0 %v233, 24
      %v810 = vpop.permute.xlu0 %809
      %811 = vrot.lane.b32.xlu0 %v234, 24
      %v812 = vpop.permute.xlu0 %811
      %813 = vrot.lane.b32.xlu0 %v235, 24
      %v814 = vpop.permute.xlu0 %813
      %815 = vrot.lane.b32.xlu0 %v236, 24
      %v816 = vpop.permute.xlu0 %815
      %817 = vrot.lane.b32.xlu0 %v237, 24
      %v818 = vpop.permute.xlu0 %817
      %819 = vrot.lane.b32.xlu0 %v238, 24
      %v820 = vpop.permute.xlu0 %819
      %821 = vrot.lane.b32.xlu0 %v239, 24
      %v822 = vpop.permute.xlu0 %821
      %823 = vrot.lane.b32.xlu0 %v240, 24
      %v824 = vpop.permute.xlu0 %823
      %825 = vrot.lane.b32.xlu0 %v241, 24
      %v826 = vpop.permute.xlu0 %825
      %827 = vrot.lane.b32.xlu0 %v242, 24
      %v828 = vpop.permute.xlu0 %827
      %829 = vrot.lane.b32.xlu0 %v243, 24
      %v830 = vpop.permute.xlu0 %829
      %831 = vrot.lane.b32.xlu0 %v244, 24
      %v832 = vpop.permute.xlu0 %831
      %833 = vrot.lane.b32.xlu0 %v245, 24
      %v834 = vpop.permute.xlu0 %833
      %835 = vrot.lane.b32.xlu0 %v246, 24
      %v836 = vpop.permute.xlu0 %835
      %837 = vrot.lane.b32.xlu0 %v247, 24
      %v838 = vpop.permute.xlu0 %837
      %839 = vrot.lane.b32.xlu0 %v248, 24
      %v840 = vpop.permute.xlu0 %839
      %841 = vrot.lane.b32.xlu0 %v249, 24
      %v842 = vpop.permute.xlu0 %841
      %843 = vrot.lane.b32.xlu0 %v250, 24
      %v844 = vpop.permute.xlu0 %843
      %845 = vrot.lane.b32.xlu0 %v251, 24
      %v846 = vpop.permute.xlu0 %845
      %847 = vrot.lane.b32.xlu0 %v252, 24
      %v848 = vpop.permute.xlu0 %847
      %849 = vrot.lane.b32.xlu0 %v253, 24
      %v850 = vpop.permute.xlu0 %849
      %851 = vrot.lane.b32.xlu0 %v254, 24
      %v852 = vpop.permute.xlu0 %851
      %853 = vrot.lane.b32.xlu0 %v255, 24
      %v854 = vpop.permute.xlu0 %853
      %855 = vrot.lane.b32.xlu0 %v256, 24
      %v856 = vpop.permute.xlu0 %855
      %v885 = vrot.slane %v255, 1
      %v886 = vrot.slane %v256, 1
      %v887 = vsel %vm285, %v885, %v886
      %888 = vrot.lane.b32.xlu0 %v294, 28
      %v889 = vpop.permute.xlu0 %888
      %890 = vrot.lane.b32.xlu0 %v293, 28
      %v891 = vpop.permute.xlu0 %890
      %892 = vrot.lane.b32.xlu0 %v297, 28
      %v893 = vpop.permute.xlu0 %892
      %894 = vrot.lane.b32.xlu0 %v296, 28
      %v895 = vpop.permute.xlu0 %894
      %896 = vrot.lane.b32.xlu0 %v300, 28
      %v897 = vpop.permute.xlu0 %896
      %898 = vrot.lane.b32.xlu0 %v299, 28
      %v899 = vpop.permute.xlu0 %898
      %900 = vrot.lane.b32.xlu0 %v303, 28
      %v901 = vpop.permute.xlu0 %900
      %902 = vrot.lane.b32.xlu0 %v302, 28
      %v903 = vpop.permute.xlu0 %902
      %904 = vrot.lane.b32.xlu0 %v306, 28
      %v905 = vpop.permute.xlu0 %904
      %906 = vrot.lane.b32.xlu0 %v305, 28
      %v907 = vpop.permute.xlu0 %906
      %908 = vrot.lane.b32.xlu0 %v309, 28
      %v909 = vpop.permute.xlu0 %908
      %910 = vrot.lane.b32.xlu0 %v308, 28
      %v911 = vpop.permute.xlu0 %910
      %912 = vrot.lane.b32.xlu0 %v312, 28
      %v913 = vpop.permute.xlu0 %912
      %914 = vrot.lane.b32.xlu0 %v311, 28
      %v915 = vpop.permute.xlu0 %914
      %916 = vrot.lane.b32.xlu0 %v315, 28
      %v917 = vpop.permute.xlu0 %916
      %918 = vrot.lane.b32.xlu0 %v314, 28
      %v919 = vpop.permute.xlu0 %918
      %920 = vrot.lane.b32.xlu0 %v318, 28
      %v921 = vpop.permute.xlu0 %920
      %922 = vrot.lane.b32.xlu0 %v317, 28
      %v923 = vpop.permute.xlu0 %922
      %924 = vrot.lane.b32.xlu0 %v321, 28
      %v925 = vpop.permute.xlu0 %924
      %926 = vrot.lane.b32.xlu0 %v320, 28
      %v927 = vpop.permute.xlu0 %926
      %928 = vrot.lane.b32.xlu0 %v324, 28
      %v929 = vpop.permute.xlu0 %928
      %930 = vrot.lane.b32.xlu0 %v323, 28
      %v931 = vpop.permute.xlu0 %930
      %932 = vrot.lane.b32.xlu0 %v327, 28
      %v933 = vpop.permute.xlu0 %932
      %934 = vrot.lane.b32.xlu0 %v326, 28
      %v935 = vpop.permute.xlu0 %934
      %936 = vrot.lane.b32.xlu0 %v627, 28
      %v937 = vpop.permute.xlu0 %936
      %938 = vrot.lane.b32.xlu0 %v626, 28
      %v939 = vpop.permute.xlu0 %938
      %940 = vrot.lane.b32.xlu0 %v887, 28
      %v941 = vpop.permute.xlu0 %940
      %942 = vrot.lane.b32.xlu0 %v886, 28
      %v943 = vpop.permute.xlu0 %942
      %v972 = vrot.slane %v255, 2
      %v973 = vrot.slane %v256, 2
      %v974 = vsel %vm412, %v972, %v973
      %975 = vrot.lane.b32.xlu0 %v421, 32
      %v976 = vpop.permute.xlu0 %975
      %977 = vrot.lane.b32.xlu0 %v420, 32
      %v978 = vpop.permute.xlu0 %977
      %979 = vrot.lane.b32.xlu0 %v424, 32
      %v980 = vpop.permute.xlu0 %979
      %981 = vrot.lane.b32.xlu0 %v423, 32
      %v982 = vpop.permute.xlu0 %981
      %983 = vrot.lane.b32.xlu0 %v427, 32
      %v984 = vpop.permute.xlu0 %983
      %985 = vrot.lane.b32.xlu0 %v426, 32
      %v986 = vpop.permute.xlu0 %985
      %987 = vrot.lane.b32.xlu0 %v430, 32
      %v988 = vpop.permute.xlu0 %987
      %989 = vrot.lane.b32.xlu0 %v429, 32
      %v990 = vpop.permute.xlu0 %989
      %991 = vrot.lane.b32.xlu0 %v433, 32
      %v992 = vpop.permute.xlu0 %991
      %993 = vrot.lane.b32.xlu0 %v432, 32
      %v994 = vpop.permute.xlu0 %993
      %995 = vrot.lane.b32.xlu0 %v436, 32
      %v996 = vpop.permute.xlu0 %995
      %997 = vrot.lane.b32.xlu0 %v435, 32
      %v998 = vpop.permute.xlu0 %997
      %999 = vrot.lane.b32.xlu0 %v439, 32
      %v1000 = vpop.permute.xlu0 %999
      %1001 = vrot.lane.b32.xlu0 %v438, 32
      %v1002 = vpop.permute.xlu0 %1001
      %1003 = vrot.lane.b32.xlu0 %v442, 32
      %v1004 = vpop.permute.xlu0 %1003
      %1005 = vrot.lane.b32.xlu0 %v441, 32
      %v1006 = vpop.permute.xlu0 %1005
      %1007 = vrot.lane.b32.xlu0 %v445, 32
      %v1008 = vpop.permute.xlu0 %1007
      %1009 = vrot.lane.b32.xlu0 %v444, 32
      %v1010 = vpop.permute.xlu0 %1009
      %1011 = vrot.lane.b32.xlu0 %v448, 32
      %v1012 = vpop.permute.xlu0 %1011
      %1013 = vrot.lane.b32.xlu0 %v447, 32
      %v1014 = vpop.permute.xlu0 %1013
      %1015 = vrot.lane.b32.xlu0 %v451, 32
      %v1016 = vpop.permute.xlu0 %1015
      %1017 = vrot.lane.b32.xlu0 %v450, 32
      %v1018 = vpop.permute.xlu0 %1017
      %1019 = vrot.lane.b32.xlu0 %v454, 32
      %v1020 = vpop.permute.xlu0 %1019
      %1021 = vrot.lane.b32.xlu0 %v453, 32
      %v1022 = vpop.permute.xlu0 %1021
      %1023 = vrot.lane.b32.xlu0 %v714, 32
      %v1024 = vpop.permute.xlu0 %1023
      %1025 = vrot.lane.b32.xlu0 %v713, 32
      %v1026 = vpop.permute.xlu0 %1025
      %1027 = vrot.lane.b32.xlu0 %v974, 32
      %v1028 = vpop.permute.xlu0 %1027
      %1029 = vrot.lane.b32.xlu0 %v973, 32
      %v1030 = vpop.permute.xlu0 %1029
      %vm1059 = vcmask 31744
      %v1060 = vsel %vm1059, %v225, %v329
      %v1061 = vsel %vm1059, %v226, %v331
      %v1062 = vsel %vm1059, %v227, %v333
      %v1063 = vsel %vm1059, %v228, %v335
      %v1064 = vsel %vm1059, %v229, %v337
      %v1065 = vsel %vm1059, %v230, %v339
      %v1066 = vsel %vm1059, %v231, %v341
      %v1067 = vsel %vm1059, %v232, %v343
      %v1068 = vsel %vm1059, %v233, %v345
      %v1069 = vsel %vm1059, %v234, %v347
      %v1070 = vsel %vm1059, %v235, %v349
      %v1071 = vsel %vm1059, %v236, %v351
      %v1072 = vsel %vm1059, %v237, %v353
      %v1073 = vsel %vm1059, %v238, %v355
      %v1074 = vsel %vm1059, %v239, %v357
      %v1075 = vsel %vm1059, %v240, %v359
      %v1076 = vsel %vm1059, %v241, %v361
      %v1077 = vsel %vm1059, %v242, %v363
      %v1078 = vsel %vm1059, %v243, %v365
      %v1079 = vsel %vm1059, %v244, %v367
      %v1080 = vsel %vm1059, %v245, %v369
      %v1081 = vsel %vm1059, %v246, %v371
      %v1082 = vsel %vm1059, %v247, %v373
      %v1083 = vsel %vm1059, %v248, %v375
      %v1084 = vsel %vm1059, %v249, %v377
      %v1085 = vsel %vm1059, %v250, %v379
      %v1086 = vsel %vm1059, %v251, %v381
      %v1087 = vsel %vm1059, %v252, %v383
      %vm1088 = vcmask 64512
      %v1089 = vsel %vm1088, %v1060, %v456
      %v1090 = vsel %vm1088, %v1061, %v458
      %v1091 = vsel %vm1088, %v1062, %v460
      %v1092 = vsel %vm1088, %v1063, %v462
      %v1093 = vsel %vm1088, %v1064, %v464
      %v1094 = vsel %vm1088, %v1065, %v466
      %v1095 = vsel %vm1088, %v1066, %v468
      %v1096 = vsel %vm1088, %v1067, %v470
      %v1097 = vsel %vm1088, %v1068, %v472
      %v1098 = vsel %vm1088, %v1069, %v474
      %v1099 = vsel %vm1088, %v1070, %v476
      %v1100 = vsel %vm1088, %v1071, %v478
      %v1101 = vsel %vm1088, %v1072, %v480
      %v1102 = vsel %vm1088, %v1073, %v482
      %v1103 = vsel %vm1088, %v1074, %v484
      %v1104 = vsel %vm1088, %v1075, %v486
      %v1105 = vsel %vm1088, %v1076, %v488
      %v1106 = vsel %vm1088, %v1077, %v490
      %v1107 = vsel %vm1088, %v1078, %v492
      %v1108 = vsel %vm1088, %v1079, %v494
      %v1109 = vsel %vm1088, %v1080, %v496
      %v1110 = vsel %vm1088, %v1081, %v498
      %v1111 = vsel %vm1088, %v1082, %v500
      %v1112 = vsel %vm1088, %v1083, %v502
      %v1113 = vsel %vm1088, %v1084, %v504
      %v1114 = vsel %vm1088, %v1085, %v506
      %v1115 = vsel %vm1088, %v1086, %v508
      %v1116 = vsel %vm1088, %v1087, %v510
      %vm1117 = vcmask 97280
      %v1118 = vsel %vm1117, %v1089, %v542
      %v1119 = vsel %vm1117, %v1090, %v544
      %v1120 = vsel %vm1117, %v1091, %v546
      %v1121 = vsel %vm1117, %v1092, %v548
      %v1122 = vsel %vm1117, %v1093, %v550
      %v1123 = vsel %vm1117, %v1094, %v552
      %v1124 = vsel %vm1117, %v1095, %v554
      %v1125 = vsel %vm1117, %v1096, %v556
      %v1126 = vsel %vm1117, %v1097, %v558
      %v1127 = vsel %vm1117, %v1098, %v560
      %v1128 = vsel %vm1117, %v1099, %v562
      %v1129 = vsel %vm1117, %v1100, %v564
      %v1130 = vsel %vm1117, %v1101, %v566
      %v1131 = vsel %vm1117, %v1102, %v568
      %v1132 = vsel %vm1117, %v1103, %v570
      %v1133 = vsel %vm1117, %v1104, %v572
      %v1134 = vsel %vm1117, %v1105, %v574
      %v1135 = vsel %vm1117, %v1106, %v576
      %v1136 = vsel %vm1117, %v1107, %v578
      %v1137 = vsel %vm1117, %v1108, %v580
      %v1138 = vsel %vm1117, %v1109, %v582
      %v1139 = vsel %vm1117, %v1110, %v584
      %v1140 = vsel %vm1117, %v1111, %v586
      %v1141 = vsel %vm1117, %v1112, %v588
      %v1142 = vsel %vm1117, %v1113, %v590
      %v1143 = vsel %vm1117, %v1114, %v592
      %v1144 = vsel %vm1117, %v1115, %v594
      %v1145 = vsel %vm1117, %v1116, %v596
      %vm1146 = vcmask 130048
      %v1147 = vsel %vm1146, %v1118, %v629
      %v1148 = vsel %vm1146, %v1119, %v631
      %v1149 = vsel %vm1146, %v1120, %v633
      %v1150 = vsel %vm1146, %v1121, %v635
      %v1151 = vsel %vm1146, %v1122, %v637
      %v1152 = vsel %vm1146, %v1123, %v639
      %v1153 = vsel %vm1146, %v1124, %v641
      %v1154 = vsel %vm1146, %v1125, %v643
      %v1155 = vsel %vm1146, %v1126, %v645
      %v1156 = vsel %vm1146, %v1127, %v647
      %v1157 = vsel %vm1146, %v1128, %v649
      %v1158 = vsel %vm1146, %v1129, %v651
      %v1159 = vsel %vm1146, %v1130, %v653
      %v1160 = vsel %vm1146, %v1131, %v655
      %v1161 = vsel %vm1146, %v1132, %v657
      %v1162 = vsel %vm1146, %v1133, %v659
      %v1163 = vsel %vm1146, %v1134, %v661
      %v1164 = vsel %vm1146, %v1135, %v663
      %v1165 = vsel %vm1146, %v1136, %v665
      %v1166 = vsel %vm1146, %v1137, %v667
      %v1167 = vsel %vm1146, %v1138, %v669
      %v1168 = vsel %vm1146, %v1139, %v671
      %v1169 = vsel %vm1146, %v1140, %v673
      %v1170 = vsel %vm1146, %v1141, %v675
      %v1171 = vsel %vm1146, %v1142, %v677
      %v1172 = vsel %vm1146, %v1143, %v679
      %v1173 = vsel %vm1146, %v1144, %v681
      %v1174 = vsel %vm1146, %v1145, %v683
      %vm1175 = vcmask 162816
      %v1176 = vsel %vm1175, %v1147, %v716
      %v1177 = vsel %vm1175, %v1148, %v718
      %v1178 = vsel %vm1175, %v1149, %v720
      %v1179 = vsel %vm1175, %v1150, %v722
      %v1180 = vsel %vm1175, %v1151, %v724
      %v1181 = vsel %vm1175, %v1152, %v726
      %v1182 = vsel %vm1175, %v1153, %v728
      %v1183 = vsel %vm1175, %v1154, %v730
      %v1184 = vsel %vm1175, %v1155, %v732
      %v1185 = vsel %vm1175, %v1156, %v734
      %v1186 = vsel %vm1175, %v1157, %v736
      %v1187 = vsel %vm1175, %v1158, %v738
      %v1188 = vsel %vm1175, %v1159, %v740
      %v1189 = vsel %vm1175, %v1160, %v742
      %v1190 = vsel %vm1175, %v1161, %v744
      %v1191 = vsel %vm1175, %v1162, %v746
      %v1192 = vsel %vm1175, %v1163, %v748
      %v1193 = vsel %vm1175, %v1164, %v750
      %v1194 = vsel %vm1175, %v1165, %v752
      %v1195 = vsel %vm1175, %v1166, %v754
      %v1196 = vsel %vm1175, %v1167, %v756
      %v1197 = vsel %vm1175, %v1168, %v758
      %v1198 = vsel %vm1175, %v1169, %v760
      %v1199 = vsel %vm1175, %v1170, %v762
      %v1200 = vsel %vm1175, %v1171, %v764
      %v1201 = vsel %vm1175, %v1172, %v766
      %v1202 = vsel %vm1175, %v1173, %v768
      %v1203 = vsel %vm1175, %v1174, %v770
      %vm1204 = vcmask 195584
      %v1205 = vsel %vm1204, %v1176, %v802
      %v1206 = vsel %vm1204, %v1177, %v804
      %v1207 = vsel %vm1204, %v1178, %v806
      %v1208 = vsel %vm1204, %v1179, %v808
      %v1209 = vsel %vm1204, %v1180, %v810
      %v1210 = vsel %vm1204, %v1181, %v812
      %v1211 = vsel %vm1204, %v1182, %v814
      %v1212 = vsel %vm1204, %v1183, %v816
      %v1213 = vsel %vm1204, %v1184, %v818
      %v1214 = vsel %vm1204, %v1185, %v820
      %v1215 = vsel %vm1204, %v1186, %v822
      %v1216 = vsel %vm1204, %v1187, %v824
      %v1217 = vsel %vm1204, %v1188, %v826
      %v1218 = vsel %vm1204, %v1189, %v828
      %v1219 = vsel %vm1204, %v1190, %v830
      %v1220 = vsel %vm1204, %v1191, %v832
      %v1221 = vsel %vm1204, %v1192, %v834
      %v1222 = vsel %vm1204, %v1193, %v836
      %v1223 = vsel %vm1204, %v1194, %v838
      %v1224 = vsel %vm1204, %v1195, %v840
      %v1225 = vsel %vm1204, %v1196, %v842
      %v1226 = vsel %vm1204, %v1197, %v844
      %v1227 = vsel %vm1204, %v1198, %v846
      %v1228 = vsel %vm1204, %v1199, %v848
      %v1229 = vsel %vm1204, %v1200, %v850
      %v1230 = vsel %vm1204, %v1201, %v852
      %v1231 = vsel %vm1204, %v1202, %v854
      %v1232 = vsel %vm1204, %v1203, %v856
      %vm1233 = vcmask 228352
      %v1234 = vsel %vm1233, %v1205, %v889
      %v1235 = vsel %vm1233, %v1206, %v891
      %v1236 = vsel %vm1233, %v1207, %v893
      %v1237 = vsel %vm1233, %v1208, %v895
      %v1238 = vsel %vm1233, %v1209, %v897
      %v1239 = vsel %vm1233, %v1210, %v899
      %v1240 = vsel %vm1233, %v1211, %v901
      %v1241 = vsel %vm1233, %v1212, %v903
      %v1242 = vsel %vm1233, %v1213, %v905
      %v1243 = vsel %vm1233, %v1214, %v907
      %v1244 = vsel %vm1233, %v1215, %v909
      %v1245 = vsel %vm1233, %v1216, %v911
      %v1246 = vsel %vm1233, %v1217, %v913
      %v1247 = vsel %vm1233, %v1218, %v915
      %v1248 = vsel %vm1233, %v1219, %v917
      %v1249 = vsel %vm1233, %v1220, %v919
      %v1250 = vsel %vm1233, %v1221, %v921
      %v1251 = vsel %vm1233, %v1222, %v923
      %v1252 = vsel %vm1233, %v1223, %v925
      %v1253 = vsel %vm1233, %v1224, %v927
      %v1254 = vsel %vm1233, %v1225, %v929
      %v1255 = vsel %vm1233, %v1226, %v931
      %v1256 = vsel %vm1233, %v1227, %v933
      %v1257 = vsel %vm1233, %v1228, %v935
      %v1258 = vsel %vm1233, %v1229, %v937
      %v1259 = vsel %vm1233, %v1230, %v939
      %v1260 = vsel %vm1233, %v1231, %v941
      %v1261 = vsel %vm1233, %v1232, %v943
      %vm1262 = vcmask 261120
      %v1263 = vsel %vm1262, %v1234, %v976
      %v1264 = vsel %vm1262, %v1235, %v978
      %v1265 = vsel %vm1262, %v1236, %v980
      %v1266 = vsel %vm1262, %v1237, %v982
      %v1267 = vsel %vm1262, %v1238, %v984
      %v1268 = vsel %vm1262, %v1239, %v986
      %v1269 = vsel %vm1262, %v1240, %v988
      %v1270 = vsel %vm1262, %v1241, %v990
      %v1271 = vsel %vm1262, %v1242, %v992
      %v1272 = vsel %vm1262, %v1243, %v994
      %v1273 = vsel %vm1262, %v1244, %v996
      %v1274 = vsel %vm1262, %v1245, %v998
      %v1275 = vsel %vm1262, %v1246, %v1000
      %v1276 = vsel %vm1262, %v1247, %v1002
      %v1277 = vsel %vm1262, %v1248, %v1004
      %v1278 = vsel %vm1262, %v1249, %v1006
      %v1279 = vsel %vm1262, %v1250, %v1008
      %v1280 = vsel %vm1262, %v1251, %v1010
      %v1281 = vsel %vm1262, %v1252, %v1012
      %v1282 = vsel %vm1262, %v1253, %v1014
      %v1283 = vsel %vm1262, %v1254, %v1016
      %v1284 = vsel %vm1262, %v1255, %v1018
      %v1285 = vsel %vm1262, %v1256, %v1020
      %v1286 = vsel %vm1262, %v1257, %v1022
      %v1287 = vsel %vm1262, %v1258, %v1024
      %v1288 = vsel %vm1262, %v1259, %v1026
      %v1289 = vsel %vm1262, %v1260, %v1028
      %v1290 = vsel %vm1262, %v1261, %v1030
      %v1319 = vcombine.high %v1263, %v1263
      %v1321 = vunpack.c.l.s4 1983009808
      %v1322 = vunpack.c.0.s8 %v1321
      %v1323 = vlaneseq
      %v1324 = vshrl.u32 %v1323, 7
      %v1325 = vsub.s32 %v1322, %v1324
      %v1326 = vrot.slane %v1263, %v1325
      %v1328 = vunpack.c.l.s4 1983009808
      %v1329 = vunpack.c.0.s8 %v1328
      %v1330 = vlaneseq
      %v1331 = vshrl.u32 %v1330, 7
      %v1332 = vsub.s32 %v1329, %v1331
      %v1333 = vrot.slane %v1319, %v1332
      %v1334 = vcombine.high %v1326, %v1326
      %v1335 = vcombine.high %v1333, %v1333
      %v1336 = vcombine.high %v1264, %v1264
      %v1338 = vunpack.c.l.s4 1983009808
      %v1339 = vunpack.c.0.s8 %v1338
      %v1340 = vlaneseq
      %v1341 = vshrl.u32 %v1340, 7
      %v1342 = vsub.s32 %v1339, %v1341
      %v1343 = vrot.slane %v1264, %v1342
      %v1345 = vunpack.c.l.s4 1983009808
      %v1346 = vunpack.c.0.s8 %v1345
      %v1347 = vlaneseq
      %v1348 = vshrl.u32 %v1347, 7
      %v1349 = vsub.s32 %v1346, %v1348
      %v1350 = vrot.slane %v1336, %v1349
      %v1351 = vcombine.high %v1343, %v1343
      %v1352 = vcombine.high %v1265, %v1265
      %v1354 = vunpack.c.l.s4 1983009808
      %v1355 = vunpack.c.0.s8 %v1354
      %v1356 = vlaneseq
      %v1357 = vshrl.u32 %v1356, 7
      %v1358 = vsub.s32 %v1355, %v1357
      %v1359 = vrot.slane %v1265, %v1358
      %v1361 = vunpack.c.l.s4 1983009808
      %v1362 = vunpack.c.0.s8 %v1361
      %v1363 = vlaneseq
      %v1364 = vshrl.u32 %v1363, 7
      %v1365 = vsub.s32 %v1362, %v1364
      %v1366 = vrot.slane %v1352, %v1365
      %v1367 = vcombine.high %v1359, %v1359
      %v1368 = vcombine.high %v1366, %v1366
      %v1369 = vcombine.high %v1266, %v1266
      %v1371 = vunpack.c.l.s4 1983009808
      %v1372 = vunpack.c.0.s8 %v1371
      %v1373 = vlaneseq
      %v1374 = vshrl.u32 %v1373, 7
      %v1375 = vsub.s32 %v1372, %v1374
      %v1376 = vrot.slane %v1266, %v1375
      %v1378 = vunpack.c.l.s4 1983009808
      %v1379 = vunpack.c.0.s8 %v1378
      %v1380 = vlaneseq
      %v1381 = vshrl.u32 %v1380, 7
      %v1382 = vsub.s32 %v1379, %v1381
      %v1383 = vrot.slane %v1369, %v1382
      %v1384 = vcombine.high %v1376, %v1376
      %v1385 = vcombine.high %v1267, %v1267
      %v1387 = vunpack.c.l.s4 1983009808
      %v1388 = vunpack.c.0.s8 %v1387
      %v1389 = vlaneseq
      %v1390 = vshrl.u32 %v1389, 7
      %v1391 = vsub.s32 %v1388, %v1390
      %v1392 = vrot.slane %v1267, %v1391
      %v1394 = vunpack.c.l.s4 1983009808
      %v1395 = vunpack.c.0.s8 %v1394
      %v1396 = vlaneseq
      %v1397 = vshrl.u32 %v1396, 7
      %v1398 = vsub.s32 %v1395, %v1397
      %v1399 = vrot.slane %v1385, %v1398
      %v1400 = vcombine.high %v1392, %v1392
      %v1401 = vcombine.high %v1399, %v1399
      %v1402 = vcombine.high %v1268, %v1268
      %v1404 = vunpack.c.l.s4 1983009808
      %v1405 = vunpack.c.0.s8 %v1404
      %v1406 = vlaneseq
      %v1407 = vshrl.u32 %v1406, 7
      %v1408 = vsub.s32 %v1405, %v1407
      %v1409 = vrot.slane %v1268, %v1408
      %v1411 = vunpack.c.l.s4 1983009808
      %v1412 = vunpack.c.0.s8 %v1411
      %v1413 = vlaneseq
      %v1414 = vshrl.u32 %v1413, 7
      %v1415 = vsub.s32 %v1412, %v1414
      %v1416 = vrot.slane %v1402, %v1415
      %v1417 = vcombine.high %v1409, %v1409
      %v1418 = vcombine.high %v1269, %v1269
      %v1420 = vunpack.c.l.s4 1983009808
      %v1421 = vunpack.c.0.s8 %v1420
      %v1422 = vlaneseq
      %v1423 = vshrl.u32 %v1422, 7
      %v1424 = vsub.s32 %v1421, %v1423
      %v1425 = vrot.slane %v1269, %v1424
      %v1427 = vunpack.c.l.s4 1983009808
      %v1428 = vunpack.c.0.s8 %v1427
      %v1429 = vlaneseq
      %v1430 = vshrl.u32 %v1429, 7
      %v1431 = vsub.s32 %v1428, %v1430
      %v1432 = vrot.slane %v1418, %v1431
      %v1433 = vcombine.high %v1425, %v1425
      %v1434 = vcombine.high %v1432, %v1432
      %v1435 = vcombine.high %v1270, %v1270
      %v1437 = vunpack.c.l.s4 1983009808
      %v1438 = vunpack.c.0.s8 %v1437
      %v1439 = vlaneseq
      %v1440 = vshrl.u32 %v1439, 7
      %v1441 = vsub.s32 %v1438, %v1440
      %v1442 = vrot.slane %v1270, %v1441
      %v1444 = vunpack.c.l.s4 1983009808
      %v1445 = vunpack.c.0.s8 %v1444
      %v1446 = vlaneseq
      %v1447 = vshrl.u32 %v1446, 7
      %v1448 = vsub.s32 %v1445, %v1447
      %v1449 = vrot.slane %v1435, %v1448
      %v1450 = vcombine.high %v1442, %v1442
      %v1451 = vcombine.high %v1271, %v1271
      %v1453 = vunpack.c.l.s4 1983009808
      %v1454 = vunpack.c.0.s8 %v1453
      %v1455 = vlaneseq
      %v1456 = vshrl.u32 %v1455, 7
      %v1457 = vsub.s32 %v1454, %v1456
      %v1458 = vrot.slane %v1271, %v1457
      %v1460 = vunpack.c.l.s4 1983009808
      %v1461 = vunpack.c.0.s8 %v1460
      %v1462 = vlaneseq
      %v1463 = vshrl.u32 %v1462, 7
      %v1464 = vsub.s32 %v1461, %v1463
      %v1465 = vrot.slane %v1451, %v1464
      %v1466 = vcombine.high %v1458, %v1458
      %v1467 = vcombine.high %v1465, %v1465
      %v1468 = vcombine.high %v1272, %v1272
      %v1470 = vunpack.c.l.s4 1983009808
      %v1471 = vunpack.c.0.s8 %v1470
      %v1472 = vlaneseq
      %v1473 = vshrl.u32 %v1472, 7
      %v1474 = vsub.s32 %v1471, %v1473
      %v1475 = vrot.slane %v1272, %v1474
      %v1477 = vunpack.c.l.s4 1983009808
      %v1478 = vunpack.c.0.s8 %v1477
      %v1479 = vlaneseq
      %v1480 = vshrl.u32 %v1479, 7
      %v1481 = vsub.s32 %v1478, %v1480
      %v1482 = vrot.slane %v1468, %v1481
      %v1483 = vcombine.high %v1475, %v1475
      %v1484 = vcombine.high %v1273, %v1273
      %v1486 = vunpack.c.l.s4 1983009808
      %v1487 = vunpack.c.0.s8 %v1486
      %v1488 = vlaneseq
      %v1489 = vshrl.u32 %v1488, 7
      %v1490 = vsub.s32 %v1487, %v1489
      %v1491 = vrot.slane %v1273, %v1490
      %v1493 = vunpack.c.l.s4 1983009808
      %v1494 = vunpack.c.0.s8 %v1493
      %v1495 = vlaneseq
      %v1496 = vshrl.u32 %v1495, 7
      %v1497 = vsub.s32 %v1494, %v1496
      %v1498 = vrot.slane %v1484, %v1497
      %v1499 = vcombine.high %v1491, %v1491
      %v1500 = vcombine.high %v1498, %v1498
      %v1501 = vcombine.high %v1274, %v1274
      %v1503 = vunpack.c.l.s4 1983009808
      %v1504 = vunpack.c.0.s8 %v1503
      %v1505 = vlaneseq
      %v1506 = vshrl.u32 %v1505, 7
      %v1507 = vsub.s32 %v1504, %v1506
      %v1508 = vrot.slane %v1274, %v1507
      %v1510 = vunpack.c.l.s4 1983009808
      %v1511 = vunpack.c.0.s8 %v1510
      %v1512 = vlaneseq
      %v1513 = vshrl.u32 %v1512, 7
      %v1514 = vsub.s32 %v1511, %v1513
      %v1515 = vrot.slane %v1501, %v1514
      %v1516 = vcombine.high %v1508, %v1508
      %v1517 = vcombine.high %v1275, %v1275
      %v1519 = vunpack.c.l.s4 1983009808
      %v1520 = vunpack.c.0.s8 %v1519
      %v1521 = vlaneseq
      %v1522 = vshrl.u32 %v1521, 7
      %v1523 = vsub.s32 %v1520, %v1522
      %v1524 = vrot.slane %v1275, %v1523
      %v1526 = vunpack.c.l.s4 1983009808
      %v1527 = vunpack.c.0.s8 %v1526
      %v1528 = vlaneseq
      %v1529 = vshrl.u32 %v1528, 7
      %v1530 = vsub.s32 %v1527, %v1529
      %v1531 = vrot.slane %v1517, %v1530
      %v1532 = vcombine.high %v1524, %v1524
      %v1533 = vcombine.high %v1531, %v1531
      %v1534 = vcombine.high %v1276, %v1276
      %v1536 = vunpack.c.l.s4 1983009808
      %v1537 = vunpack.c.0.s8 %v1536
      %v1538 = vlaneseq
      %v1539 = vshrl.u32 %v1538, 7
      %v1540 = vsub.s32 %v1537, %v1539
      %v1541 = vrot.slane %v1276, %v1540
      %v1543 = vunpack.c.l.s4 1983009808
      %v1544 = vunpack.c.0.s8 %v1543
      %v1545 = vlaneseq
      %v1546 = vshrl.u32 %v1545, 7
      %v1547 = vsub.s32 %v1544, %v1546
      %v1548 = vrot.slane %v1534, %v1547
      %v1549 = vcombine.high %v1541, %v1541
      %v1550 = vcombine.high %v1277, %v1277
      %v1552 = vunpack.c.l.s4 1983009808
      %v1553 = vunpack.c.0.s8 %v1552
      %v1554 = vlaneseq
      %v1555 = vshrl.u32 %v1554, 7
      %v1556 = vsub.s32 %v1553, %v1555
      %v1557 = vrot.slane %v1277, %v1556
      %v1559 = vunpack.c.l.s4 1983009808
      %v1560 = vunpack.c.0.s8 %v1559
      %v1561 = vlaneseq
      %v1562 = vshrl.u32 %v1561, 7
      %v1563 = vsub.s32 %v1560, %v1562
      %v1564 = vrot.slane %v1550, %v1563
      %v1565 = vcombine.high %v1557, %v1557
      %v1566 = vcombine.high %v1564, %v1564
      %v1567 = vcombine.high %v1278, %v1278
      %v1569 = vunpack.c.l.s4 1983009808
      %v1570 = vunpack.c.0.s8 %v1569
      %v1571 = vlaneseq
      %v1572 = vshrl.u32 %v1571, 7
      %v1573 = vsub.s32 %v1570, %v1572
      %v1574 = vrot.slane %v1278, %v1573
      %v1576 = vunpack.c.l.s4 1983009808
      %v1577 = vunpack.c.0.s8 %v1576
      %v1578 = vlaneseq
      %v1579 = vshrl.u32 %v1578, 7
      %v1580 = vsub.s32 %v1577, %v1579
      %v1581 = vrot.slane %v1567, %v1580
      %v1582 = vcombine.high %v1574, %v1574
      %v1583 = vcombine.high %v1279, %v1279
      %v1585 = vunpack.c.l.s4 1983009808
      %v1586 = vunpack.c.0.s8 %v1585
      %v1587 = vlaneseq
      %v1588 = vshrl.u32 %v1587, 7
      %v1589 = vsub.s32 %v1586, %v1588
      %v1590 = vrot.slane %v1279, %v1589
      %v1592 = vunpack.c.l.s4 1983009808
      %v1593 = vunpack.c.0.s8 %v1592
      %v1594 = vlaneseq
      %v1595 = vshrl.u32 %v1594, 7
      %v1596 = vsub.s32 %v1593, %v1595
      %v1597 = vrot.slane %v1583, %v1596
      %v1598 = vcombine.high %v1590, %v1590
      %v1599 = vcombine.high %v1597, %v1597
      %v1600 = vcombine.high %v1280, %v1280
      %v1602 = vunpack.c.l.s4 1983009808
      %v1603 = vunpack.c.0.s8 %v1602
      %v1604 = vlaneseq
      %v1605 = vshrl.u32 %v1604, 7
      %v1606 = vsub.s32 %v1603, %v1605
      %v1607 = vrot.slane %v1280, %v1606
      %v1609 = vunpack.c.l.s4 1983009808
      %v1610 = vunpack.c.0.s8 %v1609
      %v1611 = vlaneseq
      %v1612 = vshrl.u32 %v1611, 7
      %v1613 = vsub.s32 %v1610, %v1612
      %v1614 = vrot.slane %v1600, %v1613
      %v1615 = vcombine.high %v1607, %v1607
      %v1616 = vcombine.high %v1281, %v1281
      %v1618 = vunpack.c.l.s4 1983009808
      %v1619 = vunpack.c.0.s8 %v1618
      %v1620 = vlaneseq
      %v1621 = vshrl.u32 %v1620, 7
      %v1622 = vsub.s32 %v1619, %v1621
      %v1623 = vrot.slane %v1281, %v1622
      %v1625 = vunpack.c.l.s4 1983009808
      %v1626 = vunpack.c.0.s8 %v1625
      %v1627 = vlaneseq
      %v1628 = vshrl.u32 %v1627, 7
      %v1629 = vsub.s32 %v1626, %v1628
      %v1630 = vrot.slane %v1616, %v1629
      %v1631 = vcombine.high %v1623, %v1623
      %v1632 = vcombine.high %v1630, %v1630
      %v1633 = vcombine.high %v1282, %v1282
      %v1635 = vunpack.c.l.s4 1983009808
      %v1636 = vunpack.c.0.s8 %v1635
      %v1637 = vlaneseq
      %v1638 = vshrl.u32 %v1637, 7
      %v1639 = vsub.s32 %v1636, %v1638
      %v1640 = vrot.slane %v1282, %v1639
      %v1642 = vunpack.c.l.s4 1983009808
      %v1643 = vunpack.c.0.s8 %v1642
      %v1644 = vlaneseq
      %v1645 = vshrl.u32 %v1644, 7
      %v1646 = vsub.s32 %v1643, %v1645
      %v1647 = vrot.slane %v1633, %v1646
      %v1648 = vcombine.high %v1640, %v1640
      %v1649 = vcombine.high %v1283, %v1283
      %v1651 = vunpack.c.l.s4 1983009808
      %v1652 = vunpack.c.0.s8 %v1651
      %v1653 = vlaneseq
      %v1654 = vshrl.u32 %v1653, 7
      %v1655 = vsub.s32 %v1652, %v1654
      %v1656 = vrot.slane %v1283, %v1655
      %v1658 = vunpack.c.l.s4 1983009808
      %v1659 = vunpack.c.0.s8 %v1658
      %v1660 = vlaneseq
      %v1661 = vshrl.u32 %v1660, 7
      %v1662 = vsub.s32 %v1659, %v1661
      %v1663 = vrot.slane %v1649, %v1662
      %v1664 = vcombine.high %v1656, %v1656
      %v1665 = vcombine.high %v1663, %v1663
      %v1666 = vcombine.high %v1284, %v1284
      %v1668 = vunpack.c.l.s4 1983009808
      %v1669 = vunpack.c.0.s8 %v1668
      %v1670 = vlaneseq
      %v1671 = vshrl.u32 %v1670, 7
      %v1672 = vsub.s32 %v1669, %v1671
      %v1673 = vrot.slane %v1284, %v1672
      %v1675 = vunpack.c.l.s4 1983009808
      %v1676 = vunpack.c.0.s8 %v1675
      %v1677 = vlaneseq
      %v1678 = vshrl.u32 %v1677, 7
      %v1679 = vsub.s32 %v1676, %v1678
      %v1680 = vrot.slane %v1666, %v1679
      %v1681 = vcombine.high %v1673, %v1673
      %v1682 = vcombine.high %v1285, %v1285
      %v1684 = vunpack.c.l.s4 1983009808
      %v1685 = vunpack.c.0.s8 %v1684
      %v1686 = vlaneseq
      %v1687 = vshrl.u32 %v1686, 7
      %v1688 = vsub.s32 %v1685, %v1687
      %v1689 = vrot.slane %v1285, %v1688
      %v1691 = vunpack.c.l.s4 1983009808
      %v1692 = vunpack.c.0.s8 %v1691
      %v1693 = vlaneseq
      %v1694 = vshrl.u32 %v1693, 7
      %v1695 = vsub.s32 %v1692, %v1694
      %v1696 = vrot.slane %v1682, %v1695
      %v1697 = vcombine.high %v1689, %v1689
      %v1698 = vcombine.high %v1696, %v1696
      %v1699 = vcombine.high %v1286, %v1286
      %v1701 = vunpack.c.l.s4 1983009808
      %v1702 = vunpack.c.0.s8 %v1701
      %v1703 = vlaneseq
      %v1704 = vshrl.u32 %v1703, 7
      %v1705 = vsub.s32 %v1702, %v1704
      %v1706 = vrot.slane %v1286, %v1705
      %v1708 = vunpack.c.l.s4 1983009808
      %v1709 = vunpack.c.0.s8 %v1708
      %v1710 = vlaneseq
      %v1711 = vshrl.u32 %v1710, 7
      %v1712 = vsub.s32 %v1709, %v1711
      %v1713 = vrot.slane %v1699, %v1712
      %v1714 = vcombine.high %v1706, %v1706
      %v1715 = vcombine.high %v1287, %v1287
      %v1717 = vunpack.c.l.s4 1983009808
      %v1718 = vunpack.c.0.s8 %v1717
      %v1719 = vlaneseq
      %v1720 = vshrl.u32 %v1719, 7
      %v1721 = vsub.s32 %v1718, %v1720
      %v1722 = vrot.slane %v1287, %v1721
      %v1724 = vunpack.c.l.s4 1983009808
      %v1725 = vunpack.c.0.s8 %v1724
      %v1726 = vlaneseq
      %v1727 = vshrl.u32 %v1726, 7
      %v1728 = vsub.s32 %v1725, %v1727
      %v1729 = vrot.slane %v1715, %v1728
      %v1730 = vcombine.high %v1722, %v1722
      %v1731 = vcombine.high %v1729, %v1729
      %v1732 = vcombine.high %v1288, %v1288
      %v1734 = vunpack.c.l.s4 1983009808
      %v1735 = vunpack.c.0.s8 %v1734
      %v1736 = vlaneseq
      %v1737 = vshrl.u32 %v1736, 7
      %v1738 = vsub.s32 %v1735, %v1737
      %v1739 = vrot.slane %v1288, %v1738
      %v1741 = vunpack.c.l.s4 1983009808
      %v1742 = vunpack.c.0.s8 %v1741
      %v1743 = vlaneseq
      %v1744 = vshrl.u32 %v1743, 7
      %v1745 = vsub.s32 %v1742, %v1744
      %v1746 = vrot.slane %v1732, %v1745
      %v1747 = vcombine.high %v1739, %v1739
      %v1748 = vcombine.high %v1289, %v1289
      %v1750 = vunpack.c.l.s4 1983009808
      %v1751 = vunpack.c.0.s8 %v1750
      %v1752 = vlaneseq
      %v1753 = vshrl.u32 %v1752, 7
      %v1754 = vsub.s32 %v1751, %v1753
      %v1755 = vrot.slane %v1289, %v1754
      %v1757 = vunpack.c.l.s4 1983009808
      %v1758 = vunpack.c.0.s8 %v1757
      %v1759 = vlaneseq
      %v1760 = vshrl.u32 %v1759, 7
      %v1761 = vsub.s32 %v1758, %v1760
      %v1762 = vrot.slane %v1748, %v1761
      %v1763 = vcombine.high %v1755, %v1755
      %v1764 = vcombine.high %v1762, %v1762
      %v1765 = vcombine.high %v1290, %v1290
      %v1767 = vunpack.c.l.s4 1983009808
      %v1768 = vunpack.c.0.s8 %v1767
      %v1769 = vlaneseq
      %v1770 = vshrl.u32 %v1769, 7
      %v1771 = vsub.s32 %v1768, %v1770
      %v1772 = vrot.slane %v1290, %v1771
      %v1774 = vunpack.c.l.s4 1983009808
      %v1775 = vunpack.c.0.s8 %v1774
      %v1776 = vlaneseq
      %v1777 = vshrl.u32 %v1776, 7
      %v1778 = vsub.s32 %v1775, %v1777
      %v1779 = vrot.slane %v1765, %v1778
      %v1780 = vcombine.high %v1772, %v1772
      %v1781 = vld [vmem:[%s1] sm:$0xff]
      %v1782 = vld [vmem:[%s1 + $0x8] sm:$0xff]
      %v1783 = vld [vmem:[%s1 + $0x10] sm:$0xff]
      %v1784 = vld [vmem:[%s1 + $0x18] sm:$0xff]
      %v1785 = vld [vmem:[%s1 + $0x20] sm:$0xf]
      %v1786 = vld [vmem:[%s2] sm:$0x1]
      %v1788 = vlaneseq
      %v1789 = vshrl.u32 %v1788, 7
      %v1790 = vsub.s32 0, %v1789
      %v1791 = vrot.slane %v1786, %v1790
      %v1793 = vcombine.low %v1326, %v1334
      %v1794 = vcombine.low %v1333, %v1335
      %v1796 = vunpack.c.l.s4 1983009808
      %v1797 = vunpack.c.0.s8 %v1796
      %v1798 = vlaneseq
      %v1799 = vshrl.u32 %v1798, 7
      %v1800 = vsub.s32 %v1797, %v1799
      %v1801 = vrot.slane %v1793, %v1800
      %v1803 = vunpack.c.l.s4 1983009808
      %v1804 = vunpack.c.0.s8 %v1803
      %v1805 = vlaneseq
      %v1806 = vshrl.u32 %v1805, 7
      %v1807 = vsub.s32 %v1804, %v1806
      %v1808 = vrot.slane %v1794, %v1807
      %v1809 = vcombine.low %v1801, %v1808
      %v1810 = vcombine.low %v1343, %v1351
      %v1811 = vcombine.low %v1350, %v1359
      %v1813 = vunpack.c.l.s4 1983009808
      %v1814 = vunpack.c.0.s8 %v1813
      %v1815 = vlaneseq
      %v1816 = vshrl.u32 %v1815, 7
      %v1817 = vsub.s32 %v1814, %v1816
      %v1818 = vrot.slane %v1810, %v1817
      %v1820 = vunpack.c.l.s4 1983009808
      %v1821 = vunpack.c.0.s8 %v1820
      %v1822 = vlaneseq
      %v1823 = vshrl.u32 %v1822, 7
      %v1824 = vsub.s32 %v1821, %v1823
      %v1825 = vrot.slane %v1811, %v1824
      %v1826 = vcombine.low %v1818, %v1825
      %v1827 = vcombine.low %v1367, %v1366
      %v1828 = vcombine.low %v1368, %v1376
      %v1830 = vunpack.c.l.s4 1983009808
      %v1831 = vunpack.c.0.s8 %v1830
      %v1832 = vlaneseq
      %v1833 = vshrl.u32 %v1832, 7
      %v1834 = vsub.s32 %v1831, %v1833
      %v1835 = vrot.slane %v1827, %v1834
      %v1837 = vunpack.c.l.s4 1983009808
      %v1838 = vunpack.c.0.s8 %v1837
      %v1839 = vlaneseq
      %v1840 = vshrl.u32 %v1839, 7
      %v1841 = vsub.s32 %v1838, %v1840
      %v1842 = vrot.slane %v1828, %v1841
      %v1843 = vcombine.low %v1835, %v1842
      %v1844 = vcombine.low %v1384, %v1383
      %v1845 = vcombine.low %v1392, %v1400
      %v1847 = vunpack.c.l.s4 1983009808
      %v1848 = vunpack.c.0.s8 %v1847
      %v1849 = vlaneseq
      %v1850 = vshrl.u32 %v1849, 7
      %v1851 = vsub.s32 %v1848, %v1850
      %v1852 = vrot.slane %v1844, %v1851
      %v1854 = vunpack.c.l.s4 1983009808
      %v1855 = vunpack.c.0.s8 %v1854
      %v1856 = vlaneseq
      %v1857 = vshrl.u32 %v1856, 7
      %v1858 = vsub.s32 %v1855, %v1857
      %v1859 = vrot.slane %v1845, %v1858
      %v1860 = vcombine.low %v1852, %v1859
      %v1861 = vcombine.low %v1399, %v1401
      %v1862 = vcombine.low %v1409, %v1417
      %v1864 = vunpack.c.l.s4 1983009808
      %v1865 = vunpack.c.0.s8 %v1864
      %v1866 = vlaneseq
      %v1867 = vshrl.u32 %v1866, 7
      %v1868 = vsub.s32 %v1865, %v1867
      %v1869 = vrot.slane %v1861, %v1868
      %v1871 = vunpack.c.l.s4 1983009808
      %v1872 = vunpack.c.0.s8 %v1871
      %v1873 = vlaneseq
      %v1874 = vshrl.u32 %v1873, 7
      %v1875 = vsub.s32 %v1872, %v1874
      %v1876 = vrot.slane %v1862, %v1875
      %v1877 = vcombine.low %v1869, %v1876
      %v1878 = vcombine.low %v1416, %v1425
      %v1879 = vcombine.low %v1433, %v1432
      %v1881 = vunpack.c.l.s4 1983009808
      %v1882 = vunpack.c.0.s8 %v1881
      %v1883 = vlaneseq
      %v1884 = vshrl.u32 %v1883, 7
      %v1885 = vsub.s32 %v1882, %v1884
      %v1886 = vrot.slane %v1878, %v1885
      %v1888 = vunpack.c.l.s4 1983009808
      %v1889 = vunpack.c.0.s8 %v1888
      %v1890 = vlaneseq
      %v1891 = vshrl.u32 %v1890, 7
      %v1892 = vsub.s32 %v1889, %v1891
      %v1893 = vrot.slane %v1879, %v1892
      %v1894 = vcombine.low %v1886, %v1893
      %v1895 = vcombine.low %v1434, %v1442
      %v1896 = vcombine.low %v1450, %v1449
      %v1898 = vunpack.c.l.s4 1983009808
      %v1899 = vunpack.c.0.s8 %v1898
      %v1900 = vlaneseq
      %v1901 = vshrl.u32 %v1900, 7
      %v1902 = vsub.s32 %v1899, %v1901
      %v1903 = vrot.slane %v1895, %v1902
      %v1905 = vunpack.c.l.s4 1983009808
      %v1906 = vunpack.c.0.s8 %v1905
      %v1907 = vlaneseq
      %v1908 = vshrl.u32 %v1907, 7
      %v1909 = vsub.s32 %v1906, %v1908
      %v1910 = vrot.slane %v1896, %v1909
      %v1911 = vcombine.low %v1903, %v1910
      %v1912 = vcombine.low %v1458, %v1466
      %v1913 = vcombine.low %v1465, %v1467
      %v1915 = vunpack.c.l.s4 1983009808
      %v1916 = vunpack.c.0.s8 %v1915
      %v1917 = vlaneseq
      %v1918 = vshrl.u32 %v1917, 7
      %v1919 = vsub.s32 %v1916, %v1918
      %v1920 = vrot.slane %v1912, %v1919
      %v1922 = vunpack.c.l.s4 1983009808
      %v1923 = vunpack.c.0.s8 %v1922
      %v1924 = vlaneseq
      %v1925 = vshrl.u32 %v1924, 7
      %v1926 = vsub.s32 %v1923, %v1925
      %v1927 = vrot.slane %v1913, %v1926
      %v1928 = vcombine.low %v1920, %v1927
      %v1929 = vcombine.low %v1475, %v1483
      %v1930 = vcombine.low %v1482, %v1491
      %v1932 = vunpack.c.l.s4 1983009808
      %v1933 = vunpack.c.0.s8 %v1932
      %v1934 = vlaneseq
      %v1935 = vshrl.u32 %v1934, 7
      %v1936 = vsub.s32 %v1933, %v1935
      %v1937 = vrot.slane %v1929, %v1936
      %v1939 = vunpack.c.l.s4 1983009808
      %v1940 = vunpack.c.0.s8 %v1939
      %v1941 = vlaneseq
      %v1942 = vshrl.u32 %v1941, 7
      %v1943 = vsub.s32 %v1940, %v1942
      %v1944 = vrot.slane %v1930, %v1943
      %v1945 = vcombine.low %v1937, %v1944
      %v1946 = vcombine.low %v1499, %v1498
      %v1947 = vcombine.low %v1500, %v1508
      %v1949 = vunpack.c.l.s4 1983009808
      %v1950 = vunpack.c.0.s8 %v1949
      %v1951 = vlaneseq
      %v1952 = vshrl.u32 %v1951, 7
      %v1953 = vsub.s32 %v1950, %v1952
      %v1954 = vrot.slane %v1946, %v1953
      %v1956 = vunpack.c.l.s4 1983009808
      %v1957 = vunpack.c.0.s8 %v1956
      %v1958 = vlaneseq
      %v1959 = vshrl.u32 %v1958, 7
      %v1960 = vsub.s32 %v1957, %v1959
      %v1961 = vrot.slane %v1947, %v1960
      %v1962 = vcombine.low %v1954, %v1961
      %v1963 = vcombine.low %v1516, %v1515
      %v1964 = vcombine.low %v1524, %v1532
      %v1966 = vunpack.c.l.s4 1983009808
      %v1967 = vunpack.c.0.s8 %v1966
      %v1968 = vlaneseq
      %v1969 = vshrl.u32 %v1968, 7
      %v1970 = vsub.s32 %v1967, %v1969
      %v1971 = vrot.slane %v1963, %v1970
      %v1973 = vunpack.c.l.s4 1983009808
      %v1974 = vunpack.c.0.s8 %v1973
      %v1975 = vlaneseq
      %v1976 = vshrl.u32 %v1975, 7
      %v1977 = vsub.s32 %v1974, %v1976
      %v1978 = vrot.slane %v1964, %v1977
      %v1979 = vcombine.low %v1971, %v1978
      %v1980 = vcombine.low %v1531, %v1533
      %v1981 = vcombine.low %v1541, %v1549
      %v1983 = vunpack.c.l.s4 1983009808
      %v1984 = vunpack.c.0.s8 %v1983
      %v1985 = vlaneseq
      %v1986 = vshrl.u32 %v1985, 7
      %v1987 = vsub.s32 %v1984, %v1986
      %v1988 = vrot.slane %v1980, %v1987
      %v1990 = vunpack.c.l.s4 1983009808
      %v1991 = vunpack.c.0.s8 %v1990
      %v1992 = vlaneseq
      %v1993 = vshrl.u32 %v1992, 7
      %v1994 = vsub.s32 %v1991, %v1993
      %v1995 = vrot.slane %v1981, %v1994
      %v1996 = vcombine.low %v1988, %v1995
      %v1997 = vcombine.low %v1548, %v1557
      %v1998 = vcombine.low %v1565, %v1564
      %v2000 = vunpack.c.l.s4 1983009808
      %v2001 = vunpack.c.0.s8 %v2000
      %v2002 = vlaneseq
      %v2003 = vshrl.u32 %v2002, 7
      %v2004 = vsub.s32 %v2001, %v2003
      %v2005 = vrot.slane %v1997, %v2004
      %v2007 = vunpack.c.l.s4 1983009808
      %v2008 = vunpack.c.0.s8 %v2007
      %v2009 = vlaneseq
      %v2010 = vshrl.u32 %v2009, 7
      %v2011 = vsub.s32 %v2008, %v2010
      %v2012 = vrot.slane %v1998, %v2011
      %v2013 = vcombine.low %v2005, %v2012
      %v2014 = vcombine.low %v1566, %v1574
      %v2015 = vcombine.low %v1582, %v1581
      %v2017 = vunpack.c.l.s4 1983009808
      %v2018 = vunpack.c.0.s8 %v2017
      %v2019 = vlaneseq
      %v2020 = vshrl.u32 %v2019, 7
      %v2021 = vsub.s32 %v2018, %v2020
      %v2022 = vrot.slane %v2014, %v2021
      %v2024 = vunpack.c.l.s4 1983009808
      %v2025 = vunpack.c.0.s8 %v2024
      %v2026 = vlaneseq
      %v2027 = vshrl.u32 %v2026, 7
      %v2028 = vsub.s32 %v2025, %v2027
      %v2029 = vrot.slane %v2015, %v2028
      %v2030 = vcombine.low %v2022, %v2029
      %v2031 = vcombine.low %v1590, %v1598
      %v2032 = vcombine.low %v1597, %v1599
      %v2034 = vunpack.c.l.s4 1983009808
      %v2035 = vunpack.c.0.s8 %v2034
      %v2036 = vlaneseq
      %v2037 = vshrl.u32 %v2036, 7
      %v2038 = vsub.s32 %v2035, %v2037
      %v2039 = vrot.slane %v2031, %v2038
      %v2041 = vunpack.c.l.s4 1983009808
      %v2042 = vunpack.c.0.s8 %v2041
      %v2043 = vlaneseq
      %v2044 = vshrl.u32 %v2043, 7
      %v2045 = vsub.s32 %v2042, %v2044
      %v2046 = vrot.slane %v2032, %v2045
      %v2047 = vcombine.low %v2039, %v2046
      %v2048 = vcombine.low %v1607, %v1615
      %v2049 = vcombine.low %v1614, %v1623
      %v2051 = vunpack.c.l.s4 1983009808
      %v2052 = vunpack.c.0.s8 %v2051
      %v2053 = vlaneseq
      %v2054 = vshrl.u32 %v2053, 7
      %v2055 = vsub.s32 %v2052, %v2054
      %v2056 = vrot.slane %v2048, %v2055
      %v2058 = vunpack.c.l.s4 1983009808
      %v2059 = vunpack.c.0.s8 %v2058
      %v2060 = vlaneseq
      %v2061 = vshrl.u32 %v2060, 7
      %v2062 = vsub.s32 %v2059, %v2061
      %v2063 = vrot.slane %v2049, %v2062
      %v2064 = vcombine.low %v2056, %v2063
      %v2065 = vcombine.low %v1631, %v1630
      %v2066 = vcombine.low %v1632, %v1640
      %v2068 = vunpack.c.l.s4 1983009808
      %v2069 = vunpack.c.0.s8 %v2068
      %v2070 = vlaneseq
      %v2071 = vshrl.u32 %v2070, 7
      %v2072 = vsub.s32 %v2069, %v2071
      %v2073 = vrot.slane %v2065, %v2072
      %v2075 = vunpack.c.l.s4 1983009808
      %v2076 = vunpack.c.0.s8 %v2075
      %v2077 = vlaneseq
      %v2078 = vshrl.u32 %v2077, 7
      %v2079 = vsub.s32 %v2076, %v2078
      %v2080 = vrot.slane %v2066, %v2079
      %v2081 = vcombine.low %v2073, %v2080
      %v2082 = vcombine.low %v1648, %v1647
      %v2083 = vcombine.low %v1656, %v1664
      %v2085 = vunpack.c.l.s4 1983009808
      %v2086 = vunpack.c.0.s8 %v2085
      %v2087 = vlaneseq
      %v2088 = vshrl.u32 %v2087, 7
      %v2089 = vsub.s32 %v2086, %v2088
      %v2090 = vrot.slane %v2082, %v2089
      %v2092 = vunpack.c.l.s4 1983009808
      %v2093 = vunpack.c.0.s8 %v2092
      %v2094 = vlaneseq
      %v2095 = vshrl.u32 %v2094, 7
      %v2096 = vsub.s32 %v2093, %v2095
      %v2097 = vrot.slane %v2083, %v2096
      %v2098 = vcombine.low %v2090, %v2097
      %v2099 = vcombine.low %v1663, %v1665
      %v2100 = vcombine.low %v1673, %v1681
      %v2102 = vunpack.c.l.s4 1983009808
      %v2103 = vunpack.c.0.s8 %v2102
      %v2104 = vlaneseq
      %v2105 = vshrl.u32 %v2104, 7
      %v2106 = vsub.s32 %v2103, %v2105
      %v2107 = vrot.slane %v2099, %v2106
      %v2109 = vunpack.c.l.s4 1983009808
      %v2110 = vunpack.c.0.s8 %v2109
      %v2111 = vlaneseq
      %v2112 = vshrl.u32 %v2111, 7
      %v2113 = vsub.s32 %v2110, %v2112
      %v2114 = vrot.slane %v2100, %v2113
      %v2115 = vcombine.low %v2107, %v2114
      %v2116 = vcombine.low %v1680, %v1689
      %v2117 = vcombine.low %v1697, %v1696
      %v2119 = vunpack.c.l.s4 1983009808
      %v2120 = vunpack.c.0.s8 %v2119
      %v2121 = vlaneseq
      %v2122 = vshrl.u32 %v2121, 7
      %v2123 = vsub.s32 %v2120, %v2122
      %v2124 = vrot.slane %v2116, %v2123
      %v2126 = vunpack.c.l.s4 1983009808
      %v2127 = vunpack.c.0.s8 %v2126
      %v2128 = vlaneseq
      %v2129 = vshrl.u32 %v2128, 7
      %v2130 = vsub.s32 %v2127, %v2129
      %v2131 = vrot.slane %v2117, %v2130
      %v2132 = vcombine.low %v2124, %v2131
      %v2133 = vcombine.low %v1698, %v1706
      %v2134 = vcombine.low %v1714, %v1713
      %v2136 = vunpack.c.l.s4 1983009808
      %v2137 = vunpack.c.0.s8 %v2136
      %v2138 = vlaneseq
      %v2139 = vshrl.u32 %v2138, 7
      %v2140 = vsub.s32 %v2137, %v2139
      %v2141 = vrot.slane %v2133, %v2140
      %v2143 = vunpack.c.l.s4 1983009808
      %v2144 = vunpack.c.0.s8 %v2143
      %v2145 = vlaneseq
      %v2146 = vshrl.u32 %v2145, 7
      %v2147 = vsub.s32 %v2144, %v2146
      %v2148 = vrot.slane %v2134, %v2147
      %v2149 = vcombine.low %v2141, %v2148
      %v2150 = vcombine.low %v1722, %v1730
      %v2151 = vcombine.low %v1729, %v1731
      %v2153 = vunpack.c.l.s4 1983009808
      %v2154 = vunpack.c.0.s8 %v2153
      %v2155 = vlaneseq
      %v2156 = vshrl.u32 %v2155, 7
      %v2157 = vsub.s32 %v2154, %v2156
      %v2158 = vrot.slane %v2150, %v2157
      %v2160 = vunpack.c.l.s4 1983009808
      %v2161 = vunpack.c.0.s8 %v2160
      %v2162 = vlaneseq
      %v2163 = vshrl.u32 %v2162, 7
      %v2164 = vsub.s32 %v2161, %v2163
      %v2165 = vrot.slane %v2151, %v2164
      %v2166 = vcombine.low %v2158, %v2165
      %v2167 = vcombine.low %v1739, %v1747
      %v2168 = vcombine.low %v1746, %v1755
      %v2170 = vunpack.c.l.s4 1983009808
      %v2171 = vunpack.c.0.s8 %v2170
      %v2172 = vlaneseq
      %v2173 = vshrl.u32 %v2172, 7
      %v2174 = vsub.s32 %v2171, %v2173
      %v2175 = vrot.slane %v2167, %v2174
      %v2177 = vunpack.c.l.s4 1983009808
      %v2178 = vunpack.c.0.s8 %v2177
      %v2179 = vlaneseq
      %v2180 = vshrl.u32 %v2179, 7
      %v2181 = vsub.s32 %v2178, %v2180
      %v2182 = vrot.slane %v2168, %v2181
      %v2183 = vcombine.low %v2175, %v2182
      %v2184 = vcombine.low %v1763, %v1762
      %v2185 = vcombine.low %v1764, %v1772
      %v2187 = vunpack.c.l.s4 1983009808
      %v2188 = vunpack.c.0.s8 %v2187
      %v2189 = vlaneseq
      %v2190 = vshrl.u32 %v2189, 7
      %v2191 = vsub.s32 %v2188, %v2190
      %v2192 = vrot.slane %v2184, %v2191
      %v2194 = vunpack.c.l.s4 1983009808
      %v2195 = vunpack.c.0.s8 %v2194
      %v2196 = vlaneseq
      %v2197 = vshrl.u32 %v2196, 7
      %v2198 = vsub.s32 %v2195, %v2197
      %v2199 = vrot.slane %v2185, %v2198
      %v2200 = vcombine.low %v2192, %v2199
      %v2201 = vcombine.low %v1780, %v1779
      %v2203 = vunpack.c.l.s4 1983009808
      %v2204 = vunpack.c.0.s8 %v2203
      %v2205 = vlaneseq
      %v2206 = vshrl.u32 %v2205, 7
      %v2207 = vsub.s32 %v2204, %v2206
      %v2208 = vrot.slane %v2201, %v2207
      %vm2209 = vcmask 293888
      %v2210 = vsel %vm2209, %v1809, 0
      %v2212 = vsel %vm2209, %v1826, 0
      %v2214 = vsel %vm2209, %v1843, 0
      %v2216 = vsel %vm2209, %v1860, 0
      %v2218 = vsel %vm2209, %v1877, 0
      %v2220 = vsel %vm2209, %v1894, 0
      %v2222 = vsel %vm2209, %v1911, 0
      %v2224 = vsel %vm2209, %v1928, 0
      %v2226 = vsel %vm2209, %v1945, 0
      %v2228 = vsel %vm2209, %v1962, 0
      %v2230 = vsel %vm2209, %v1979, 0
      %v2232 = vsel %vm2209, %v1996, 0
      %v2234 = vsel %vm2209, %v2013, 0
      %v2236 = vsel %vm2209, %v2030, 0
      %v2238 = vsel %vm2209, %v2047, 0
      %v2240 = vsel %vm2209, %v2064, 0
      %v2242 = vsel %vm2209, %v2081, 0
      %v2244 = vsel %vm2209, %v2098, 0
      %v2246 = vsel %vm2209, %v2115, 0
      %v2248 = vsel %vm2209, %v2132, 0
      %v2250 = vsel %vm2209, %v2149, 0
      %v2252 = vsel %vm2209, %v2166, 0
      %v2254 = vsel %vm2209, %v2183, 0
      %v2256 = vsel %vm2209, %v2200, 0
      %v2258 = vsel %vm2209, %v2208, 0
      %vm2260 = vcmask 1043456
      %v2262 = vsel %vm2260, %v1785, 0
      %2264 = vmatprep.subr.mxu0 0.0
      %2265 = vmatpush1.msra.mxu0 0.0
      %2266 = vmatprep.subr.mxu0 0.0
      %2267 = vmatpush1.msra.mxu0 0.0
      %2268 = vmatprep.subr.mxu0 0.0
      %2269 = vmatpush1.msra.mxu0 0.0
      %2270 = vmatprep.subr.mxu0 0.0
      %2271 = vmatpush1.msra.mxu0 0.0
      %2272 = vmatprep.subr.mxu0 0.0
      %2273 = vmatpush1.msra.mxu0 0.0
      %2274 = vmatprep.subr.mxu0 0.0
      %2275 = vmatpush1.msra.mxu0 0.0
      %2276 = vmatprep.subr.mxu0 0.0
      %2277 = vmatpush1.msra.mxu0 0.0
      %2278 = vmatprep.subr.mxu0 0.0
      %2279 = vmatpush1.msra.mxu0 0.0
      %2280 = vmatprep.subr.mxu0 0.0
      %2281 = vmatpush1.msra.mxu0 0.0
      %2282 = vmatprep.subr.mxu0 0.0
      %2283 = vmatpush1.msra.mxu0 0.0
      %2284 = vmatprep.subr.mxu0 0.0
      %2285 = vmatpush1.msra.mxu0 0.0
      %2286 = vmatprep.subr.mxu0 0.0
      %2287 = vmatpush1.msra.mxu0 %v2262
      %2288 = vmatprep.subr.mxu0 0.0
      %2289 = vmatpush1.msra.mxu0 %v1784
      %2290 = vmatprep.subr.mxu0 0.0
      %2291 = vmatpush1.msra.mxu0 %v1783
      %2292 = vmatprep.subr.mxu0 0.0
      %2293 = vmatpush1.msra.mxu0 %v1782
      %2294 = vmatprep.subr.mxu0 0.0
      %2295 = vmatpush1.msra.mxu0 %v1781
      %2296 = vmatprep.subr.mxu0 0.0
      %2297 = vmatpush2.msra.mxu0 0.0
      %2298 = vmatprep.subr.mxu0 0.0
      %2299 = vmatpush2.msra.mxu0 0.0
      %2300 = vmatprep.subr.mxu0 0.0
      %2301 = vmatpush2.msra.mxu0 0.0
      %2302 = vmatprep.subr.mxu0 0.0
      %2303 = vmatpush2.msra.mxu0 0.0
      %2304 = vmatprep.subr.mxu0 0.0
      %2305 = vmatpush2.msra.mxu0 0.0
      %2306 = vmatprep.subr.mxu0 0.0
      %2307 = vmatpush2.msra.mxu0 0.0
      %2308 = vmatprep.subr.mxu0 0.0
      %2309 = vmatpush2.msra.mxu0 0.0
      %2310 = vmatprep.subr.mxu0 0.0
      %2311 = vmatpush2.msra.mxu0 0.0
      %2312 = vmatprep.subr.mxu0 0.0
      %2313 = vmatpush2.msra.mxu0 0.0
      %2314 = vmatprep.subr.mxu0 0.0
      %2315 = vmatpush2.msra.mxu0 0.0
      %2316 = vmatprep.subr.mxu0 0.0
      %2317 = vmatpush2.msra.mxu0 0.0
      %2318 = vmatprep.subr.mxu0 0.0
      %2319 = vmatpush2.msra.mxu0 0.0
      %2320 = vmatprep.subr.mxu0 0.0
      %2321 = vmatpush2.msra.mxu0 0.0
      %2322 = vmatprep.subr.mxu0 0.0
      %2323 = vmatpush2.msra.mxu0 0.0
      %2324 = vmatprep.subr.mxu0 0.0
      %2325 = vmatpush2.msra.mxu0 0.0
      %2326 = vmatprep.subr.mxu0 0.0
      %2327 = vmatpush2.msra.mxu0 0.0
      %2328 = vmatprep.mubr.f32.mxu0 0.0
      %2329 = vmatmul.mubr.f32.gmra.mxu0 %v2210
      %v2330 = vpop.f32.mrf.mxu0
      %v2331 = vadd.f32 %v1791, %v2330
      %v2332 = vpop.f32.mrf.mxu0
      %2333 = vmatprep.mubr.f32.mxu0 0.0
      %2334 = vmatmul.mubr.f32.gmra.mxu0 %v2212
      %v2335 = vpop.f32.mrf.mxu0
      %v2336 = vadd.f32 %v1791, %v2335
      %v2337 = vpop.f32.mrf.mxu0
      %2338 = vmatprep.mubr.f32.mxu0 0.0
      %2339 = vmatmul.mubr.f32.gmra.mxu0 %v2214
      %v2340 = vpop.f32.mrf.mxu0
      %v2341 = vadd.f32 %v1791, %v2340
      %v2342 = vpop.f32.mrf.mxu0
      %2343 = vmatprep.mubr.f32.mxu0 0.0
      %2344 = vmatmul.mubr.f32.gmra.mxu0 %v2216
      %v2345 = vpop.f32.mrf.mxu0
      %v2346 = vadd.f32 %v1791, %v2345
      %v2347 = vpop.f32.mrf.mxu0
      %2348 = vmatprep.mubr.f32.mxu0 0.0
      %2349 = vmatmul.mubr.f32.gmra.mxu0 %v2218
      %v2350 = vpop.f32.mrf.mxu0
      %v2351 = vadd.f32 %v1791, %v2350
      %v2352 = vpop.f32.mrf.mxu0
      %2353 = vmatprep.mubr.f32.mxu0 0.0
      %2354 = vmatmul.mubr.f32.gmra.mxu0 %v2220
      %v2355 = vpop.f32.mrf.mxu0
      %v2356 = vadd.f32 %v1791, %v2355
      %v2357 = vpop.f32.mrf.mxu0
      %2358 = vmatprep.mubr.f32.mxu0 0.0
      %2359 = vmatmul.mubr.f32.gmra.mxu0 %v2222
      %v2360 = vpop.f32.mrf.mxu0
      %v2361 = vadd.f32 %v1791, %v2360
      %v2362 = vpop.f32.mrf.mxu0
      %2363 = vmatprep.mubr.f32.mxu0 0.0
      %2364 = vmatmul.mubr.f32.gmra.mxu0 %v2224
      %v2365 = vpop.f32.mrf.mxu0
      %v2366 = vadd.f32 %v1791, %v2365
      %v2367 = vpop.f32.mrf.mxu0
      %2368 = vmatprep.mubr.f32.mxu0 0.0
      %2369 = vmatmul.mubr.f32.gmra.mxu0 %v2226
      %v2370 = vpop.f32.mrf.mxu0
      %v2371 = vadd.f32 %v1791, %v2370
      %v2372 = vpop.f32.mrf.mxu0
      %2373 = vmatprep.mubr.f32.mxu0 0.0
      %2374 = vmatmul.mubr.f32.gmra.mxu0 %v2228
      %v2375 = vpop.f32.mrf.mxu0
      %v2376 = vadd.f32 %v1791, %v2375
      %v2377 = vpop.f32.mrf.mxu0
      %2378 = vmatprep.mubr.f32.mxu0 0.0
      %2379 = vmatmul.mubr.f32.gmra.mxu0 %v2230
      %v2380 = vpop.f32.mrf.mxu0
      %v2381 = vadd.f32 %v1791, %v2380
      %v2382 = vpop.f32.mrf.mxu0
      %2383 = vmatprep.mubr.f32.mxu0 0.0
      %2384 = vmatmul.mubr.f32.gmra.mxu0 %v2232
      %v2385 = vpop.f32.mrf.mxu0
      %v2386 = vadd.f32 %v1791, %v2385
      %v2387 = vpop.f32.mrf.mxu0
      %2388 = vmatprep.mubr.f32.mxu0 0.0
      %2389 = vmatmul.mubr.f32.gmra.mxu0 %v2234
      %v2390 = vpop.f32.mrf.mxu0
      %v2391 = vadd.f32 %v1791, %v2390
      %v2392 = vpop.f32.mrf.mxu0
      %2393 = vmatprep.mubr.f32.mxu0 0.0
      %2394 = vmatmul.mubr.f32.gmra.mxu0 %v2236
      %v2395 = vpop.f32.mrf.mxu0
      %v2396 = vadd.f32 %v1791, %v2395
      %v2397 = vpop.f32.mrf.mxu0
      %2398 = vmatprep.mubr.f32.mxu0 0.0
      %2399 = vmatmul.mubr.f32.gmra.mxu0 %v2238
      %v2400 = vpop.f32.mrf.mxu0
      %v2401 = vadd.f32 %v1791, %v2400
      %v2402 = vpop.f32.mrf.mxu0
      %2403 = vmatprep.mubr.f32.mxu0 0.0
      %2404 = vmatmul.mubr.f32.gmra.mxu0 %v2240
      %v2405 = vpop.f32.mrf.mxu0
      %v2406 = vadd.f32 %v1791, %v2405
      %v2407 = vpop.f32.mrf.mxu0
      %2408 = vmatprep.mubr.f32.mxu0 0.0
      %2409 = vmatmul.mubr.f32.gmra.mxu0 %v2242
      %v2410 = vpop.f32.mrf.mxu0
      %v2411 = vadd.f32 %v1791, %v2410
      %v2412 = vpop.f32.mrf.mxu0
      %2413 = vmatprep.mubr.f32.mxu0 0.0
      %2414 = vmatmul.mubr.f32.gmra.mxu0 %v2244
      %v2415 = vpop.f32.mrf.mxu0
      %v2416 = vadd.f32 %v1791, %v2415
      %v2417 = vpop.f32.mrf.mxu0
      %2418 = vmatprep.mubr.f32.mxu0 0.0
      %2419 = vmatmul.mubr.f32.gmra.mxu0 %v2246
      %v2420 = vpop.f32.mrf.mxu0
      %v2421 = vadd.f32 %v1791, %v2420
      %v2422 = vpop.f32.mrf.mxu0
      %2423 = vmatprep.mubr.f32.mxu0 0.0
      %2424 = vmatmul.mubr.f32.gmra.mxu0 %v2248
      %v2425 = vpop.f32.mrf.mxu0
      %v2426 = vadd.f32 %v1791, %v2425
      %v2427 = vpop.f32.mrf.mxu0
      %2428 = vmatprep.mubr.f32.mxu0 0.0
      %2429 = vmatmul.mubr.f32.gmra.mxu0 %v2250
      %v2430 = vpop.f32.mrf.mxu0
      %v2431 = vadd.f32 %v1791, %v2430
      %v2432 = vpop.f32.mrf.mxu0
      %2433 = vmatprep.mubr.f32.mxu0 0.0
      %2434 = vmatmul.mubr.f32.gmra.mxu0 %v2252
      %v2435 = vpop.f32.mrf.mxu0
      %v2436 = vadd.f32 %v1791, %v2435
      %v2437 = vpop.f32.mrf.mxu0
      %2438 = vmatprep.mubr.f32.mxu0 0.0
      %2439 = vmatmul.mubr.f32.gmra.mxu0 %v2254
      %v2440 = vpop.f32.mrf.mxu0
      %v2441 = vadd.f32 %v1791, %v2440
      %v2442 = vpop.f32.mrf.mxu0
      %2443 = vmatprep.mubr.f32.mxu0 0.0
      %2444 = vmatmul.mubr.f32.gmra.mxu0 %v2256
      %v2445 = vpop.f32.mrf.mxu0
      %v2446 = vadd.f32 %v1791, %v2445
      %v2447 = vpop.f32.mrf.mxu0
      %2448 = vmatprep.mubr.f32.mxu0 0.0
      %2449 = vmatmul.mubr.f32.gmra.mxu0 %v2258
      %v2450 = vpop.f32.mrf.mxu0
      %v2451 = vadd.f32 %v1791, %v2450
      %v2452 = vpop.f32.mrf.mxu0
      %2453 = vdwg.mxu0
      %v2454 = vmax.f32 %v2331, 0.0
      %v2455 = vmax.f32 %v2336, 0.0
      %v2456 = vmax.f32 %v2341, 0.0
      %v2457 = vmax.f32 %v2346, 0.0
      %v2458 = vmax.f32 %v2351, 0.0
      %v2459 = vmax.f32 %v2356, 0.0
      %v2460 = vmax.f32 %v2361, 0.0
      %v2461 = vmax.f32 %v2366, 0.0
      %v2462 = vmax.f32 %v2371, 0.0
      %v2463 = vmax.f32 %v2376, 0.0
      %v2464 = vmax.f32 %v2381, 0.0
      %v2465 = vmax.f32 %v2386, 0.0
      %v2466 = vmax.f32 %v2391, 0.0
      %v2467 = vmax.f32 %v2396, 0.0
      %v2468 = vmax.f32 %v2401, 0.0
      %v2469 = vmax.f32 %v2406, 0.0
      %v2470 = vmax.f32 %v2411, 0.0
      %v2471 = vmax.f32 %v2416, 0.0
      %v2472 = vmax.f32 %v2421, 0.0
      %v2473 = vmax.f32 %v2426, 0.0
      %v2474 = vmax.f32 %v2431, 0.0
      %v2475 = vmax.f32 %v2436, 0.0
      %v2476 = vmax.f32 %v2441, 0.0
      %v2477 = vmax.f32 %v2446, 0.0
      %v2478 = vmax.f32 %v2451, 0.0
      %v2504 = vcombine.high %v2454, %v2454
      %v2506 = vunpack.c.l.s4 1983009808
      %v2507 = vunpack.c.0.s8 %v2506
      %v2508 = vlaneseq
      %v2509 = vshrl.u32 %v2508, 7
      %v2510 = vsub.s32 %v2507, %v2509
      %v2511 = vrot.slane %v2454, %v2510
      %v2513 = vunpack.c.l.s4 1983009808
      %v2514 = vunpack.c.0.s8 %v2513
      %v2515 = vlaneseq
      %v2516 = vshrl.u32 %v2515, 7
      %v2517 = vsub.s32 %v2514, %v2516
      %v2518 = vrot.slane %v2504, %v2517
      %v2519 = vcombine.high %v2511, %v2511
      %v2520 = vcombine.high %v2518, %v2518
      %v2521 = vcombine.high %v2455, %v2455
      %v2523 = vunpack.c.l.s4 1983009808
      %v2524 = vunpack.c.0.s8 %v2523
      %v2525 = vlaneseq
      %v2526 = vshrl.u32 %v2525, 7
      %v2527 = vsub.s32 %v2524, %v2526
      %v2528 = vrot.slane %v2455, %v2527
      %v2530 = vunpack.c.l.s4 1983009808
      %v2531 = vunpack.c.0.s8 %v2530
      %v2532 = vlaneseq
      %v2533 = vshrl.u32 %v2532, 7
      %v2534 = vsub.s32 %v2531, %v2533
      %v2535 = vrot.slane %v2521, %v2534
      %v2536 = vcombine.high %v2528, %v2528
      %v2537 = vcombine.high %v2535, %v2535
      %v2538 = vcombine.high %v2456, %v2456
      %v2540 = vunpack.c.l.s4 1983009808
      %v2541 = vunpack.c.0.s8 %v2540
      %v2542 = vlaneseq
      %v2543 = vshrl.u32 %v2542, 7
      %v2544 = vsub.s32 %v2541, %v2543
      %v2545 = vrot.slane %v2456, %v2544
      %v2547 = vunpack.c.l.s4 1983009808
      %v2548 = vunpack.c.0.s8 %v2547
      %v2549 = vlaneseq
      %v2550 = vshrl.u32 %v2549, 7
      %v2551 = vsub.s32 %v2548, %v2550
      %v2552 = vrot.slane %v2538, %v2551
      %v2553 = vcombine.high %v2545, %v2545
      %v2554 = vcombine.high %v2552, %v2552
      %v2555 = vcombine.high %v2457, %v2457
      %v2557 = vunpack.c.l.s4 1983009808
      %v2558 = vunpack.c.0.s8 %v2557
      %v2559 = vlaneseq
      %v2560 = vshrl.u32 %v2559, 7
      %v2561 = vsub.s32 %v2558, %v2560
      %v2562 = vrot.slane %v2457, %v2561
      %v2564 = vunpack.c.l.s4 1983009808
      %v2565 = vunpack.c.0.s8 %v2564
      %v2566 = vlaneseq
      %v2567 = vshrl.u32 %v2566, 7
      %v2568 = vsub.s32 %v2565, %v2567
      %v2569 = vrot.slane %v2555, %v2568
      %v2570 = vcombine.high %v2562, %v2562
      %v2571 = vcombine.high %v2569, %v2569
      %v2572 = vcombine.high %v2458, %v2458
      %v2574 = vunpack.c.l.s4 1983009808
      %v2575 = vunpack.c.0.s8 %v2574
      %v2576 = vlaneseq
      %v2577 = vshrl.u32 %v2576, 7
      %v2578 = vsub.s32 %v2575, %v2577
      %v2579 = vrot.slane %v2458, %v2578
      %v2581 = vunpack.c.l.s4 1983009808
      %v2582 = vunpack.c.0.s8 %v2581
      %v2583 = vlaneseq
      %v2584 = vshrl.u32 %v2583, 7
      %v2585 = vsub.s32 %v2582, %v2584
      %v2586 = vrot.slane %v2572, %v2585
      %v2587 = vcombine.high %v2579, %v2579
      %v2588 = vcombine.high %v2586, %v2586
      %v2589 = vcombine.high %v2459, %v2459
      %v2591 = vunpack.c.l.s4 1983009808
      %v2592 = vunpack.c.0.s8 %v2591
      %v2593 = vlaneseq
      %v2594 = vshrl.u32 %v2593, 7
      %v2595 = vsub.s32 %v2592, %v2594
      %v2596 = vrot.slane %v2459, %v2595
      %v2598 = vunpack.c.l.s4 1983009808
      %v2599 = vunpack.c.0.s8 %v2598
      %v2600 = vlaneseq
      %v2601 = vshrl.u32 %v2600, 7
      %v2602 = vsub.s32 %v2599, %v2601
      %v2603 = vrot.slane %v2589, %v2602
      %v2604 = vcombine.high %v2596, %v2596
      %v2605 = vcombine.high %v2603, %v2603
      %v2606 = vcombine.high %v2460, %v2460
      %v2608 = vunpack.c.l.s4 1983009808
      %v2609 = vunpack.c.0.s8 %v2608
      %v2610 = vlaneseq
      %v2611 = vshrl.u32 %v2610, 7
      %v2612 = vsub.s32 %v2609, %v2611
      %v2613 = vrot.slane %v2460, %v2612
      %v2615 = vunpack.c.l.s4 1983009808
      %v2616 = vunpack.c.0.s8 %v2615
      %v2617 = vlaneseq
      %v2618 = vshrl.u32 %v2617, 7
      %v2619 = vsub.s32 %v2616, %v2618
      %v2620 = vrot.slane %v2606, %v2619
      %v2621 = vcombine.high %v2613, %v2613
      %v2622 = vcombine.high %v2620, %v2620
      %v2623 = vcombine.high %v2461, %v2461
      %v2625 = vunpack.c.l.s4 1983009808
      %v2626 = vunpack.c.0.s8 %v2625
      %v2627 = vlaneseq
      %v2628 = vshrl.u32 %v2627, 7
      %v2629 = vsub.s32 %v2626, %v2628
      %v2630 = vrot.slane %v2461, %v2629
      %v2632 = vunpack.c.l.s4 1983009808
      %v2633 = vunpack.c.0.s8 %v2632
      %v2634 = vlaneseq
      %v2635 = vshrl.u32 %v2634, 7
      %v2636 = vsub.s32 %v2633, %v2635
      %v2637 = vrot.slane %v2623, %v2636
      %v2638 = vcombine.high %v2630, %v2630
      %v2639 = vcombine.high %v2637, %v2637
      %v2640 = vcombine.high %v2462, %v2462
      %v2642 = vunpack.c.l.s4 1983009808
      %v2643 = vunpack.c.0.s8 %v2642
      %v2644 = vlaneseq
      %v2645 = vshrl.u32 %v2644, 7
      %v2646 = vsub.s32 %v2643, %v2645
      %v2647 = vrot.slane %v2462, %v2646
      %v2649 = vunpack.c.l.s4 1983009808
      %v2650 = vunpack.c.0.s8 %v2649
      %v2651 = vlaneseq
      %v2652 = vshrl.u32 %v2651, 7
      %v2653 = vsub.s32 %v2650, %v2652
      %v2654 = vrot.slane %v2640, %v2653
      %v2655 = vcombine.high %v2647, %v2647
      %v2656 = vcombine.high %v2654, %v2654
      %v2657 = vcombine.high %v2463, %v2463
      %v2659 = vunpack.c.l.s4 1983009808
      %v2660 = vunpack.c.0.s8 %v2659
      %v2661 = vlaneseq
      %v2662 = vshrl.u32 %v2661, 7
      %v2663 = vsub.s32 %v2660, %v2662
      %v2664 = vrot.slane %v2463, %v2663
      %v2666 = vunpack.c.l.s4 1983009808
      %v2667 = vunpack.c.0.s8 %v2666
      %v2668 = vlaneseq
      %v2669 = vshrl.u32 %v2668, 7
      %v2670 = vsub.s32 %v2667, %v2669
      %v2671 = vrot.slane %v2657, %v2670
      %v2672 = vcombine.high %v2664, %v2664
      %v2673 = vcombine.high %v2671, %v2671
      %v2674 = vcombine.high %v2464, %v2464
      %v2676 = vunpack.c.l.s4 1983009808
      %v2677 = vunpack.c.0.s8 %v2676
      %v2678 = vlaneseq
      %v2679 = vshrl.u32 %v2678, 7
      %v2680 = vsub.s32 %v2677, %v2679
      %v2681 = vrot.slane %v2464, %v2680
      %v2683 = vunpack.c.l.s4 1983009808
      %v2684 = vunpack.c.0.s8 %v2683
      %v2685 = vlaneseq
      %v2686 = vshrl.u32 %v2685, 7
      %v2687 = vsub.s32 %v2684, %v2686
      %v2688 = vrot.slane %v2674, %v2687
      %v2689 = vcombine.high %v2681, %v2681
      %v2690 = vcombine.high %v2688, %v2688
      %v2691 = vcombine.high %v2465, %v2465
      %v2693 = vunpack.c.l.s4 1983009808
      %v2694 = vunpack.c.0.s8 %v2693
      %v2695 = vlaneseq
      %v2696 = vshrl.u32 %v2695, 7
      %v2697 = vsub.s32 %v2694, %v2696
      %v2698 = vrot.slane %v2465, %v2697
      %v2700 = vunpack.c.l.s4 1983009808
      %v2701 = vunpack.c.0.s8 %v2700
      %v2702 = vlaneseq
      %v2703 = vshrl.u32 %v2702, 7
      %v2704 = vsub.s32 %v2701, %v2703
      %v2705 = vrot.slane %v2691, %v2704
      %v2706 = vcombine.high %v2698, %v2698
      %v2707 = vcombine.high %v2705, %v2705
      %v2708 = vcombine.high %v2466, %v2466
      %v2710 = vunpack.c.l.s4 1983009808
      %v2711 = vunpack.c.0.s8 %v2710
      %v2712 = vlaneseq
      %v2713 = vshrl.u32 %v2712, 7
      %v2714 = vsub.s32 %v2711, %v2713
      %v2715 = vrot.slane %v2466, %v2714
      %v2717 = vunpack.c.l.s4 1983009808
      %v2718 = vunpack.c.0.s8 %v2717
      %v2719 = vlaneseq
      %v2720 = vshrl.u32 %v2719, 7
      %v2721 = vsub.s32 %v2718, %v2720
      %v2722 = vrot.slane %v2708, %v2721
      %v2723 = vcombine.high %v2715, %v2715
      %v2724 = vcombine.high %v2722, %v2722
      %v2725 = vcombine.high %v2467, %v2467
      %v2727 = vunpack.c.l.s4 1983009808
      %v2728 = vunpack.c.0.s8 %v2727
      %v2729 = vlaneseq
      %v2730 = vshrl.u32 %v2729, 7
      %v2731 = vsub.s32 %v2728, %v2730
      %v2732 = vrot.slane %v2467, %v2731
      %v2734 = vunpack.c.l.s4 1983009808
      %v2735 = vunpack.c.0.s8 %v2734
      %v2736 = vlaneseq
      %v2737 = vshrl.u32 %v2736, 7
      %v2738 = vsub.s32 %v2735, %v2737
      %v2739 = vrot.slane %v2725, %v2738
      %v2740 = vcombine.high %v2732, %v2732
      %v2741 = vcombine.high %v2739, %v2739
      %v2742 = vcombine.high %v2468, %v2468
      %v2744 = vunpack.c.l.s4 1983009808
      %v2745 = vunpack.c.0.s8 %v2744
      %v2746 = vlaneseq
      %v2747 = vshrl.u32 %v2746, 7
      %v2748 = vsub.s32 %v2745, %v2747
      %v2749 = vrot.slane %v2468, %v2748
      %v2751 = vunpack.c.l.s4 1983009808
      %v2752 = vunpack.c.0.s8 %v2751
      %v2753 = vlaneseq
      %v2754 = vshrl.u32 %v2753, 7
      %v2755 = vsub.s32 %v2752, %v2754
      %v2756 = vrot.slane %v2742, %v2755
      %v2757 = vcombine.high %v2749, %v2749
      %v2758 = vcombine.high %v2756, %v2756
      %v2759 = vcombine.high %v2469, %v2469
      %v2761 = vunpack.c.l.s4 1983009808
      %v2762 = vunpack.c.0.s8 %v2761
      %v2763 = vlaneseq
      %v2764 = vshrl.u32 %v2763, 7
      %v2765 = vsub.s32 %v2762, %v2764
      %v2766 = vrot.slane %v2469, %v2765
      %v2768 = vunpack.c.l.s4 1983009808
      %v2769 = vunpack.c.0.s8 %v2768
      %v2770 = vlaneseq
      %v2771 = vshrl.u32 %v2770, 7
      %v2772 = vsub.s32 %v2769, %v2771
      %v2773 = vrot.slane %v2759, %v2772
      %v2774 = vcombine.high %v2766, %v2766
      %v2775 = vcombine.high %v2773, %v2773
      %v2776 = vcombine.high %v2470, %v2470
      %v2778 = vunpack.c.l.s4 1983009808
      %v2779 = vunpack.c.0.s8 %v2778
      %v2780 = vlaneseq
      %v2781 = vshrl.u32 %v2780, 7
      %v2782 = vsub.s32 %v2779, %v2781
      %v2783 = vrot.slane %v2470, %v2782
      %v2785 = vunpack.c.l.s4 1983009808
      %v2786 = vunpack.c.0.s8 %v2785
      %v2787 = vlaneseq
      %v2788 = vshrl.u32 %v2787, 7
      %v2789 = vsub.s32 %v2786, %v2788
      %v2790 = vrot.slane %v2776, %v2789
      %v2791 = vcombine.high %v2783, %v2783
      %v2792 = vcombine.high %v2790, %v2790
      %v2793 = vcombine.high %v2471, %v2471
      %v2795 = vunpack.c.l.s4 1983009808
      %v2796 = vunpack.c.0.s8 %v2795
      %v2797 = vlaneseq
      %v2798 = vshrl.u32 %v2797, 7
      %v2799 = vsub.s32 %v2796, %v2798
      %v2800 = vrot.slane %v2471, %v2799
      %v2802 = vunpack.c.l.s4 1983009808
      %v2803 = vunpack.c.0.s8 %v2802
      %v2804 = vlaneseq
      %v2805 = vshrl.u32 %v2804, 7
      %v2806 = vsub.s32 %v2803, %v2805
      %v2807 = vrot.slane %v2793, %v2806
      %v2808 = vcombine.high %v2800, %v2800
      %v2809 = vcombine.high %v2807, %v2807
      %v2810 = vcombine.high %v2472, %v2472
      %v2812 = vunpack.c.l.s4 1983009808
      %v2813 = vunpack.c.0.s8 %v2812
      %v2814 = vlaneseq
      %v2815 = vshrl.u32 %v2814, 7
      %v2816 = vsub.s32 %v2813, %v2815
      %v2817 = vrot.slane %v2472, %v2816
      %v2819 = vunpack.c.l.s4 1983009808
      %v2820 = vunpack.c.0.s8 %v2819
      %v2821 = vlaneseq
      %v2822 = vshrl.u32 %v2821, 7
      %v2823 = vsub.s32 %v2820, %v2822
      %v2824 = vrot.slane %v2810, %v2823
      %v2825 = vcombine.high %v2817, %v2817
      %v2826 = vcombine.high %v2824, %v2824
      %v2827 = vcombine.high %v2473, %v2473
      %v2829 = vunpack.c.l.s4 1983009808
      %v2830 = vunpack.c.0.s8 %v2829
      %v2831 = vlaneseq
      %v2832 = vshrl.u32 %v2831, 7
      %v2833 = vsub.s32 %v2830, %v2832
      %v2834 = vrot.slane %v2473, %v2833
      %v2836 = vunpack.c.l.s4 1983009808
      %v2837 = vunpack.c.0.s8 %v2836
      %v2838 = vlaneseq
      %v2839 = vshrl.u32 %v2838, 7
      %v2840 = vsub.s32 %v2837, %v2839
      %v2841 = vrot.slane %v2827, %v2840
      %v2842 = vcombine.high %v2834, %v2834
      %v2843 = vcombine.high %v2841, %v2841
      %v2844 = vcombine.high %v2474, %v2474
      %v2846 = vunpack.c.l.s4 1983009808
      %v2847 = vunpack.c.0.s8 %v2846
      %v2848 = vlaneseq
      %v2849 = vshrl.u32 %v2848, 7
      %v2850 = vsub.s32 %v2847, %v2849
      %v2851 = vrot.slane %v2474, %v2850
      %v2853 = vunpack.c.l.s4 1983009808
      %v2854 = vunpack.c.0.s8 %v2853
      %v2855 = vlaneseq
      %v2856 = vshrl.u32 %v2855, 7
      %v2857 = vsub.s32 %v2854, %v2856
      %v2858 = vrot.slane %v2844, %v2857
      %v2859 = vcombine.high %v2851, %v2851
      %v2860 = vcombine.high %v2858, %v2858
      %v2861 = vcombine.high %v2475, %v2475
      %v2863 = vunpack.c.l.s4 1983009808
      %v2864 = vunpack.c.0.s8 %v2863
      %v2865 = vlaneseq
      %v2866 = vshrl.u32 %v2865, 7
      %v2867 = vsub.s32 %v2864, %v2866
      %v2868 = vrot.slane %v2475, %v2867
      %v2870 = vunpack.c.l.s4 1983009808
      %v2871 = vunpack.c.0.s8 %v2870
      %v2872 = vlaneseq
      %v2873 = vshrl.u32 %v2872, 7
      %v2874 = vsub.s32 %v2871, %v2873
      %v2875 = vrot.slane %v2861, %v2874
      %v2876 = vcombine.high %v2868, %v2868
      %v2877 = vcombine.high %v2875, %v2875
      %v2878 = vcombine.high %v2476, %v2476
      %v2880 = vunpack.c.l.s4 1983009808
      %v2881 = vunpack.c.0.s8 %v2880
      %v2882 = vlaneseq
      %v2883 = vshrl.u32 %v2882, 7
      %v2884 = vsub.s32 %v2881, %v2883
      %v2885 = vrot.slane %v2476, %v2884
      %v2887 = vunpack.c.l.s4 1983009808
      %v2888 = vunpack.c.0.s8 %v2887
      %v2889 = vlaneseq
      %v2890 = vshrl.u32 %v2889, 7
      %v2891 = vsub.s32 %v2888, %v2890
      %v2892 = vrot.slane %v2878, %v2891
      %v2893 = vcombine.high %v2885, %v2885
      %v2894 = vcombine.high %v2892, %v2892
      %v2895 = vcombine.high %v2477, %v2477
      %v2897 = vunpack.c.l.s4 1983009808
      %v2898 = vunpack.c.0.s8 %v2897
      %v2899 = vlaneseq
      %v2900 = vshrl.u32 %v2899, 7
      %v2901 = vsub.s32 %v2898, %v2900
      %v2902 = vrot.slane %v2477, %v2901
      %v2904 = vunpack.c.l.s4 1983009808
      %v2905 = vunpack.c.0.s8 %v2904
      %v2906 = vlaneseq
      %v2907 = vshrl.u32 %v2906, 7
      %v2908 = vsub.s32 %v2905, %v2907
      %v2909 = vrot.slane %v2895, %v2908
      %v2910 = vcombine.high %v2902, %v2902
      %v2911 = vcombine.high %v2909, %v2909
      %v2913 = vunpack.c.l.s4 1983009808
      %v2914 = vunpack.c.0.s8 %v2913
      %v2915 = vlaneseq
      %v2916 = vshrl.u32 %v2915, 7
      %v2917 = vsub.s32 %v2914, %v2916
      %v2918 = vrot.slane %v2478, %v2917
      %v2919 = vcombine.high %v2918, %v2918
      %v2920 = vcombine.low %v2511, %v2519
      %v2921 = vcombine.low %v2518, %v2520
      %v2923 = vunpack.c.l.s4 1983009808
      %v2924 = vunpack.c.0.s8 %v2923
      %v2925 = vlaneseq
      %v2926 = vshrl.u32 %v2925, 7
      %v2927 = vsub.s32 %v2924, %v2926
      %v2928 = vrot.slane %v2920, %v2927
      %v2930 = vunpack.c.l.s4 1983009808
      %v2931 = vunpack.c.0.s8 %v2930
      %v2932 = vlaneseq
      %v2933 = vshrl.u32 %v2932, 7
      %v2934 = vsub.s32 %v2931, %v2933
      %v2935 = vrot.slane %v2921, %v2934
      %v2936 = vcombine.low %v2928, %v2935
      %v2937 = vcombine.low %v2528, %v2536
      %v2939 = vunpack.c.l.s4 1983009808
      %v2940 = vunpack.c.0.s8 %v2939
      %v2941 = vlaneseq
      %v2942 = vshrl.u32 %v2941, 7
      %v2943 = vsub.s32 %v2940, %v2942
      %v2944 = vrot.slane %v2937, %v2943
      %v2945 = vcombine.low %v2537, %v2545
      %v2946 = vcombine.low %v2553, %v2552
      %v2948 = vunpack.c.l.s4 1983009808
      %v2949 = vunpack.c.0.s8 %v2948
      %v2950 = vlaneseq
      %v2951 = vshrl.u32 %v2950, 7
      %v2952 = vsub.s32 %v2949, %v2951
      %v2953 = vrot.slane %v2945, %v2952
      %v2955 = vunpack.c.l.s4 1983009808
      %v2956 = vunpack.c.0.s8 %v2955
      %v2957 = vlaneseq
      %v2958 = vshrl.u32 %v2957, 7
      %v2959 = vsub.s32 %v2956, %v2958
      %v2960 = vrot.slane %v2946, %v2959
      %v2961 = vcombine.low %v2953, %v2960
      %v2962 = vcombine.low %v2554, %v2562
      %v2964 = vunpack.c.l.s4 1983009808
      %v2965 = vunpack.c.0.s8 %v2964
      %v2966 = vlaneseq
      %v2967 = vshrl.u32 %v2966, 7
      %v2968 = vsub.s32 %v2965, %v2967
      %v2969 = vrot.slane %v2962, %v2968
      %v2970 = vcombine.low %v2569, %v2571
      %v2971 = vcombine.low %v2579, %v2587
      %v2973 = vunpack.c.l.s4 1983009808
      %v2974 = vunpack.c.0.s8 %v2973
      %v2975 = vlaneseq
      %v2976 = vshrl.u32 %v2975, 7
      %v2977 = vsub.s32 %v2974, %v2976
      %v2978 = vrot.slane %v2970, %v2977
      %v2980 = vunpack.c.l.s4 1983009808
      %v2981 = vunpack.c.0.s8 %v2980
      %v2982 = vlaneseq
      %v2983 = vshrl.u32 %v2982, 7
      %v2984 = vsub.s32 %v2981, %v2983
      %v2985 = vrot.slane %v2971, %v2984
      %v2986 = vcombine.low %v2978, %v2985
      %v2987 = vcombine.low %v2586, %v2588
      %v2989 = vunpack.c.l.s4 1983009808
      %v2990 = vunpack.c.0.s8 %v2989
      %v2991 = vlaneseq
      %v2992 = vshrl.u32 %v2991, 7
      %v2993 = vsub.s32 %v2990, %v2992
      %v2994 = vrot.slane %v2987, %v2993
      %v2995 = vcombine.low %v2604, %v2603
      %v2996 = vcombine.low %v2605, %v2613
      %v2998 = vunpack.c.l.s4 1983009808
      %v2999 = vunpack.c.0.s8 %v2998
      %v3000 = vlaneseq
      %v3001 = vshrl.u32 %v3000, 7
      %v3002 = vsub.s32 %v2999, %v3001
      %v3003 = vrot.slane %v2995, %v3002
      %v3005 = vunpack.c.l.s4 1983009808
      %v3006 = vunpack.c.0.s8 %v3005
      %v3007 = vlaneseq
      %v3008 = vshrl.u32 %v3007, 7
      %v3009 = vsub.s32 %v3006, %v3008
      %v3010 = vrot.slane %v2996, %v3009
      %v3011 = vcombine.low %v3003, %v3010
      %v3012 = vcombine.low %v2621, %v2620
      %v3014 = vunpack.c.l.s4 1983009808
      %v3015 = vunpack.c.0.s8 %v3014
      %v3016 = vlaneseq
      %v3017 = vshrl.u32 %v3016, 7
      %v3018 = vsub.s32 %v3015, %v3017
      %v3019 = vrot.slane %v3012, %v3018
      %v3020 = vcombine.low %v2630, %v2638
      %v3021 = vcombine.low %v2637, %v2639
      %v3023 = vunpack.c.l.s4 1983009808
      %v3024 = vunpack.c.0.s8 %v3023
      %v3025 = vlaneseq
      %v3026 = vshrl.u32 %v3025, 7
      %v3027 = vsub.s32 %v3024, %v3026
      %v3028 = vrot.slane %v3020, %v3027
      %v3030 = vunpack.c.l.s4 1983009808
      %v3031 = vunpack.c.0.s8 %v3030
      %v3032 = vlaneseq
      %v3033 = vshrl.u32 %v3032, 7
      %v3034 = vsub.s32 %v3031, %v3033
      %v3035 = vrot.slane %v3021, %v3034
      %v3036 = vcombine.low %v3028, %v3035
      %v3037 = vcombine.low %v2647, %v2655
      %v3039 = vunpack.c.l.s4 1983009808
      %v3040 = vunpack.c.0.s8 %v3039
      %v3041 = vlaneseq
      %v3042 = vshrl.u32 %v3041, 7
      %v3043 = vsub.s32 %v3040, %v3042
      %v3044 = vrot.slane %v3037, %v3043
      %v3045 = vcombine.low %v2656, %v2664
      %v3046 = vcombine.low %v2672, %v2671
      %v3048 = vunpack.c.l.s4 1983009808
      %v3049 = vunpack.c.0.s8 %v3048
      %v3050 = vlaneseq
      %v3051 = vshrl.u32 %v3050, 7
      %v3052 = vsub.s32 %v3049, %v3051
      %v3053 = vrot.slane %v3045, %v3052
      %v3055 = vunpack.c.l.s4 1983009808
      %v3056 = vunpack.c.0.s8 %v3055
      %v3057 = vlaneseq
      %v3058 = vshrl.u32 %v3057, 7
      %v3059 = vsub.s32 %v3056, %v3058
      %v3060 = vrot.slane %v3046, %v3059
      %v3061 = vcombine.low %v3053, %v3060
      %v3062 = vcombine.low %v2673, %v2681
      %v3064 = vunpack.c.l.s4 1983009808
      %v3065 = vunpack.c.0.s8 %v3064
      %v3066 = vlaneseq
      %v3067 = vshrl.u32 %v3066, 7
      %v3068 = vsub.s32 %v3065, %v3067
      %v3069 = vrot.slane %v3062, %v3068
      %v3070 = vcombine.low %v2688, %v2690
      %v3071 = vcombine.low %v2698, %v2706
      %v3073 = vunpack.c.l.s4 1983009808
      %v3074 = vunpack.c.0.s8 %v3073
      %v3075 = vlaneseq
      %v3076 = vshrl.u32 %v3075, 7
      %v3077 = vsub.s32 %v3074, %v3076
      %v3078 = vrot.slane %v3070, %v3077
      %v3080 = vunpack.c.l.s4 1983009808
      %v3081 = vunpack.c.0.s8 %v3080
      %v3082 = vlaneseq
      %v3083 = vshrl.u32 %v3082, 7
      %v3084 = vsub.s32 %v3081, %v3083
      %v3085 = vrot.slane %v3071, %v3084
      %v3086 = vcombine.low %v3078, %v3085
      %v3087 = vcombine.low %v2705, %v2707
      %v3089 = vunpack.c.l.s4 1983009808
      %v3090 = vunpack.c.0.s8 %v3089
      %v3091 = vlaneseq
      %v3092 = vshrl.u32 %v3091, 7
      %v3093 = vsub.s32 %v3090, %v3092
      %v3094 = vrot.slane %v3087, %v3093
      %v3095 = vcombine.low %v2723, %v2722
      %v3096 = vcombine.low %v2724, %v2732
      %v3098 = vunpack.c.l.s4 1983009808
      %v3099 = vunpack.c.0.s8 %v3098
      %v3100 = vlaneseq
      %v3101 = vshrl.u32 %v3100, 7
      %v3102 = vsub.s32 %v3099, %v3101
      %v3103 = vrot.slane %v3095, %v3102
      %v3105 = vunpack.c.l.s4 1983009808
      %v3106 = vunpack.c.0.s8 %v3105
      %v3107 = vlaneseq
      %v3108 = vshrl.u32 %v3107, 7
      %v3109 = vsub.s32 %v3106, %v3108
      %v3110 = vrot.slane %v3096, %v3109
      %v3111 = vcombine.low %v3103, %v3110
      %v3112 = vcombine.low %v2740, %v2739
      %v3114 = vunpack.c.l.s4 1983009808
      %v3115 = vunpack.c.0.s8 %v3114
      %v3116 = vlaneseq
      %v3117 = vshrl.u32 %v3116, 7
      %v3118 = vsub.s32 %v3115, %v3117
      %v3119 = vrot.slane %v3112, %v3118
      %v3120 = vcombine.low %v2749, %v2757
      %v3121 = vcombine.low %v2756, %v2758
      %v3123 = vunpack.c.l.s4 1983009808
      %v3124 = vunpack.c.0.s8 %v3123
      %v3125 = vlaneseq
      %v3126 = vshrl.u32 %v3125, 7
      %v3127 = vsub.s32 %v3124, %v3126
      %v3128 = vrot.slane %v3120, %v3127
      %v3130 = vunpack.c.l.s4 1983009808
      %v3131 = vunpack.c.0.s8 %v3130
      %v3132 = vlaneseq
      %v3133 = vshrl.u32 %v3132, 7
      %v3134 = vsub.s32 %v3131, %v3133
      %v3135 = vrot.slane %v3121, %v3134
      %v3136 = vcombine.low %v3128, %v3135
      %v3137 = vcombine.low %v2766, %v2774
      %v3139 = vunpack.c.l.s4 1983009808
      %v3140 = vunpack.c.0.s8 %v3139
      %v3141 = vlaneseq
      %v3142 = vshrl.u32 %v3141, 7
      %v3143 = vsub.s32 %v3140, %v3142
      %v3144 = vrot.slane %v3137, %v3143
      %v3145 = vcombine.low %v2775, %v2783
      %v3146 = vcombine.low %v2791, %v2790
      %v3148 = vunpack.c.l.s4 1983009808
      %v3149 = vunpack.c.0.s8 %v3148
      %v3150 = vlaneseq
      %v3151 = vshrl.u32 %v3150, 7
      %v3152 = vsub.s32 %v3149, %v3151
      %v3153 = vrot.slane %v3145, %v3152
      %v3155 = vunpack.c.l.s4 1983009808
      %v3156 = vunpack.c.0.s8 %v3155
      %v3157 = vlaneseq
      %v3158 = vshrl.u32 %v3157, 7
      %v3159 = vsub.s32 %v3156, %v3158
      %v3160 = vrot.slane %v3146, %v3159
      %v3161 = vcombine.low %v3153, %v3160
      %v3162 = vcombine.low %v2792, %v2800
      %v3164 = vunpack.c.l.s4 1983009808
      %v3165 = vunpack.c.0.s8 %v3164
      %v3166 = vlaneseq
      %v3167 = vshrl.u32 %v3166, 7
      %v3168 = vsub.s32 %v3165, %v3167
      %v3169 = vrot.slane %v3162, %v3168
      %v3170 = vcombine.low %v2807, %v2809
      %v3171 = vcombine.low %v2817, %v2825
      %v3173 = vunpack.c.l.s4 1983009808
      %v3174 = vunpack.c.0.s8 %v3173
      %v3175 = vlaneseq
      %v3176 = vshrl.u32 %v3175, 7
      %v3177 = vsub.s32 %v3174, %v3176
      %v3178 = vrot.slane %v3170, %v3177
      %v3180 = vunpack.c.l.s4 1983009808
      %v3181 = vunpack.c.0.s8 %v3180
      %v3182 = vlaneseq
      %v3183 = vshrl.u32 %v3182, 7
      %v3184 = vsub.s32 %v3181, %v3183
      %v3185 = vrot.slane %v3171, %v3184
      %v3186 = vcombine.low %v3178, %v3185
      %v3187 = vcombine.low %v2824, %v2826
      %v3189 = vunpack.c.l.s4 1983009808
      %v3190 = vunpack.c.0.s8 %v3189
      %v3191 = vlaneseq
      %v3192 = vshrl.u32 %v3191, 7
      %v3193 = vsub.s32 %v3190, %v3192
      %v3194 = vrot.slane %v3187, %v3193
      %v3195 = vcombine.low %v2842, %v2841
      %v3196 = vcombine.low %v2843, %v2851
      %v3198 = vunpack.c.l.s4 1983009808
      %v3199 = vunpack.c.0.s8 %v3198
      %v3200 = vlaneseq
      %v3201 = vshrl.u32 %v3200, 7
      %v3202 = vsub.s32 %v3199, %v3201
      %v3203 = vrot.slane %v3195, %v3202
      %v3205 = vunpack.c.l.s4 1983009808
      %v3206 = vunpack.c.0.s8 %v3205
      %v3207 = vlaneseq
      %v3208 = vshrl.u32 %v3207, 7
      %v3209 = vsub.s32 %v3206, %v3208
      %v3210 = vrot.slane %v3196, %v3209
      %v3211 = vcombine.low %v3203, %v3210
      %v3212 = vcombine.low %v2859, %v2858
      %v3214 = vunpack.c.l.s4 1983009808
      %v3215 = vunpack.c.0.s8 %v3214
      %v3216 = vlaneseq
      %v3217 = vshrl.u32 %v3216, 7
      %v3218 = vsub.s32 %v3215, %v3217
      %v3219 = vrot.slane %v3212, %v3218
      %v3245 = vunpack.c.l.s4 1983009808
      %v3246 = vunpack.c.0.s8 %v3245
      %v3247 = vlaneseq
      %v3248 = vshrl.u32 %v3247, 7
      %v3249 = vsub.s32 %v3246, %v3248
      %v3250 = vrot.slane %v2535, %v3249
      %v3251 = vcombine.low %v2944, %v3250
      %v3253 = vunpack.c.l.s4 1983009808
      %v3254 = vunpack.c.0.s8 %v3253
      %v3255 = vlaneseq
      %v3256 = vshrl.u32 %v3255, 7
      %v3257 = vsub.s32 %v3254, %v3256
      %v3258 = vrot.slane %v2570, %v3257
      %v3259 = vcombine.low %v2969, %v3258
      %v3261 = vunpack.c.l.s4 1983009808
      %v3262 = vunpack.c.0.s8 %v3261
      %v3263 = vlaneseq
      %v3264 = vshrl.u32 %v3263, 7
      %v3265 = vsub.s32 %v3262, %v3264
      %v3266 = vrot.slane %v2596, %v3265
      %v3267 = vcombine.low %v2994, %v3266
      %v3269 = vunpack.c.l.s4 1983009808
      %v3270 = vunpack.c.0.s8 %v3269
      %v3271 = vlaneseq
      %v3272 = vshrl.u32 %v3271, 7
      %v3273 = vsub.s32 %v3270, %v3272
      %v3274 = vrot.slane %v2622, %v3273
      %v3275 = vcombine.low %v3019, %v3274
      %v3277 = vunpack.c.l.s4 1983009808
      %v3278 = vunpack.c.0.s8 %v3277
      %v3279 = vlaneseq
      %v3280 = vshrl.u32 %v3279, 7
      %v3281 = vsub.s32 %v3278, %v3280
      %v3282 = vrot.slane %v2654, %v3281
      %v3283 = vcombine.low %v3044, %v3282
      %v3285 = vunpack.c.l.s4 1983009808
      %v3286 = vunpack.c.0.s8 %v3285
      %v3287 = vlaneseq
      %v3288 = vshrl.u32 %v3287, 7
      %v3289 = vsub.s32 %v3286, %v3288
      %v3290 = vrot.slane %v2689, %v3289
      %v3291 = vcombine.low %v3069, %v3290
      %v3293 = vunpack.c.l.s4 1983009808
      %v3294 = vunpack.c.0.s8 %v3293
      %v3295 = vlaneseq
      %v3296 = vshrl.u32 %v3295, 7
      %v3297 = vsub.s32 %v3294, %v3296
      %v3298 = vrot.slane %v2715, %v3297
      %v3299 = vcombine.low %v3094, %v3298
      %v3301 = vunpack.c.l.s4 1983009808
      %v3302 = vunpack.c.0.s8 %v3301
      %v3303 = vlaneseq
      %v3304 = vshrl.u32 %v3303, 7
      %v3305 = vsub.s32 %v3302, %v3304
      %v3306 = vrot.slane %v2741, %v3305
      %v3307 = vcombine.low %v3119, %v3306
      %v3309 = vunpack.c.l.s4 1983009808
      %v3310 = vunpack.c.0.s8 %v3309
      %v3311 = vlaneseq
      %v3312 = vshrl.u32 %v3311, 7
      %v3313 = vsub.s32 %v3310, %v3312
      %v3314 = vrot.slane %v2773, %v3313
      %v3315 = vcombine.low %v3144, %v3314
      %v3317 = vunpack.c.l.s4 1983009808
      %v3318 = vunpack.c.0.s8 %v3317
      %v3319 = vlaneseq
      %v3320 = vshrl.u32 %v3319, 7
      %v3321 = vsub.s32 %v3318, %v3320
      %v3322 = vrot.slane %v2808, %v3321
      %v3323 = vcombine.low %v3169, %v3322
      %v3325 = vunpack.c.l.s4 1983009808
      %v3326 = vunpack.c.0.s8 %v3325
      %v3327 = vlaneseq
      %v3328 = vshrl.u32 %v3327, 7
      %v3329 = vsub.s32 %v3326, %v3328
      %v3330 = vrot.slane %v2834, %v3329
      %v3331 = vcombine.low %v3194, %v3330
      %v3333 = vunpack.c.l.s4 1983009808
      %v3334 = vunpack.c.0.s8 %v3333
      %v3335 = vlaneseq
      %v3336 = vshrl.u32 %v3335, 7
      %v3337 = vsub.s32 %v3334, %v3336
      %v3338 = vrot.slane %v2860, %v3337
      %v3339 = vcombine.low %v3219, %v3338
      %v3340 = vrot.slane %v2936, 1
      %v3341 = vrot.slane %v3251, 1
      %v3342 = vsel %vm285, %v3340, %v3341
      %v3343 = vrot.slane %v2961, 1
      %v3344 = vrot.slane %v3259, 1
      %v3345 = vsel %vm285, %v3343, %v3344
      %v3346 = vrot.slane %v2986, 1
      %v3347 = vrot.slane %v3267, 1
      %v3348 = vsel %vm285, %v3346, %v3347
      %v3349 = vrot.slane %v3011, 1
      %v3350 = vrot.slane %v3275, 1
      %v3351 = vsel %vm285, %v3349, %v3350
      %v3352 = vrot.slane %v3036, 1
      %v3353 = vrot.slane %v3283, 1
      %v3354 = vsel %vm285, %v3352, %v3353
      %v3355 = vrot.slane %v3061, 1
      %v3356 = vrot.slane %v3291, 1
      %v3357 = vsel %vm285, %v3355, %v3356
      %v3358 = vrot.slane %v3086, 1
      %v3359 = vrot.slane %v3299, 1
      %v3360 = vsel %vm285, %v3358, %v3359
      %v3361 = vrot.slane %v3111, 1
      %v3362 = vrot.slane %v3307, 1
      %v3363 = vsel %vm285, %v3361, %v3362
      %v3364 = vrot.slane %v3136, 1
      %v3365 = vrot.slane %v3315, 1
      %v3366 = vsel %vm285, %v3364, %v3365
      %v3367 = vrot.slane %v3161, 1
      %v3368 = vrot.slane %v3323, 1
      %v3369 = vsel %vm285, %v3367, %v3368
      %v3370 = vrot.slane %v3186, 1
      %v3371 = vrot.slane %v3331, 1
      %v3372 = vsel %vm285, %v3370, %v3371
      %v3373 = vrot.slane %v3211, 1
      %v3374 = vrot.slane %v3339, 1
      %v3375 = vsel %vm285, %v3373, %v3374
      %3376 = vrot.lane.b32.xlu0 %v3342, 8
      %v3377 = vpop.permute.xlu0 %3376
      %3378 = vrot.lane.b32.xlu0 %v3341, 8
      %v3379 = vpop.permute.xlu0 %3378
      %3380 = vrot.lane.b32.xlu0 %v3345, 8
      %v3381 = vpop.permute.xlu0 %3380
      %3382 = vrot.lane.b32.xlu0 %v3344, 8
      %v3383 = vpop.permute.xlu0 %3382
      %3384 = vrot.lane.b32.xlu0 %v3348, 8
      %v3385 = vpop.permute.xlu0 %3384
      %3386 = vrot.lane.b32.xlu0 %v3347, 8
      %v3387 = vpop.permute.xlu0 %3386
      %3388 = vrot.lane.b32.xlu0 %v3351, 8
      %v3389 = vpop.permute.xlu0 %3388
      %3390 = vrot.lane.b32.xlu0 %v3350, 8
      %v3391 = vpop.permute.xlu0 %3390
      %3392 = vrot.lane.b32.xlu0 %v3354, 8
      %v3393 = vpop.permute.xlu0 %3392
      %3394 = vrot.lane.b32.xlu0 %v3353, 8
      %v3395 = vpop.permute.xlu0 %3394
      %3396 = vrot.lane.b32.xlu0 %v3357, 8
      %v3397 = vpop.permute.xlu0 %3396
      %3398 = vrot.lane.b32.xlu0 %v3356, 8
      %v3399 = vpop.permute.xlu0 %3398
      %3400 = vrot.lane.b32.xlu0 %v3360, 8
      %v3401 = vpop.permute.xlu0 %3400
      %3402 = vrot.lane.b32.xlu0 %v3359, 8
      %v3403 = vpop.permute.xlu0 %3402
      %3404 = vrot.lane.b32.xlu0 %v3363, 8
      %v3405 = vpop.permute.xlu0 %3404
      %3406 = vrot.lane.b32.xlu0 %v3362, 8
      %v3407 = vpop.permute.xlu0 %3406
      %3408 = vrot.lane.b32.xlu0 %v3366, 8
      %v3409 = vpop.permute.xlu0 %3408
      %3410 = vrot.lane.b32.xlu0 %v3365, 8
      %v3411 = vpop.permute.xlu0 %3410
      %3412 = vrot.lane.b32.xlu0 %v3369, 8
      %v3413 = vpop.permute.xlu0 %3412
      %3414 = vrot.lane.b32.xlu0 %v3368, 8
      %v3415 = vpop.permute.xlu0 %3414
      %3416 = vrot.lane.b32.xlu0 %v3372, 8
      %v3417 = vpop.permute.xlu0 %3416
      %3418 = vrot.lane.b32.xlu0 %v3371, 8
      %v3419 = vpop.permute.xlu0 %3418
      %3420 = vrot.lane.b32.xlu0 %v3375, 8
      %v3421 = vpop.permute.xlu0 %3420
      %3422 = vrot.lane.b32.xlu0 %v3374, 8
      %v3423 = vpop.permute.xlu0 %3422
      %v3448 = vcombine.low %v2519, %v2518
      %v3449 = vcombine.low %v2520, %v2528
      %v3451 = vunpack.c.l.s4 1983009808
      %v3452 = vunpack.c.0.s8 %v3451
      %v3453 = vlaneseq
      %v3454 = vshrl.u32 %v3453, 7
      %v3455 = vsub.s32 %v3452, %v3454
      %v3456 = vrot.slane %v3448, %v3455
      %v3458 = vunpack.c.l.s4 1983009808
      %v3459 = vunpack.c.0.s8 %v3458
      %v3460 = vlaneseq
      %v3461 = vshrl.u32 %v3460, 7
      %v3462 = vsub.s32 %v3459, %v3461
      %v3463 = vrot.slane %v3449, %v3462
      %v3464 = vcombine.low %v3456, %v3463
      %v3465 = vcombine.low %v2536, %v2535
      %v3467 = vunpack.c.l.s4 1983009808
      %v3468 = vunpack.c.0.s8 %v3467
      %v3469 = vlaneseq
      %v3470 = vshrl.u32 %v3469, 7
      %v3471 = vsub.s32 %v3468, %v3470
      %v3472 = vrot.slane %v3465, %v3471
      %v3473 = vcombine.low %v2545, %v2553
      %v3474 = vcombine.low %v2552, %v2554
      %v3476 = vunpack.c.l.s4 1983009808
      %v3477 = vunpack.c.0.s8 %v3476
      %v3478 = vlaneseq
      %v3479 = vshrl.u32 %v3478, 7
      %v3480 = vsub.s32 %v3477, %v3479
      %v3481 = vrot.slane %v3473, %v3480
      %v3483 = vunpack.c.l.s4 1983009808
      %v3484 = vunpack.c.0.s8 %v3483
      %v3485 = vlaneseq
      %v3486 = vshrl.u32 %v3485, 7
      %v3487 = vsub.s32 %v3484, %v3486
      %v3488 = vrot.slane %v3474, %v3487
      %v3489 = vcombine.low %v3481, %v3488
      %v3490 = vcombine.low %v2562, %v2570
      %v3492 = vunpack.c.l.s4 1983009808
      %v3493 = vunpack.c.0.s8 %v3492
      %v3494 = vlaneseq
      %v3495 = vshrl.u32 %v3494, 7
      %v3496 = vsub.s32 %v3493, %v3495
      %v3497 = vrot.slane %v3490, %v3496
      %v3498 = vcombine.low %v2571, %v2579
      %v3499 = vcombine.low %v2587, %v2586
      %v3501 = vunpack.c.l.s4 1983009808
      %v3502 = vunpack.c.0.s8 %v3501
      %v3503 = vlaneseq
      %v3504 = vshrl.u32 %v3503, 7
      %v3505 = vsub.s32 %v3502, %v3504
      %v3506 = vrot.slane %v3498, %v3505
      %v3508 = vunpack.c.l.s4 1983009808
      %v3509 = vunpack.c.0.s8 %v3508
      %v3510 = vlaneseq
      %v3511 = vshrl.u32 %v3510, 7
      %v3512 = vsub.s32 %v3509, %v3511
      %v3513 = vrot.slane %v3499, %v3512
      %v3514 = vcombine.low %v3506, %v3513
      %v3515 = vcombine.low %v2588, %v2596
      %v3517 = vunpack.c.l.s4 1983009808
      %v3518 = vunpack.c.0.s8 %v3517
      %v3519 = vlaneseq
      %v3520 = vshrl.u32 %v3519, 7
      %v3521 = vsub.s32 %v3518, %v3520
      %v3522 = vrot.slane %v3515, %v3521
      %v3523 = vcombine.low %v2603, %v2605
      %v3524 = vcombine.low %v2613, %v2621
      %v3526 = vunpack.c.l.s4 1983009808
      %v3527 = vunpack.c.0.s8 %v3526
      %v3528 = vlaneseq
      %v3529 = vshrl.u32 %v3528, 7
      %v3530 = vsub.s32 %v3527, %v3529
      %v3531 = vrot.slane %v3523, %v3530
      %v3533 = vunpack.c.l.s4 1983009808
      %v3534 = vunpack.c.0.s8 %v3533
      %v3535 = vlaneseq
      %v3536 = vshrl.u32 %v3535, 7
      %v3537 = vsub.s32 %v3534, %v3536
      %v3538 = vrot.slane %v3524, %v3537
      %v3539 = vcombine.low %v3531, %v3538
      %v3540 = vcombine.low %v2620, %v2622
      %v3542 = vunpack.c.l.s4 1983009808
      %v3543 = vunpack.c.0.s8 %v3542
      %v3544 = vlaneseq
      %v3545 = vshrl.u32 %v3544, 7
      %v3546 = vsub.s32 %v3543, %v3545
      %v3547 = vrot.slane %v3540, %v3546
      %v3548 = vcombine.low %v2638, %v2637
      %v3549 = vcombine.low %v2639, %v2647
      %v3551 = vunpack.c.l.s4 1983009808
      %v3552 = vunpack.c.0.s8 %v3551
      %v3553 = vlaneseq
      %v3554 = vshrl.u32 %v3553, 7
      %v3555 = vsub.s32 %v3552, %v3554
      %v3556 = vrot.slane %v3548, %v3555
      %v3558 = vunpack.c.l.s4 1983009808
      %v3559 = vunpack.c.0.s8 %v3558
      %v3560 = vlaneseq
      %v3561 = vshrl.u32 %v3560, 7
      %v3562 = vsub.s32 %v3559, %v3561
      %v3563 = vrot.slane %v3549, %v3562
      %v3564 = vcombine.low %v3556, %v3563
      %v3565 = vcombine.low %v2655, %v2654
      %v3567 = vunpack.c.l.s4 1983009808
      %v3568 = vunpack.c.0.s8 %v3567
      %v3569 = vlaneseq
      %v3570 = vshrl.u32 %v3569, 7
      %v3571 = vsub.s32 %v3568, %v3570
      %v3572 = vrot.slane %v3565, %v3571
      %v3573 = vcombine.low %v2664, %v2672
      %v3574 = vcombine.low %v2671, %v2673
      %v3576 = vunpack.c.l.s4 1983009808
      %v3577 = vunpack.c.0.s8 %v3576
      %v3578 = vlaneseq
      %v3579 = vshrl.u32 %v3578, 7
      %v3580 = vsub.s32 %v3577, %v3579
      %v3581 = vrot.slane %v3573, %v3580
      %v3583 = vunpack.c.l.s4 1983009808
      %v3584 = vunpack.c.0.s8 %v3583
      %v3585 = vlaneseq
      %v3586 = vshrl.u32 %v3585, 7
      %v3587 = vsub.s32 %v3584, %v3586
      %v3588 = vrot.slane %v3574, %v3587
      %v3589 = vcombine.low %v3581, %v3588
      %v3590 = vcombine.low %v2681, %v2689
      %v3592 = vunpack.c.l.s4 1983009808
      %v3593 = vunpack.c.0.s8 %v3592
      %v3594 = vlaneseq
      %v3595 = vshrl.u32 %v3594, 7
      %v3596 = vsub.s32 %v3593, %v3595
      %v3597 = vrot.slane %v3590, %v3596
      %v3598 = vcombine.low %v2690, %v2698
      %v3599 = vcombine.low %v2706, %v2705
      %v3601 = vunpack.c.l.s4 1983009808
      %v3602 = vunpack.c.0.s8 %v3601
      %v3603 = vlaneseq
      %v3604 = vshrl.u32 %v3603, 7
      %v3605 = vsub.s32 %v3602, %v3604
      %v3606 = vrot.slane %v3598, %v3605
      %v3608 = vunpack.c.l.s4 1983009808
      %v3609 = vunpack.c.0.s8 %v3608
      %v3610 = vlaneseq
      %v3611 = vshrl.u32 %v3610, 7
      %v3612 = vsub.s32 %v3609, %v3611
      %v3613 = vrot.slane %v3599, %v3612
      %v3614 = vcombine.low %v3606, %v3613
      %v3615 = vcombine.low %v2707, %v2715
      %v3617 = vunpack.c.l.s4 1983009808
      %v3618 = vunpack.c.0.s8 %v3617
      %v3619 = vlaneseq
      %v3620 = vshrl.u32 %v3619, 7
      %v3621 = vsub.s32 %v3618, %v3620
      %v3622 = vrot.slane %v3615, %v3621
      %v3623 = vcombine.low %v2722, %v2724
      %v3624 = vcombine.low %v2732, %v2740
      %v3626 = vunpack.c.l.s4 1983009808
      %v3627 = vunpack.c.0.s8 %v3626
      %v3628 = vlaneseq
      %v3629 = vshrl.u32 %v3628, 7
      %v3630 = vsub.s32 %v3627, %v3629
      %v3631 = vrot.slane %v3623, %v3630
      %v3633 = vunpack.c.l.s4 1983009808
      %v3634 = vunpack.c.0.s8 %v3633
      %v3635 = vlaneseq
      %v3636 = vshrl.u32 %v3635, 7
      %v3637 = vsub.s32 %v3634, %v3636
      %v3638 = vrot.slane %v3624, %v3637
      %v3639 = vcombine.low %v3631, %v3638
      %v3640 = vcombine.low %v2739, %v2741
      %v3642 = vunpack.c.l.s4 1983009808
      %v3643 = vunpack.c.0.s8 %v3642
      %v3644 = vlaneseq
      %v3645 = vshrl.u32 %v3644, 7
      %v3646 = vsub.s32 %v3643, %v3645
      %v3647 = vrot.slane %v3640, %v3646
      %v3648 = vcombine.low %v2757, %v2756
      %v3649 = vcombine.low %v2758, %v2766
      %v3651 = vunpack.c.l.s4 1983009808
      %v3652 = vunpack.c.0.s8 %v3651
      %v3653 = vlaneseq
      %v3654 = vshrl.u32 %v3653, 7
      %v3655 = vsub.s32 %v3652, %v3654
      %v3656 = vrot.slane %v3648, %v3655
      %v3658 = vunpack.c.l.s4 1983009808
      %v3659 = vunpack.c.0.s8 %v3658
      %v3660 = vlaneseq
      %v3661 = vshrl.u32 %v3660, 7
      %v3662 = vsub.s32 %v3659, %v3661
      %v3663 = vrot.slane %v3649, %v3662
      %v3664 = vcombine.low %v3656, %v3663
      %v3665 = vcombine.low %v2774, %v2773
      %v3667 = vunpack.c.l.s4 1983009808
      %v3668 = vunpack.c.0.s8 %v3667
      %v3669 = vlaneseq
      %v3670 = vshrl.u32 %v3669, 7
      %v3671 = vsub.s32 %v3668, %v3670
      %v3672 = vrot.slane %v3665, %v3671
      %v3673 = vcombine.low %v2783, %v2791
      %v3674 = vcombine.low %v2790, %v2792
      %v3676 = vunpack.c.l.s4 1983009808
      %v3677 = vunpack.c.0.s8 %v3676
      %v3678 = vlaneseq
      %v3679 = vshrl.u32 %v3678, 7
      %v3680 = vsub.s32 %v3677, %v3679
      %v3681 = vrot.slane %v3673, %v3680
      %v3683 = vunpack.c.l.s4 1983009808
      %v3684 = vunpack.c.0.s8 %v3683
      %v3685 = vlaneseq
      %v3686 = vshrl.u32 %v3685, 7
      %v3687 = vsub.s32 %v3684, %v3686
      %v3688 = vrot.slane %v3674, %v3687
      %v3689 = vcombine.low %v3681, %v3688
      %v3690 = vcombine.low %v2800, %v2808
      %v3692 = vunpack.c.l.s4 1983009808
      %v3693 = vunpack.c.0.s8 %v3692
      %v3694 = vlaneseq
      %v3695 = vshrl.u32 %v3694, 7
      %v3696 = vsub.s32 %v3693, %v3695
      %v3697 = vrot.slane %v3690, %v3696
      %v3698 = vcombine.low %v2809, %v2817
      %v3699 = vcombine.low %v2825, %v2824
      %v3701 = vunpack.c.l.s4 1983009808
      %v3702 = vunpack.c.0.s8 %v3701
      %v3703 = vlaneseq
      %v3704 = vshrl.u32 %v3703, 7
      %v3705 = vsub.s32 %v3702, %v3704
      %v3706 = vrot.slane %v3698, %v3705
      %v3708 = vunpack.c.l.s4 1983009808
      %v3709 = vunpack.c.0.s8 %v3708
      %v3710 = vlaneseq
      %v3711 = vshrl.u32 %v3710, 7
      %v3712 = vsub.s32 %v3709, %v3711
      %v3713 = vrot.slane %v3699, %v3712
      %v3714 = vcombine.low %v3706, %v3713
      %v3715 = vcombine.low %v2826, %v2834
      %v3717 = vunpack.c.l.s4 1983009808
      %v3718 = vunpack.c.0.s8 %v3717
      %v3719 = vlaneseq
      %v3720 = vshrl.u32 %v3719, 7
      %v3721 = vsub.s32 %v3718, %v3720
      %v3722 = vrot.slane %v3715, %v3721
      %v3723 = vcombine.low %v2841, %v2843
      %v3724 = vcombine.low %v2851, %v2859
      %v3726 = vunpack.c.l.s4 1983009808
      %v3727 = vunpack.c.0.s8 %v3726
      %v3728 = vlaneseq
      %v3729 = vshrl.u32 %v3728, 7
      %v3730 = vsub.s32 %v3727, %v3729
      %v3731 = vrot.slane %v3723, %v3730
      %v3733 = vunpack.c.l.s4 1983009808
      %v3734 = vunpack.c.0.s8 %v3733
      %v3735 = vlaneseq
      %v3736 = vshrl.u32 %v3735, 7
      %v3737 = vsub.s32 %v3734, %v3736
      %v3738 = vrot.slane %v3724, %v3737
      %v3739 = vcombine.low %v3731, %v3738
      %v3740 = vcombine.low %v2858, %v2860
      %v3742 = vunpack.c.l.s4 1983009808
      %v3743 = vunpack.c.0.s8 %v3742
      %v3744 = vlaneseq
      %v3745 = vshrl.u32 %v3744, 7
      %v3746 = vsub.s32 %v3743, %v3745
      %v3747 = vrot.slane %v3740, %v3746
      %3748 = vrot.lane.b32.xlu0 %v3464, 16
      %v3749 = vpop.permute.xlu0 %3748
      %3750 = vrot.lane.b32.xlu0 %v3472, 16
      %v3751 = vpop.permute.xlu0 %3750
      %3752 = vrot.lane.b32.xlu0 %v3489, 16
      %v3753 = vpop.permute.xlu0 %3752
      %3754 = vrot.lane.b32.xlu0 %v3497, 16
      %v3755 = vpop.permute.xlu0 %3754
      %3756 = vrot.lane.b32.xlu0 %v3514, 16
      %v3757 = vpop.permute.xlu0 %3756
      %3758 = vrot.lane.b32.xlu0 %v3522, 16
      %v3759 = vpop.permute.xlu0 %3758
      %3760 = vrot.lane.b32.xlu0 %v3539, 16
      %v3761 = vpop.permute.xlu0 %3760
      %3762 = vrot.lane.b32.xlu0 %v3547, 16
      %v3763 = vpop.permute.xlu0 %3762
      %3764 = vrot.lane.b32.xlu0 %v3564, 16
      %v3765 = vpop.permute.xlu0 %3764
      %3766 = vrot.lane.b32.xlu0 %v3572, 16
      %v3767 = vpop.permute.xlu0 %3766
      %3768 = vrot.lane.b32.xlu0 %v3589, 16
      %v3769 = vpop.permute.xlu0 %3768
      %3770 = vrot.lane.b32.xlu0 %v3597, 16
      %v3771 = vpop.permute.xlu0 %3770
      %3772 = vrot.lane.b32.xlu0 %v3614, 16
      %v3773 = vpop.permute.xlu0 %3772
      %3774 = vrot.lane.b32.xlu0 %v3622, 16
      %v3775 = vpop.permute.xlu0 %3774
      %3776 = vrot.lane.b32.xlu0 %v3639, 16
      %v3777 = vpop.permute.xlu0 %3776
      %3778 = vrot.lane.b32.xlu0 %v3647, 16
      %v3779 = vpop.permute.xlu0 %3778
      %3780 = vrot.lane.b32.xlu0 %v3664, 16
      %v3781 = vpop.permute.xlu0 %3780
      %3782 = vrot.lane.b32.xlu0 %v3672, 16
      %v3783 = vpop.permute.xlu0 %3782
      %3784 = vrot.lane.b32.xlu0 %v3689, 16
      %v3785 = vpop.permute.xlu0 %3784
      %3786 = vrot.lane.b32.xlu0 %v3697, 16
      %v3787 = vpop.permute.xlu0 %3786
      %3788 = vrot.lane.b32.xlu0 %v3714, 16
      %v3789 = vpop.permute.xlu0 %3788
      %3790 = vrot.lane.b32.xlu0 %v3722, 16
      %v3791 = vpop.permute.xlu0 %3790
      %3792 = vrot.lane.b32.xlu0 %v3739, 16
      %v3793 = vpop.permute.xlu0 %3792
      %3794 = vrot.lane.b32.xlu0 %v3747, 16
      %v3795 = vpop.permute.xlu0 %3794
      %v3820 = vcombine.low %v2868, %v2876
      %v3821 = vcombine.low %v2875, %v2877
      %v3823 = vunpack.c.l.s4 1983009808
      %v3824 = vunpack.c.0.s8 %v3823
      %v3825 = vlaneseq
      %v3826 = vshrl.u32 %v3825, 7
      %v3827 = vsub.s32 %v3824, %v3826
      %v3828 = vrot.slane %v3820, %v3827
      %v3830 = vunpack.c.l.s4 1983009808
      %v3831 = vunpack.c.0.s8 %v3830
      %v3832 = vlaneseq
      %v3833 = vshrl.u32 %v3832, 7
      %v3834 = vsub.s32 %v3831, %v3833
      %v3835 = vrot.slane %v3821, %v3834
      %v3836 = vcombine.low %v3828, %v3835
      %v3837 = vcombine.low %v2885, %v2893
      %v3839 = vunpack.c.l.s4 1983009808
      %v3840 = vunpack.c.0.s8 %v3839
      %v3841 = vlaneseq
      %v3842 = vshrl.u32 %v3841, 7
      %v3843 = vsub.s32 %v3840, %v3842
      %v3844 = vrot.slane %v3837, %v3843
      %3845 = vrot.lane.b32.xlu0 %v2961, 24
      %v3846 = vpop.permute.xlu0 %3845
      %3847 = vrot.lane.b32.xlu0 %v2969, 24
      %v3848 = vpop.permute.xlu0 %3847
      %3849 = vrot.lane.b32.xlu0 %v2986, 24
      %v3850 = vpop.permute.xlu0 %3849
      %3851 = vrot.lane.b32.xlu0 %v2994, 24
      %v3852 = vpop.permute.xlu0 %3851
      %3853 = vrot.lane.b32.xlu0 %v3011, 24
      %v3854 = vpop.permute.xlu0 %3853
      %3855 = vrot.lane.b32.xlu0 %v3019, 24
      %v3856 = vpop.permute.xlu0 %3855
      %3857 = vrot.lane.b32.xlu0 %v3036, 24
      %v3858 = vpop.permute.xlu0 %3857
      %3859 = vrot.lane.b32.xlu0 %v3044, 24
      %v3860 = vpop.permute.xlu0 %3859
      %3861 = vrot.lane.b32.xlu0 %v3061, 24
      %v3862 = vpop.permute.xlu0 %3861
      %3863 = vrot.lane.b32.xlu0 %v3069, 24
      %v3864 = vpop.permute.xlu0 %3863
      %3865 = vrot.lane.b32.xlu0 %v3086, 24
      %v3866 = vpop.permute.xlu0 %3865
      %3867 = vrot.lane.b32.xlu0 %v3094, 24
      %v3868 = vpop.permute.xlu0 %3867
      %3869 = vrot.lane.b32.xlu0 %v3111, 24
      %v3870 = vpop.permute.xlu0 %3869
      %3871 = vrot.lane.b32.xlu0 %v3119, 24
      %v3872 = vpop.permute.xlu0 %3871
      %3873 = vrot.lane.b32.xlu0 %v3136, 24
      %v3874 = vpop.permute.xlu0 %3873
      %3875 = vrot.lane.b32.xlu0 %v3144, 24
      %v3876 = vpop.permute.xlu0 %3875
      %3877 = vrot.lane.b32.xlu0 %v3161, 24
      %v3878 = vpop.permute.xlu0 %3877
      %3879 = vrot.lane.b32.xlu0 %v3169, 24
      %v3880 = vpop.permute.xlu0 %3879
      %3881 = vrot.lane.b32.xlu0 %v3186, 24
      %v3882 = vpop.permute.xlu0 %3881
      %3883 = vrot.lane.b32.xlu0 %v3194, 24
      %v3884 = vpop.permute.xlu0 %3883
      %3885 = vrot.lane.b32.xlu0 %v3211, 24
      %v3886 = vpop.permute.xlu0 %3885
      %3887 = vrot.lane.b32.xlu0 %v3219, 24
      %v3888 = vpop.permute.xlu0 %3887
      %3889 = vrot.lane.b32.xlu0 %v3836, 24
      %v3890 = vpop.permute.xlu0 %3889
      %3891 = vrot.lane.b32.xlu0 %v3844, 24
      %v3892 = vpop.permute.xlu0 %3891
      %v3918 = vunpack.c.l.s4 1983009808
      %v3919 = vunpack.c.0.s8 %v3918
      %v3920 = vlaneseq
      %v3921 = vshrl.u32 %v3920, 7
      %v3922 = vsub.s32 %v3919, %v3921
      %v3923 = vrot.slane %v2892, %v3922
      %v3924 = vcombine.low %v3844, %v3923
      %v3925 = vrot.slane %v3836, 1
      %v3926 = vrot.slane %v3924, 1
      %v3927 = vsel %vm285, %v3925, %v3926
      %3928 = vrot.lane.b32.xlu0 %v3345, 32
      %v3929 = vpop.permute.xlu0 %3928
      %3930 = vrot.lane.b32.xlu0 %v3344, 32
      %v3931 = vpop.permute.xlu0 %3930
      %3932 = vrot.lane.b32.xlu0 %v3348, 32
      %v3933 = vpop.permute.xlu0 %3932
      %3934 = vrot.lane.b32.xlu0 %v3347, 32
      %v3935 = vpop.permute.xlu0 %3934
      %3936 = vrot.lane.b32.xlu0 %v3351, 32
      %v3937 = vpop.permute.xlu0 %3936
      %3938 = vrot.lane.b32.xlu0 %v3350, 32
      %v3939 = vpop.permute.xlu0 %3938
      %3940 = vrot.lane.b32.xlu0 %v3354, 32
      %v3941 = vpop.permute.xlu0 %3940
      %3942 = vrot.lane.b32.xlu0 %v3353, 32
      %v3943 = vpop.permute.xlu0 %3942
      %3944 = vrot.lane.b32.xlu0 %v3357, 32
      %v3945 = vpop.permute.xlu0 %3944
      %3946 = vrot.lane.b32.xlu0 %v3356, 32
      %v3947 = vpop.permute.xlu0 %3946
      %3948 = vrot.lane.b32.xlu0 %v3360, 32
      %v3949 = vpop.permute.xlu0 %3948
      %3950 = vrot.lane.b32.xlu0 %v3359, 32
      %v3951 = vpop.permute.xlu0 %3950
      %3952 = vrot.lane.b32.xlu0 %v3363, 32
      %v3953 = vpop.permute.xlu0 %3952
      %3954 = vrot.lane.b32.xlu0 %v3362, 32
      %v3955 = vpop.permute.xlu0 %3954
      %3956 = vrot.lane.b32.xlu0 %v3366, 32
      %v3957 = vpop.permute.xlu0 %3956
      %3958 = vrot.lane.b32.xlu0 %v3365, 32
      %v3959 = vpop.permute.xlu0 %3958
      %3960 = vrot.lane.b32.xlu0 %v3369, 32
      %v3961 = vpop.permute.xlu0 %3960
      %3962 = vrot.lane.b32.xlu0 %v3368, 32
      %v3963 = vpop.permute.xlu0 %3962
      %3964 = vrot.lane.b32.xlu0 %v3372, 32
      %v3965 = vpop.permute.xlu0 %3964
      %3966 = vrot.lane.b32.xlu0 %v3371, 32
      %v3967 = vpop.permute.xlu0 %3966
      %3968 = vrot.lane.b32.xlu0 %v3375, 32
      %v3969 = vpop.permute.xlu0 %3968
      %3970 = vrot.lane.b32.xlu0 %v3374, 32
      %v3971 = vpop.permute.xlu0 %3970
      %3972 = vrot.lane.b32.xlu0 %v3927, 32
      %v3973 = vpop.permute.xlu0 %3972
      %3974 = vrot.lane.b32.xlu0 %v3926, 32
      %v3975 = vpop.permute.xlu0 %3974
      %v4000 = vcombine.low %v2876, %v2875
      %v4001 = vcombine.low %v2877, %v2885
      %v4003 = vunpack.c.l.s4 1983009808
      %v4004 = vunpack.c.0.s8 %v4003
      %v4005 = vlaneseq
      %v4006 = vshrl.u32 %v4005, 7
      %v4007 = vsub.s32 %v4004, %v4006
      %v4008 = vrot.slane %v4000, %v4007
      %v4010 = vunpack.c.l.s4 1983009808
      %v4011 = vunpack.c.0.s8 %v4010
      %v4012 = vlaneseq
      %v4013 = vshrl.u32 %v4012, 7
      %v4014 = vsub.s32 %v4011, %v4013
      %v4015 = vrot.slane %v4001, %v4014
      %v4016 = vcombine.low %v4008, %v4015
      %v4017 = vcombine.low %v2893, %v2892
      %v4019 = vunpack.c.l.s4 1983009808
      %v4020 = vunpack.c.0.s8 %v4019
      %v4021 = vlaneseq
      %v4022 = vshrl.u32 %v4021, 7
      %v4023 = vsub.s32 %v4020, %v4022
      %v4024 = vrot.slane %v4017, %v4023
      %4025 = vrot.lane.b32.xlu0 %v3489, 40
      %v4026 = vpop.permute.xlu0 %4025
      %4027 = vrot.lane.b32.xlu0 %v3497, 40
      %v4028 = vpop.permute.xlu0 %4027
      %4029 = vrot.lane.b32.xlu0 %v3514, 40
      %v4030 = vpop.permute.xlu0 %4029
      %4031 = vrot.lane.b32.xlu0 %v3522, 40
      %v4032 = vpop.permute.xlu0 %4031
      %4033 = vrot.lane.b32.xlu0 %v3539, 40
      %v4034 = vpop.permute.xlu0 %4033
      %4035 = vrot.lane.b32.xlu0 %v3547, 40
      %v4036 = vpop.permute.xlu0 %4035
      %4037 = vrot.lane.b32.xlu0 %v3564, 40
      %v4038 = vpop.permute.xlu0 %4037
      %4039 = vrot.lane.b32.xlu0 %v3572, 40
      %v4040 = vpop.permute.xlu0 %4039
      %4041 = vrot.lane.b32.xlu0 %v3589, 40
      %v4042 = vpop.permute.xlu0 %4041
      %4043 = vrot.lane.b32.xlu0 %v3597, 40
      %v4044 = vpop.permute.xlu0 %4043
      %4045 = vrot.lane.b32.xlu0 %v3614, 40
      %v4046 = vpop.permute.xlu0 %4045
      %4047 = vrot.lane.b32.xlu0 %v3622, 40
      %v4048 = vpop.permute.xlu0 %4047
      %4049 = vrot.lane.b32.xlu0 %v3639, 40
      %v4050 = vpop.permute.xlu0 %4049
      %4051 = vrot.lane.b32.xlu0 %v3647, 40
      %v4052 = vpop.permute.xlu0 %4051
      %4053 = vrot.lane.b32.xlu0 %v3664, 40
      %v4054 = vpop.permute.xlu0 %4053
      %4055 = vrot.lane.b32.xlu0 %v3672, 40
      %v4056 = vpop.permute.xlu0 %4055
      %4057 = vrot.lane.b32.xlu0 %v3689, 40
      %v4058 = vpop.permute.xlu0 %4057
      %4059 = vrot.lane.b32.xlu0 %v3697, 40
      %v4060 = vpop.permute.xlu0 %4059
      %4061 = vrot.lane.b32.xlu0 %v3714, 40
      %v4062 = vpop.permute.xlu0 %4061
      %4063 = vrot.lane.b32.xlu0 %v3722, 40
      %v4064 = vpop.permute.xlu0 %4063
      %4065 = vrot.lane.b32.xlu0 %v3739, 40
      %v4066 = vpop.permute.xlu0 %4065
      %4067 = vrot.lane.b32.xlu0 %v3747, 40
      %v4068 = vpop.permute.xlu0 %4067
      %4069 = vrot.lane.b32.xlu0 %v4016, 40
      %v4070 = vpop.permute.xlu0 %4069
      %4071 = vrot.lane.b32.xlu0 %v4024, 40
      %v4072 = vpop.permute.xlu0 %4071
      %v4097 = vcombine.low %v2894, %v2902
      %v4098 = vcombine.low %v2910, %v2909
      %v4100 = vunpack.c.l.s4 1983009808
      %v4101 = vunpack.c.0.s8 %v4100
      %v4102 = vlaneseq
      %v4103 = vshrl.u32 %v4102, 7
      %v4104 = vsub.s32 %v4101, %v4103
      %v4105 = vrot.slane %v4097, %v4104
      %v4107 = vunpack.c.l.s4 1983009808
      %v4108 = vunpack.c.0.s8 %v4107
      %v4109 = vlaneseq
      %v4110 = vshrl.u32 %v4109, 7
      %v4111 = vsub.s32 %v4108, %v4110
      %v4112 = vrot.slane %v4098, %v4111
      %v4113 = vcombine.low %v4105, %v4112
      %v4114 = vcombine.low %v2911, %v2918
      %v4116 = vunpack.c.l.s4 1983009808
      %v4117 = vunpack.c.0.s8 %v4116
      %v4118 = vlaneseq
      %v4119 = vshrl.u32 %v4118, 7
      %v4120 = vsub.s32 %v4117, %v4119
      %v4121 = vrot.slane %v4114, %v4120
      %4122 = vrot.lane.b32.xlu0 %v2986, 48
      %v4123 = vpop.permute.xlu0 %4122
      %4124 = vrot.lane.b32.xlu0 %v2994, 48
      %v4125 = vpop.permute.xlu0 %4124
      %4126 = vrot.lane.b32.xlu0 %v3011, 48
      %v4127 = vpop.permute.xlu0 %4126
      %4128 = vrot.lane.b32.xlu0 %v3019, 48
      %v4129 = vpop.permute.xlu0 %4128
      %4130 = vrot.lane.b32.xlu0 %v3036, 48
      %v4131 = vpop.permute.xlu0 %4130
      %4132 = vrot.lane.b32.xlu0 %v3044, 48
      %v4133 = vpop.permute.xlu0 %4132
      %4134 = vrot.lane.b32.xlu0 %v3061, 48
      %v4135 = vpop.permute.xlu0 %4134
      %4136 = vrot.lane.b32.xlu0 %v3069, 48
      %v4137 = vpop.permute.xlu0 %4136
      %4138 = vrot.lane.b32.xlu0 %v3086, 48
      %v4139 = vpop.permute.xlu0 %4138
      %4140 = vrot.lane.b32.xlu0 %v3094, 48
      %v4141 = vpop.permute.xlu0 %4140
      %4142 = vrot.lane.b32.xlu0 %v3111, 48
      %v4143 = vpop.permute.xlu0 %4142
      %4144 = vrot.lane.b32.xlu0 %v3119, 48
      %v4145 = vpop.permute.xlu0 %4144
      %4146 = vrot.lane.b32.xlu0 %v3136, 48
      %v4147 = vpop.permute.xlu0 %4146
      %4148 = vrot.lane.b32.xlu0 %v3144, 48
      %v4149 = vpop.permute.xlu0 %4148
      %4150 = vrot.lane.b32.xlu0 %v3161, 48
      %v4151 = vpop.permute.xlu0 %4150
      %4152 = vrot.lane.b32.xlu0 %v3169, 48
      %v4153 = vpop.permute.xlu0 %4152
      %4154 = vrot.lane.b32.xlu0 %v3186, 48
      %v4155 = vpop.permute.xlu0 %4154
      %4156 = vrot.lane.b32.xlu0 %v3194, 48
      %v4157 = vpop.permute.xlu0 %4156
      %4158 = vrot.lane.b32.xlu0 %v3211, 48
      %v4159 = vpop.permute.xlu0 %4158
      %4160 = vrot.lane.b32.xlu0 %v3219, 48
      %v4161 = vpop.permute.xlu0 %4160
      %4162 = vrot.lane.b32.xlu0 %v3836, 48
      %v4163 = vpop.permute.xlu0 %4162
      %4164 = vrot.lane.b32.xlu0 %v3844, 48
      %v4165 = vpop.permute.xlu0 %4164
      %4166 = vrot.lane.b32.xlu0 %v4113, 48
      %v4167 = vpop.permute.xlu0 %4166
      %4168 = vrot.lane.b32.xlu0 %v4121, 48
      %v4169 = vpop.permute.xlu0 %4168
      %v4195 = vunpack.c.l.s4 1983009808
      %v4196 = vunpack.c.0.s8 %v4195
      %v4197 = vlaneseq
      %v4198 = vshrl.u32 %v4197, 7
      %v4199 = vsub.s32 %v4196, %v4198
      %v4200 = vrot.slane %v2919, %v4199
      %v4201 = vcombine.low %v4121, %v4200
      %v4202 = vrot.slane %v4113, 1
      %v4203 = vrot.slane %v4201, 1
      %v4204 = vsel %vm285, %v4202, %v4203
      %4205 = vrot.lane.b32.xlu0 %v3348, 56
      %v4206 = vpop.permute.xlu0 %4205
      %4207 = vrot.lane.b32.xlu0 %v3347, 56
      %v4208 = vpop.permute.xlu0 %4207
      %4209 = vrot.lane.b32.xlu0 %v3351, 56
      %v4210 = vpop.permute.xlu0 %4209
      %4211 = vrot.lane.b32.xlu0 %v3350, 56
      %v4212 = vpop.permute.xlu0 %4211
      %4213 = vrot.lane.b32.xlu0 %v3354, 56
      %v4214 = vpop.permute.xlu0 %4213
      %4215 = vrot.lane.b32.xlu0 %v3353, 56
      %v4216 = vpop.permute.xlu0 %4215
      %4217 = vrot.lane.b32.xlu0 %v3357, 56
      %v4218 = vpop.permute.xlu0 %4217
      %4219 = vrot.lane.b32.xlu0 %v3356, 56
      %v4220 = vpop.permute.xlu0 %4219
      %4221 = vrot.lane.b32.xlu0 %v3360, 56
      %v4222 = vpop.permute.xlu0 %4221
      %4223 = vrot.lane.b32.xlu0 %v3359, 56
      %v4224 = vpop.permute.xlu0 %4223
      %4225 = vrot.lane.b32.xlu0 %v3363, 56
      %v4226 = vpop.permute.xlu0 %4225
      %4227 = vrot.lane.b32.xlu0 %v3362, 56
      %v4228 = vpop.permute.xlu0 %4227
      %4229 = vrot.lane.b32.xlu0 %v3366, 56
      %v4230 = vpop.permute.xlu0 %4229
      %4231 = vrot.lane.b32.xlu0 %v3365, 56
      %v4232 = vpop.permute.xlu0 %4231
      %4233 = vrot.lane.b32.xlu0 %v3369, 56
      %v4234 = vpop.permute.xlu0 %4233
      %4235 = vrot.lane.b32.xlu0 %v3368, 56
      %v4236 = vpop.permute.xlu0 %4235
      %4237 = vrot.lane.b32.xlu0 %v3372, 56
      %v4238 = vpop.permute.xlu0 %4237
      %4239 = vrot.lane.b32.xlu0 %v3371, 56
      %v4240 = vpop.permute.xlu0 %4239
      %4241 = vrot.lane.b32.xlu0 %v3375, 56
      %v4242 = vpop.permute.xlu0 %4241
      %4243 = vrot.lane.b32.xlu0 %v3374, 56
      %v4244 = vpop.permute.xlu0 %4243
      %4245 = vrot.lane.b32.xlu0 %v3927, 56
      %v4246 = vpop.permute.xlu0 %4245
      %4247 = vrot.lane.b32.xlu0 %v3926, 56
      %v4248 = vpop.permute.xlu0 %4247
      %4249 = vrot.lane.b32.xlu0 %v4204, 56
      %v4250 = vpop.permute.xlu0 %4249
      %4251 = vrot.lane.b32.xlu0 %v4203, 56
      %v4252 = vpop.permute.xlu0 %4251
      %v4277 = vcombine.low %v2902, %v2910
      %v4278 = vcombine.low %v2909, %v2911
      %v4280 = vunpack.c.l.s4 1983009808
      %v4281 = vunpack.c.0.s8 %v4280
      %v4282 = vlaneseq
      %v4283 = vshrl.u32 %v4282, 7
      %v4284 = vsub.s32 %v4281, %v4283
      %v4285 = vrot.slane %v4277, %v4284
      %v4287 = vunpack.c.l.s4 1983009808
      %v4288 = vunpack.c.0.s8 %v4287
      %v4289 = vlaneseq
      %v4290 = vshrl.u32 %v4289, 7
      %v4291 = vsub.s32 %v4288, %v4290
      %v4292 = vrot.slane %v4278, %v4291
      %v4293 = vcombine.low %v4285, %v4292
      %v4294 = vcombine.low %v2918, %v2919
      %v4296 = vunpack.c.l.s4 1983009808
      %v4297 = vunpack.c.0.s8 %v4296
      %v4298 = vlaneseq
      %v4299 = vshrl.u32 %v4298, 7
      %v4300 = vsub.s32 %v4297, %v4299
      %v4301 = vrot.slane %v4294, %v4300
      %4302 = vrot.lane.b32.xlu0 %v3514, 64
      %v4303 = vpop.permute.xlu0 %4302
      %4304 = vrot.lane.b32.xlu0 %v3522, 64
      %v4305 = vpop.permute.xlu0 %4304
      %4306 = vrot.lane.b32.xlu0 %v3539, 64
      %v4307 = vpop.permute.xlu0 %4306
      %4308 = vrot.lane.b32.xlu0 %v3547, 64
      %v4309 = vpop.permute.xlu0 %4308
      %4310 = vrot.lane.b32.xlu0 %v3564, 64
      %v4311 = vpop.permute.xlu0 %4310
      %4312 = vrot.lane.b32.xlu0 %v3572, 64
      %v4313 = vpop.permute.xlu0 %4312
      %4314 = vrot.lane.b32.xlu0 %v3589, 64
      %v4315 = vpop.permute.xlu0 %4314
      %4316 = vrot.lane.b32.xlu0 %v3597, 64
      %v4317 = vpop.permute.xlu0 %4316
      %4318 = vrot.lane.b32.xlu0 %v3614, 64
      %v4319 = vpop.permute.xlu0 %4318
      %4320 = vrot.lane.b32.xlu0 %v3622, 64
      %v4321 = vpop.permute.xlu0 %4320
      %4322 = vrot.lane.b32.xlu0 %v3639, 64
      %v4323 = vpop.permute.xlu0 %4322
      %4324 = vrot.lane.b32.xlu0 %v3647, 64
      %v4325 = vpop.permute.xlu0 %4324
      %4326 = vrot.lane.b32.xlu0 %v3664, 64
      %v4327 = vpop.permute.xlu0 %4326
      %4328 = vrot.lane.b32.xlu0 %v3672, 64
      %v4329 = vpop.permute.xlu0 %4328
      %4330 = vrot.lane.b32.xlu0 %v3689, 64
      %v4331 = vpop.permute.xlu0 %4330
      %4332 = vrot.lane.b32.xlu0 %v3697, 64
      %v4333 = vpop.permute.xlu0 %4332
      %4334 = vrot.lane.b32.xlu0 %v3714, 64
      %v4335 = vpop.permute.xlu0 %4334
      %4336 = vrot.lane.b32.xlu0 %v3722, 64
      %v4337 = vpop.permute.xlu0 %4336
      %4338 = vrot.lane.b32.xlu0 %v3739, 64
      %v4339 = vpop.permute.xlu0 %4338
      %4340 = vrot.lane.b32.xlu0 %v3747, 64
      %v4341 = vpop.permute.xlu0 %4340
      %4342 = vrot.lane.b32.xlu0 %v4016, 64
      %v4343 = vpop.permute.xlu0 %4342
      %4344 = vrot.lane.b32.xlu0 %v4024, 64
      %v4345 = vpop.permute.xlu0 %4344
      %4346 = vrot.lane.b32.xlu0 %v4293, 64
      %v4347 = vpop.permute.xlu0 %4346
      %4348 = vrot.lane.b32.xlu0 %v4301, 64
      %v4349 = vpop.permute.xlu0 %4348
      %v4374 = vsel %vm1088, %v2936, %v3377
      %v4375 = vsel %vm1088, %v2944, %v3379
      %v4376 = vsel %vm1088, %v2961, %v3381
      %v4377 = vsel %vm1088, %v2969, %v3383
      %v4378 = vsel %vm1088, %v2986, %v3385
      %v4379 = vsel %vm1088, %v2994, %v3387
      %v4380 = vsel %vm1088, %v3011, %v3389
      %v4381 = vsel %vm1088, %v3019, %v3391
      %v4382 = vsel %vm1088, %v3036, %v3393
      %v4383 = vsel %vm1088, %v3044, %v3395
      %v4384 = vsel %vm1088, %v3061, %v3397
      %v4385 = vsel %vm1088, %v3069, %v3399
      %v4386 = vsel %vm1088, %v3086, %v3401
      %v4387 = vsel %vm1088, %v3094, %v3403
      %v4388 = vsel %vm1088, %v3111, %v3405
      %v4389 = vsel %vm1088, %v3119, %v3407
      %v4390 = vsel %vm1088, %v3136, %v3409
      %v4391 = vsel %vm1088, %v3144, %v3411
      %v4392 = vsel %vm1088, %v3161, %v3413
      %v4393 = vsel %vm1088, %v3169, %v3415
      %v4394 = vsel %vm1088, %v3186, %v3417
      %v4395 = vsel %vm1088, %v3194, %v3419
      %v4396 = vsel %vm1088, %v3211, %v3421
      %v4397 = vsel %vm1088, %v3219, %v3423
      %v4398 = vsel %vm1146, %v4374, %v3749
      %v4399 = vsel %vm1146, %v4375, %v3751
      %v4400 = vsel %vm1146, %v4376, %v3753
      %v4401 = vsel %vm1146, %v4377, %v3755
      %v4402 = vsel %vm1146, %v4378, %v3757
      %v4403 = vsel %vm1146, %v4379, %v3759
      %v4404 = vsel %vm1146, %v4380, %v3761
      %v4405 = vsel %vm1146, %v4381, %v3763
      %v4406 = vsel %vm1146, %v4382, %v3765
      %v4407 = vsel %vm1146, %v4383, %v3767
      %v4408 = vsel %vm1146, %v4384, %v3769
      %v4409 = vsel %vm1146, %v4385, %v3771
      %v4410 = vsel %vm1146, %v4386, %v3773
      %v4411 = vsel %vm1146, %v4387, %v3775
      %v4412 = vsel %vm1146, %v4388, %v3777
      %v4413 = vsel %vm1146, %v4389, %v3779
      %v4414 = vsel %vm1146, %v4390, %v3781
      %v4415 = vsel %vm1146, %v4391, %v3783
      %v4416 = vsel %vm1146, %v4392, %v3785
      %v4417 = vsel %vm1146, %v4393, %v3787
      %v4418 = vsel %vm1146, %v4394, %v3789
      %v4419 = vsel %vm1146, %v4395, %v3791
      %v4420 = vsel %vm1146, %v4396, %v3793
      %v4421 = vsel %vm1146, %v4397, %v3795
      %v4422 = vsel %vm1204, %v4398, %v3846
      %v4423 = vsel %vm1204, %v4399, %v3848
      %v4424 = vsel %vm1204, %v4400, %v3850
      %v4425 = vsel %vm1204, %v4401, %v3852
      %v4426 = vsel %vm1204, %v4402, %v3854
      %v4427 = vsel %vm1204, %v4403, %v3856
      %v4428 = vsel %vm1204, %v4404, %v3858
      %v4429 = vsel %vm1204, %v4405, %v3860
      %v4430 = vsel %vm1204, %v4406, %v3862
      %v4431 = vsel %vm1204, %v4407, %v3864
      %v4432 = vsel %vm1204, %v4408, %v3866
      %v4433 = vsel %vm1204, %v4409, %v3868
      %v4434 = vsel %vm1204, %v4410, %v3870
      %v4435 = vsel %vm1204, %v4411, %v3872
      %v4436 = vsel %vm1204, %v4412, %v3874
      %v4437 = vsel %vm1204, %v4413, %v3876
      %v4438 = vsel %vm1204, %v4414, %v3878
      %v4439 = vsel %vm1204, %v4415, %v3880
      %v4440 = vsel %vm1204, %v4416, %v3882
      %v4441 = vsel %vm1204, %v4417, %v3884
      %v4442 = vsel %vm1204, %v4418, %v3886
      %v4443 = vsel %vm1204, %v4419, %v3888
      %v4444 = vsel %vm1204, %v4420, %v3890
      %v4445 = vsel %vm1204, %v4421, %v3892
      %v4446 = vsel %vm1262, %v4422, %v3929
      %v4447 = vsel %vm1262, %v4423, %v3931
      %v4448 = vsel %vm1262, %v4424, %v3933
      %v4449 = vsel %vm1262, %v4425, %v3935
      %v4450 = vsel %vm1262, %v4426, %v3937
      %v4451 = vsel %vm1262, %v4427, %v3939
      %v4452 = vsel %vm1262, %v4428, %v3941
      %v4453 = vsel %vm1262, %v4429, %v3943
      %v4454 = vsel %vm1262, %v4430, %v3945
      %v4455 = vsel %vm1262, %v4431, %v3947
      %v4456 = vsel %vm1262, %v4432, %v3949
      %v4457 = vsel %vm1262, %v4433, %v3951
      %v4458 = vsel %vm1262, %v4434, %v3953
      %v4459 = vsel %vm1262, %v4435, %v3955
      %v4460 = vsel %vm1262, %v4436, %v3957
      %v4461 = vsel %vm1262, %v4437, %v3959
      %v4462 = vsel %vm1262, %v4438, %v3961
      %v4463 = vsel %vm1262, %v4439, %v3963
      %v4464 = vsel %vm1262, %v4440, %v3965
      %v4465 = vsel %vm1262, %v4441, %v3967
      %v4466 = vsel %vm1262, %v4442, %v3969
      %v4467 = vsel %vm1262, %v4443, %v3971
      %v4468 = vsel %vm1262, %v4444, %v3973
      %v4469 = vsel %vm1262, %v4445, %v3975
      %vm4470 = vcmask 326656
      %v4471 = vsel %vm4470, %v4446, %v4026
      %v4472 = vsel %vm4470, %v4447, %v4028
      %v4473 = vsel %vm4470, %v4448, %v4030
      %v4474 = vsel %vm4470, %v4449, %v4032
      %v4475 = vsel %vm4470, %v4450, %v4034
      %v4476 = vsel %vm4470, %v4451, %v4036
      %v4477 = vsel %vm4470, %v4452, %v4038
      %v4478 = vsel %vm4470, %v4453, %v4040
      %v4479 = vsel %vm4470, %v4454, %v4042
      %v4480 = vsel %vm4470, %v4455, %v4044
      %v4481 = vsel %vm4470, %v4456, %v4046
      %v4482 = vsel %vm4470, %v4457, %v4048
      %v4483 = vsel %vm4470, %v4458, %v4050
      %v4484 = vsel %vm4470, %v4459, %v4052
      %v4485 = vsel %vm4470, %v4460, %v4054
      %v4486 = vsel %vm4470, %v4461, %v4056
      %v4487 = vsel %vm4470, %v4462, %v4058
      %v4488 = vsel %vm4470, %v4463, %v4060
      %v4489 = vsel %vm4470, %v4464, %v4062
      %v4490 = vsel %vm4470, %v4465, %v4064
      %v4491 = vsel %vm4470, %v4466, %v4066
      %v4492 = vsel %vm4470, %v4467, %v4068
      %v4493 = vsel %vm4470, %v4468, %v4070
      %v4494 = vsel %vm4470, %v4469, %v4072
      %vm4495 = vcmask 392192
      %v4496 = vsel %vm4495, %v4471, %v4123
      %v4497 = vsel %vm4495, %v4472, %v4125
      %v4498 = vsel %vm4495, %v4473, %v4127
      %v4499 = vsel %vm4495, %v4474, %v4129
      %v4500 = vsel %vm4495, %v4475, %v4131
      %v4501 = vsel %vm4495, %v4476, %v4133
      %v4502 = vsel %vm4495, %v4477, %v4135
      %v4503 = vsel %vm4495, %v4478, %v4137
      %v4504 = vsel %vm4495, %v4479, %v4139
      %v4505 = vsel %vm4495, %v4480, %v4141
      %v4506 = vsel %vm4495, %v4481, %v4143
      %v4507 = vsel %vm4495, %v4482, %v4145
      %v4508 = vsel %vm4495, %v4483, %v4147
      %v4509 = vsel %vm4495, %v4484, %v4149
      %v4510 = vsel %vm4495, %v4485, %v4151
      %v4511 = vsel %vm4495, %v4486, %v4153
      %v4512 = vsel %vm4495, %v4487, %v4155
      %v4513 = vsel %vm4495, %v4488, %v4157
      %v4514 = vsel %vm4495, %v4489, %v4159
      %v4515 = vsel %vm4495, %v4490, %v4161
      %v4516 = vsel %vm4495, %v4491, %v4163
      %v4517 = vsel %vm4495, %v4492, %v4165
      %v4518 = vsel %vm4495, %v4493, %v4167
      %v4519 = vsel %vm4495, %v4494, %v4169
      %vm4520 = vcmask 457728
      %v4521 = vsel %vm4520, %v4496, %v4206
      %v4522 = vsel %vm4520, %v4497, %v4208
      %v4523 = vsel %vm4520, %v4498, %v4210
      %v4524 = vsel %vm4520, %v4499, %v4212
      %v4525 = vsel %vm4520, %v4500, %v4214
      %v4526 = vsel %vm4520, %v4501, %v4216
      %v4527 = vsel %vm4520, %v4502, %v4218
      %v4528 = vsel %vm4520, %v4503, %v4220
      %v4529 = vsel %vm4520, %v4504, %v4222
      %v4530 = vsel %vm4520, %v4505, %v4224
      %v4531 = vsel %vm4520, %v4506, %v4226
      %v4532 = vsel %vm4520, %v4507, %v4228
      %v4533 = vsel %vm4520, %v4508, %v4230
      %v4534 = vsel %vm4520, %v4509, %v4232
      %v4535 = vsel %vm4520, %v4510, %v4234
      %v4536 = vsel %vm4520, %v4511, %v4236
      %v4537 = vsel %vm4520, %v4512, %v4238
      %v4538 = vsel %vm4520, %v4513, %v4240
      %v4539 = vsel %vm4520, %v4514, %v4242
      %v4540 = vsel %vm4520, %v4515, %v4244
      %v4541 = vsel %vm4520, %v4516, %v4246
      %v4542 = vsel %vm4520, %v4517, %v4248
      %v4543 = vsel %vm4520, %v4518, %v4250
      %v4544 = vsel %vm4520, %v4519, %v4252
      %vm4545 = vcmask 523264
      %v4546 = vsel %vm4545, %v4521, %v4303
      %v4547 = vsel %vm4545, %v4522, %v4305
      %v4548 = vsel %vm4545, %v4523, %v4307
      %v4549 = vsel %vm4545, %v4524, %v4309
      %v4550 = vsel %vm4545, %v4525, %v4311
      %v4551 = vsel %vm4545, %v4526, %v4313
      %v4552 = vsel %vm4545, %v4527, %v4315
      %v4553 = vsel %vm4545, %v4528, %v4317
      %v4554 = vsel %vm4545, %v4529, %v4319
      %v4555 = vsel %vm4545, %v4530, %v4321
      %v4556 = vsel %vm4545, %v4531, %v4323
      %v4557 = vsel %vm4545, %v4532, %v4325
      %v4558 = vsel %vm4545, %v4533, %v4327
      %v4559 = vsel %vm4545, %v4534, %v4329
      %v4560 = vsel %vm4545, %v4535, %v4331
      %v4561 = vsel %vm4545, %v4536, %v4333
      %v4562 = vsel %vm4545, %v4537, %v4335
      %v4563 = vsel %vm4545, %v4538, %v4337
      %v4564 = vsel %vm4545, %v4539, %v4339
      %v4565 = vsel %vm4545, %v4540, %v4341
      %v4566 = vsel %vm4545, %v4541, %v4343
      %v4567 = vsel %vm4545, %v4542, %v4345
      %v4568 = vsel %vm4545, %v4543, %v4347
      %v4569 = vsel %vm4545, %v4544, %v4349
      %v4594 = vcombine.high %v4546, %v4546
      %v4595 = vcombine.high %v4548, %v4548
      %v4596 = vcombine.high %v4550, %v4550
      %v4597 = vcombine.high %v4552, %v4552
      %v4598 = vcombine.high %v4554, %v4554
      %v4599 = vcombine.high %v4556, %v4556
      %v4600 = vcombine.high %v4558, %v4558
      %v4601 = vcombine.high %v4560, %v4560
      %v4602 = vcombine.high %v4562, %v4562
      %v4603 = vcombine.high %v4564, %v4564
      %v4604 = vcombine.high %v4566, %v4566
      %v4605 = vcombine.high %v4568, %v4568
      %v4606 = vld [vmem:[%s3] sm:$0xff]
      %v4607 = vld [vmem:[%s3 + $0x8] sm:$0xff]
      %v4608 = vld [vmem:[%s3 + $0x10] sm:$0xff]
      %v4609 = vld [vmem:[%s3 + $0x18] sm:$0xff]
      %v4610 = vld [vmem:[%s3 + $0x20] sm:$0xff]
      %v4611 = vld [vmem:[%s3 + $0x28] sm:$0xff]
      %v4612 = vld [vmem:[%s3 + $0x30] sm:$0xff]
      %v4613 = vld [vmem:[%s3 + $0x38] sm:$0xff]
      %v4614 = vld [vmem:[%s3 + $0x40] sm:$0xff]
      %v4615 = vld [vmem:[%s4] sm:$0x1]
      %v4617 = vlaneseq
      %v4618 = vshrl.u32 %v4617, 7
      %v4619 = vsub.s32 0, %v4618
      %v4620 = vrot.slane %v4615, %v4619
      %v4622 = vcombine.low %v4546, %v4594
      %v4623 = vcombine.low %v4547, %v4548
      %v4624 = vcombine.low %v4595, %v4549
      %v4625 = vcombine.low %v4550, %v4596
      %v4626 = vcombine.low %v4551, %v4552
      %v4627 = vcombine.low %v4597, %v4553
      %v4628 = vcombine.low %v4554, %v4598
      %v4629 = vcombine.low %v4555, %v4556
      %v4630 = vcombine.low %v4599, %v4557
      %v4631 = vcombine.low %v4558, %v4600
      %v4632 = vcombine.low %v4559, %v4560
      %v4633 = vcombine.low %v4601, %v4561
      %v4634 = vcombine.low %v4562, %v4602
      %v4635 = vcombine.low %v4563, %v4564
      %v4636 = vcombine.low %v4603, %v4565
      %v4637 = vcombine.low %v4566, %v4604
      %v4638 = vcombine.low %v4567, %v4568
      %v4639 = vcombine.low %v4605, %v4569
      %vm4640 = vcmask 588800
      %v4641 = vsel %vm4640, %v4622, 0
      %v4643 = vsel %vm4640, %v4623, 0
      %v4645 = vsel %vm4640, %v4624, 0
      %v4647 = vsel %vm4640, %v4625, 0
      %v4649 = vsel %vm4640, %v4626, 0
      %v4651 = vsel %vm4640, %v4627, 0
      %v4653 = vsel %vm4640, %v4628, 0
      %v4655 = vsel %vm4640, %v4629, 0
      %v4657 = vsel %vm4640, %v4630, 0
      %v4659 = vsel %vm4640, %v4631, 0
      %v4661 = vsel %vm4640, %v4632, 0
      %v4663 = vsel %vm4640, %v4633, 0
      %v4665 = vsel %vm4640, %v4634, 0
      %v4667 = vsel %vm4640, %v4635, 0
      %v4669 = vsel %vm4640, %v4636, 0
      %v4671 = vsel %vm4640, %v4637, 0
      %v4673 = vsel %vm4640, %v4638, 0
      %v4675 = vsel %vm4640, %v4639, 0
      %4677 = vmatprep.subr.mxu0 0.0
      %4678 = vmatpush1.msra.mxu0 0.0
      %4679 = vmatprep.subr.mxu0 0.0
      %4680 = vmatpush1.msra.mxu0 0.0
      %4681 = vmatprep.subr.mxu0 0.0
      %4682 = vmatpush1.msra.mxu0 0.0
      %4683 = vmatprep.subr.mxu0 0.0
      %4684 = vmatpush1.msra.mxu0 0.0
      %4685 = vmatprep.subr.mxu0 0.0
      %4686 = vmatpush1.msra.mxu0 0.0
      %4687 = vmatprep.subr.mxu0 0.0
      %4688 = vmatpush1.msra.mxu0 0.0
      %4689 = vmatprep.subr.mxu0 0.0
      %4690 = vmatpush1.msra.mxu0 0.0
      %4691 = vmatprep.subr.mxu0 0.0
      %4692 = vmatpush1.msra.mxu0 %v4614
      %4693 = vmatprep.subr.mxu0 0.0
      %4694 = vmatpush1.msra.mxu0 %v4613
      %4695 = vmatprep.subr.mxu0 0.0
      %4696 = vmatpush1.msra.mxu0 %v4612
      %4697 = vmatprep.subr.mxu0 0.0
      %4698 = vmatpush1.msra.mxu0 %v4611
      %4699 = vmatprep.subr.mxu0 0.0
      %4700 = vmatpush1.msra.mxu0 %v4610
      %4701 = vmatprep.subr.mxu0 0.0
      %4702 = vmatpush1.msra.mxu0 %v4609
      %4703 = vmatprep.subr.mxu0 0.0
      %4704 = vmatpush1.msra.mxu0 %v4608
      %4705 = vmatprep.subr.mxu0 0.0
      %4706 = vmatpush1.msra.mxu0 %v4607
      %4707 = vmatprep.subr.mxu0 0.0
      %4708 = vmatpush1.msra.mxu0 %v4606
      %4709 = vmatprep.subr.mxu0 0.0
      %4710 = vmatpush2.msra.mxu0 0.0
      %4711 = vmatprep.subr.mxu0 0.0
      %4712 = vmatpush2.msra.mxu0 0.0
      %4713 = vmatprep.subr.mxu0 0.0
      %4714 = vmatpush2.msra.mxu0 0.0
      %4715 = vmatprep.subr.mxu0 0.0
      %4716 = vmatpush2.msra.mxu0 0.0
      %4717 = vmatprep.subr.mxu0 0.0
      %4718 = vmatpush2.msra.mxu0 0.0
      %4719 = vmatprep.subr.mxu0 0.0
      %4720 = vmatpush2.msra.mxu0 0.0
      %4721 = vmatprep.subr.mxu0 0.0
      %4722 = vmatpush2.msra.mxu0 0.0
      %4723 = vmatprep.subr.mxu0 0.0
      %4724 = vmatpush2.msra.mxu0 0.0
      %4725 = vmatprep.subr.mxu0 0.0
      %4726 = vmatpush2.msra.mxu0 0.0
      %4727 = vmatprep.subr.mxu0 0.0
      %4728 = vmatpush2.msra.mxu0 0.0
      %4729 = vmatprep.subr.mxu0 0.0
      %4730 = vmatpush2.msra.mxu0 0.0
      %4731 = vmatprep.subr.mxu0 0.0
      %4732 = vmatpush2.msra.mxu0 0.0
      %4733 = vmatprep.subr.mxu0 0.0
      %4734 = vmatpush2.msra.mxu0 0.0
      %4735 = vmatprep.subr.mxu0 0.0
      %4736 = vmatpush2.msra.mxu0 0.0
      %4737 = vmatprep.subr.mxu0 0.0
      %4738 = vmatpush2.msra.mxu0 0.0
      %4739 = vmatprep.subr.mxu0 0.0
      %4740 = vmatpush2.msra.mxu0 0.0
      %4741 = vmatprep.mubr.f32.mxu0 0.0
      %4742 = vmatmul.mubr.f32.gmra.mxu0 %v4641
      %v4743 = vpop.f32.mrf.mxu0
      %v4744 = vadd.f32 %v4620, %v4743
      %v4745 = vpop.f32.mrf.mxu0
      %4746 = vmatprep.mubr.f32.mxu0 0.0
      %4747 = vmatmul.mubr.f32.gmra.mxu0 %v4643
      %v4748 = vpop.f32.mrf.mxu0
      %v4749 = vadd.f32 %v4620, %v4748
      %v4750 = vpop.f32.mrf.mxu0
      %4751 = vmatprep.mubr.f32.mxu0 0.0
      %4752 = vmatmul.mubr.f32.gmra.mxu0 %v4645
      %v4753 = vpop.f32.mrf.mxu0
      %v4754 = vadd.f32 %v4620, %v4753
      %v4755 = vpop.f32.mrf.mxu0
      %4756 = vmatprep.mubr.f32.mxu0 0.0
      %4757 = vmatmul.mubr.f32.gmra.mxu0 %v4647
      %v4758 = vpop.f32.mrf.mxu0
      %v4759 = vadd.f32 %v4620, %v4758
      %v4760 = vpop.f32.mrf.mxu0
      %4761 = vmatprep.mubr.f32.mxu0 0.0
      %4762 = vmatmul.mubr.f32.gmra.mxu0 %v4649
      %v4763 = vpop.f32.mrf.mxu0
      %v4764 = vadd.f32 %v4620, %v4763
      %v4765 = vpop.f32.mrf.mxu0
      %4766 = vmatprep.mubr.f32.mxu0 0.0
      %4767 = vmatmul.mubr.f32.gmra.mxu0 %v4651
      %v4768 = vpop.f32.mrf.mxu0
      %v4769 = vadd.f32 %v4620, %v4768
      %v4770 = vpop.f32.mrf.mxu0
      %4771 = vmatprep.mubr.f32.mxu0 0.0
      %4772 = vmatmul.mubr.f32.gmra.mxu0 %v4653
      %v4773 = vpop.f32.mrf.mxu0
      %v4774 = vadd.f32 %v4620, %v4773
      %v4775 = vpop.f32.mrf.mxu0
      %4776 = vmatprep.mubr.f32.mxu0 0.0
      %4777 = vmatmul.mubr.f32.gmra.mxu0 %v4655
      %v4778 = vpop.f32.mrf.mxu0
      %v4779 = vadd.f32 %v4620, %v4778
      %v4780 = vpop.f32.mrf.mxu0
      %4781 = vmatprep.mubr.f32.mxu0 0.0
      %4782 = vmatmul.mubr.f32.gmra.mxu0 %v4657
      %v4783 = vpop.f32.mrf.mxu0
      %v4784 = vadd.f32 %v4620, %v4783
      %v4785 = vpop.f32.mrf.mxu0
      %4786 = vmatprep.mubr.f32.mxu0 0.0
      %4787 = vmatmul.mubr.f32.gmra.mxu0 %v4659
      %v4788 = vpop.f32.mrf.mxu0
      %v4789 = vadd.f32 %v4620, %v4788
      %v4790 = vpop.f32.mrf.mxu0
      %4791 = vmatprep.mubr.f32.mxu0 0.0
      %4792 = vmatmul.mubr.f32.gmra.mxu0 %v4661
      %v4793 = vpop.f32.mrf.mxu0
      %v4794 = vadd.f32 %v4620, %v4793
      %v4795 = vpop.f32.mrf.mxu0
      %4796 = vmatprep.mubr.f32.mxu0 0.0
      %4797 = vmatmul.mubr.f32.gmra.mxu0 %v4663
      %v4798 = vpop.f32.mrf.mxu0
      %v4799 = vadd.f32 %v4620, %v4798
      %v4800 = vpop.f32.mrf.mxu0
      %4801 = vmatprep.mubr.f32.mxu0 0.0
      %4802 = vmatmul.mubr.f32.gmra.mxu0 %v4665
      %v4803 = vpop.f32.mrf.mxu0
      %v4804 = vadd.f32 %v4620, %v4803
      %v4805 = vpop.f32.mrf.mxu0
      %4806 = vmatprep.mubr.f32.mxu0 0.0
      %4807 = vmatmul.mubr.f32.gmra.mxu0 %v4667
      %v4808 = vpop.f32.mrf.mxu0
      %v4809 = vadd.f32 %v4620, %v4808
      %v4810 = vpop.f32.mrf.mxu0
      %4811 = vmatprep.mubr.f32.mxu0 0.0
      %4812 = vmatmul.mubr.f32.gmra.mxu0 %v4669
      %v4813 = vpop.f32.mrf.mxu0
      %v4814 = vadd.f32 %v4620, %v4813
      %v4815 = vpop.f32.mrf.mxu0
      %4816 = vmatprep.mubr.f32.mxu0 0.0
      %4817 = vmatmul.mubr.f32.gmra.mxu0 %v4671
      %v4818 = vpop.f32.mrf.mxu0
      %v4819 = vadd.f32 %v4620, %v4818
      %v4820 = vpop.f32.mrf.mxu0
      %4821 = vmatprep.mubr.f32.mxu0 0.0
      %4822 = vmatmul.mubr.f32.gmra.mxu0 %v4673
      %v4823 = vpop.f32.mrf.mxu0
      %v4824 = vadd.f32 %v4620, %v4823
      %v4825 = vpop.f32.mrf.mxu0
      %4826 = vmatprep.mubr.f32.mxu0 0.0
      %4827 = vmatmul.mubr.f32.gmra.mxu0 %v4675
      %v4828 = vpop.f32.mrf.mxu0
      %v4829 = vadd.f32 %v4620, %v4828
      %v4830 = vpop.f32.mrf.mxu0
      %4831 = vdwg.mxu0
      %v4832 = vmax.f32 %v4744, 0.0
      %v4833 = vmax.f32 %v4749, 0.0
      %v4834 = vmax.f32 %v4754, 0.0
      %v4835 = vmax.f32 %v4759, 0.0
      %v4836 = vmax.f32 %v4764, 0.0
      %v4837 = vmax.f32 %v4769, 0.0
      %v4838 = vmax.f32 %v4774, 0.0
      %v4839 = vmax.f32 %v4779, 0.0
      %v4840 = vmax.f32 %v4784, 0.0
      %v4841 = vmax.f32 %v4789, 0.0
      %v4842 = vmax.f32 %v4794, 0.0
      %v4843 = vmax.f32 %v4799, 0.0
      %v4844 = vmax.f32 %v4804, 0.0
      %v4845 = vmax.f32 %v4809, 0.0
      %v4846 = vmax.f32 %v4814, 0.0
      %v4847 = vmax.f32 %v4819, 0.0
      %v4848 = vmax.f32 %v4824, 0.0
      %v4849 = vmax.f32 %v4829, 0.0
      %4850 = vst.msk [vmem:[%s224] sm:$0xff] %vm1088, %v4832
      %4851 = vst.msk [vmem:[%s224 + $0x8] sm:$0xff] %vm1088, %v4833
      %4852 = vst.msk [vmem:[%s224 + $0x10] sm:$0xff] %vm1088, %v4834
      %4853 = vst.msk [vmem:[%s224 + $0x18] sm:$0xff] %vm1088, %v4835
      %4854 = vst.msk [vmem:[%s224 + $0x20] sm:$0xff] %vm1088, %v4836
      %4855 = vst.msk [vmem:[%s224 + $0x28] sm:$0xff] %vm1088, %v4837
      %4856 = vst.msk [vmem:[%s224 + $0x30] sm:$0xff] %vm1088, %v4838
      %4857 = vst.msk [vmem:[%s224 + $0x38] sm:$0xff] %vm1088, %v4839
      %4858 = vst.msk [vmem:[%s224 + $0x40] sm:$0xff] %vm1088, %v4840
      %4859 = vst.msk [vmem:[%s224 + $0x48] sm:$0xff] %vm1088, %v4841
      %4860 = vst.msk [vmem:[%s224 + $0x50] sm:$0xff] %vm1088, %v4842
      %4861 = vst.msk [vmem:[%s224 + $0x58] sm:$0xff] %vm1088, %v4843
      %4862 = vst.msk [vmem:[%s224 + $0x60] sm:$0xff] %vm1088, %v4844
      %4863 = vst.msk [vmem:[%s224 + $0x68] sm:$0xff] %vm1088, %v4845
      %4864 = vst.msk [vmem:[%s224 + $0x70] sm:$0xff] %vm1088, %v4846
      %4865 = vst.msk [vmem:[%s224 + $0x78] sm:$0xff] %vm1088, %v4847
      %4866 = vst.msk [vmem:[%s224 + $0x80] sm:$0xff] %vm1088, %v4848
      %4867 = vst.msk [vmem:[%s224 + $0x88] sm:$0xff] %vm1088, %v4849
      %p4868 = scmp.lt.s32.totalorder %s16, 1
      %s4869 = scalar_select %p4868, %s16, 1
      %s4870 = smul.addr %s4869, 18
      %s4871 = smul.addr %s4870, 8
      %s4872 = scalar_lea.vmem %s5, %s4871
      // Predicated region
      $region41: #{tpu_custom_call.1} parent=39 // pred_check
        %p4873 = pneg %p144
      $region42: #{tpu_custom_call.1} parent=39 // pred_check_branch
        %4875 = sbr.rel (%p4873) target = $region44
      $region43: #{tpu_custom_call.1} parent=39 // pred_region
        _
      $region44: #{tpu_custom_call.1} parent=39 // pred_fallthru
        _
    $region40: #{tpu_custom_call.1} parent=5 // pred_fallthru
      _
    %p4876 = scmp.le.s32.totalorder 2, %s11
    // Predicated region
    $region45: #{tpu_custom_call.1} parent=5 // pred_check
      %p4877 = pneg %p4876
    $region46: #{tpu_custom_call.1} parent=5 // pred_check_branch
      %4879 = sbr.rel (%p4877) target = $region48
    $region47: #{tpu_custom_call.1} parent=5 // pred_region
      %s4880 = ssub.s32 %s11, 2
      // Predicated region
      $region49: #{tpu_custom_call.1} parent=47 // pred_check
        %p4881 = pneg %p150
      $region50: #{tpu_custom_call.1} parent=47 // pred_check_branch
        %4883 = sbr.rel (%p4881) target = $region52
      $region51: #{tpu_custom_call.1} parent=47 // pred_region
        %p4884 = scmp.lt.s32.totalorder %s17, 1
        %s4885 = scalar_select %p4884, %s17, 1
        %s4886 = smul.addr %s4885, 18
        %s4887 = smul.addr %s4886, 8
        %s4888 = scalar_lea.vmem %s5, %s4887
      $region52: #{tpu_custom_call.1} parent=47 // pred_fallthru
        _
    $region48: #{tpu_custom_call.1} parent=5 // pred_fallthru
      _
  $region6: #{tpu_custom_call.1} parent=0 // loop_footer
    %s15 = sadd.s32 1, %s11
  $region7: #{tpu_custom_call.1} parent=0 // loop_footer_branch
    %10 = sbr.rel target = $region3
  $region8: #{tpu_custom_call.1} parent=0 // loop_exit
    _

</llo_original>
